<compile_context>
chip_gen: v5e
topology: v5e:2x2
jax: 0.10.0
libtpu: 0.0.40
codegen_flags: <defaults>
</compile_context>

<pallas_src>
import jax
import jax.numpy as jnp
from jax.experimental import pallas as pl
from jax.experimental.pallas import tpu as pltpu

LANES = 128
_ARB = pltpu.CompilerParams(dimension_semantics=("arbitrary",))


def _full_spec(shape):
    """Whole-array block (exempt from the (8,128) divisibility rule)."""
    n = len(shape)
    return pl.BlockSpec(shape, lambda i, _n=n: (0,) * _n)


# ---------------------------------------------------------------------------
# Pallas kernels
# ---------------------------------------------------------------------------
def _conv_pool_kernel(p_ref, w_ref, b_ref, o_ref):
    """relu(patches @ w + b) followed by fused 2x2 max-pool.

    Patch rows are laid out as 4 contiguous blocks, one per 2x2 window offset
    (di, dj); each block shares the same (b, hp, wp) row ordering, so the pool
    is a max over 4 contiguous row blocks of the conv output.
    """
    rows = o_ref.shape[0]
    h = jnp.dot(p_ref[...], w_ref[...], preferred_element_type=jnp.float32)
    h = jnp.maximum(h + b_ref[...], 0.0)
    o_ref[...] = jnp.maximum(
        jnp.maximum(h[0 * rows:1 * rows, :], h[1 * rows:2 * rows, :]),
        jnp.maximum(h[2 * rows:3 * rows, :], h[3 * rows:4 * rows, :]),
    ).astype(o_ref.dtype)


def _conv_pool_fc_kernel(p_ref, w2_ref, b2_ref, w1f_ref, b1f_ref,
                         w2f_ref, b2f_ref, w3f_ref, b3f_ref, o_ref):
    """conv2 + ReLU + pool2 + fc1 + ReLU + fc2 + ReLU + fc3, fully VMEM-resident."""
    batch = o_ref.shape[0]
    n_pos = p_ref.shape[0] // (4 * batch)      # 25 pooled spatial positions (5x5)
    rows = n_pos * batch

    # conv2 as a single im2col matmul (+bias, ReLU); padded lanes stay exactly 0.
    h = jnp.dot(p_ref[...], w2_ref[...], preferred_element_type=jnp.float32)
    h = jnp.maximum(h + b2_ref[...], 0.0)                           # (4*rows, 128)

    # Fused 2x2 max-pool: 4 contiguous (di, dj) blocks sharing (p, b) row order.
    pooled = jnp.maximum(
        jnp.maximum(h[0 * rows:1 * rows, :], h[1 * rows:2 * rows, :]),
        jnp.maximum(h[2 * rows:3 * rows, :], h[3 * rows:4 * rows, :]),
    )                                                               # (n_pos*batch, 128)

    # fc1: contraction over (spatial position, channel) as a sum of n_pos small
    # matmuls; rows for position p are the contiguous slice [p*batch, (p+1)*batch).
    acc = jnp.zeros((batch, o_ref.shape[1]), jnp.float32)
    for p in range(n_pos):
        lhs = pooled[p * batch:(p + 1) * batch, :].astype(jnp.bfloat16)
        acc = acc + jnp.dot(lhs, w1f_ref[p], preferred_element_type=jnp.float32)
    h1 = jnp.maximum(acc + b1f_ref[...], 0.0)                       # (batch, 128)

    h2 = jnp.dot(h1.astype(jnp.bfloat16), w2f_ref[...],
                 preferred_element_type=jnp.float32)
    h2 = jnp.maximum(h2 + b2f_ref[...], 0.0)                        # (batch, 128)

    h3 = jnp.dot(h2.astype(jnp.bfloat16), w3f_ref[...],
                 preferred_element_type=jnp.float32)
    o_ref[...] = (h3 + b3f_ref[...]).astype(o_ref.dtype)            # logits in lanes 0..9


# ---------------------------------------------------------------------------
# Fused stage wrappers (im2col glue is tiny XLA work; no 5-D transposes)
# ---------------------------------------------------------------------------
def conv1_pool1(x_nhwc, w1, b1):
    """conv1 (5x5, valid) + ReLU + 2x2 max-pool in one Pallas call."""
    B = x_nhwc.shape[0]
    blocks = []
    for di in range(2):
        for dj in range(2):
            # patch[(b,hp,wp), (i,j,c)] = x[b, 2hp+di+i, 2wp+dj+j, c]
            slabs = [x_nhwc[:, di + i:di + i + 27:2, dj + j:dj + j + 27:2, :]
                     for i in range(5) for j in range(5)]            # each (B,14,14,3)
            blk = jnp.stack(slabs, axis=3)                           # (B,14,14,25,3)
            blocks.append(blk.reshape(B * 196, 75))
    patches = jnp.concatenate(blocks, axis=0).astype(jnp.bfloat16)   # (4*B*196, 75)

    out = pl.pallas_call(
        _conv_pool_kernel,
        out_shape=jax.ShapeDtypeStruct((B * 196, LANES), jnp.float32),
        grid=(1,),
        in_specs=[_full_spec(patches.shape), _full_spec(w1.shape), _full_spec(b1.shape)],
        out_specs=_full_spec((B * 196, LANES)),
        compiler_params=_ARB,
    )(patches, w1, b1)
    return out[:, :6].reshape(B, 14, 14, 6)       # NHWC feature map (valid channels)


def conv2_pool2_fc(f1, pp):
    """conv2 + ReLU + pool + fc1 + ReLU + fc2 + ReLU + fc3 in one Pallas call."""
    B = f1.shape[0]
    blocks = []
    for di in range(2):
        for dj in range(2):
            slabs = [f1[:, di + i:di + i + 9:2, dj + j:dj + j + 9:2, :]
                     for i in range(5) for j in range(5)]            # each (B,5,5,6)
            blk = jnp.stack(slabs, axis=3)                           # (B,5,5,25,6)
            blk = blk.transpose(1, 2, 0, 3, 4)                       # rows ordered (p, b)
            blocks.append(blk.reshape(25 * B, 150))
    patches = jnp.concatenate(blocks, axis=0).astype(jnp.bfloat16)   # (100*B, 150)

    args = (patches, pp["w2"], pp["b2"], pp["fc1_w"], pp["fc1_b"],
            pp["fc2_w"], pp["fc2_b"], pp["fc3_w"], pp["fc3_b"])
    out = pl.pallas_call(
        _conv_pool_fc_kernel,
        out_shape=jax.ShapeDtypeStruct((B, LANES), jnp.float32),
        grid=(1,),
        in_specs=[_full_spec(a.shape) for a in args],
        out_specs=_full_spec((B, LANES)),
        compiler_params=_ARB,
    )(*args)
    return out[:, :10]


# ---------------------------------------------------------------------------
# Forward + one-time parameter preparation
# ---------------------------------------------------------------------------
def simplenet_forward(pp, x_nchw):
    x = x_nchw.transpose(0, 2, 3, 1)              # NCHW -> NHWC
    f1 = conv1_pool1(x, pp["w1"], pp["b1"])       # (B, 14, 14, 6)
    return conv2_pool2_fc(f1, pp)                 # (B, 10)


def _pad2(a, rows, cols):
    return jnp.pad(a, ((0, rows - a.shape[0]), (0, cols - a.shape[1])))


def prepare_params(params):
    """One-time prep (hoisted out of the jitted forward): permute conv/fc weights
    to match the kernels' patch / flatten layouts and zero-pad every output width
    to 128 lanes so all kernel tiles are lane-dense."""
    # conv weights -> (kh, kw, cin, cout) flattened rows in (i, j, c) order.
    w1 = params["conv1_w"].transpose(2, 3, 1, 0).reshape(75, 6)
    w2 = params["conv2_w"].transpose(2, 3, 1, 0).reshape(150, 16)
    # fc1 consumes PyTorch's (c, h, w) flatten; regroup per spatial position p
    # so the kernel contracts with contiguous (batch)-row blocks: (p, c_in, c_out).
    fc1 = params["fc1_w"].reshape(120, 16, 25).transpose(2, 1, 0)
    fc1 = jnp.pad(fc1, ((0, 0), (0, LANES - 16), (0, LANES - 120)))

    def bias(b):
        return _pad2(b[None, :].astype(jnp.float32), 1, LANES)

    return {
        "w1": _pad2(w1, 75, LANES).astype(jnp.bfloat16),
        "b1": bias(params["conv1_b"]),
        "w2": _pad2(w2, 150, LANES).astype(jnp.bfloat16),
        "b2": bias(params["conv2_b"]),
        "fc1_w": fc1.astype(jnp.bfloat16),                      # (25, 128, 128)
        "fc1_b": bias(params["fc1_b"]),
        "fc2_w": _pad2(params["fc2_w"].T, LANES, LANES).astype(jnp.bfloat16),
        "fc2_b": bias(params["fc2_b"]),
        "fc3_w": _pad2(params["fc3_w"].T, LANES, LANES).astype(jnp.bfloat16),
        "fc3_b": bias(params["fc3_b"]),
    }


def init_params(key):
    """Deterministic synthetic init (PyTorch-style uniform(-1/sqrt(fan_in), ...))."""
    def uni(k, shape, fan_in):
        bound = 1.0 / float(fan_in) ** 0.5
        return jax.random.uniform(k, shape, jnp.float32, -bound, bound)

    ks = jax.random.split(key, 10)
    return {
        "conv1_w": uni(ks[0], (6, 3, 5, 5), 3 * 5 * 5),
        "conv1_b": uni(ks[1], (6,), 3 * 5 * 5),
        "conv2_w": uni(ks[2], (16, 6, 5, 5), 6 * 5 * 5),
        "conv2_b": uni(ks[3], (16,), 6 * 5 * 5),
        "fc1_w": uni(ks[4], (120, 16 * 5 * 5), 16 * 5 * 5),
        "fc1_b": uni(ks[5], (120,), 16 * 5 * 5),
        "fc2_w": uni(ks[6], (84, 120), 120),
        "fc2_b": uni(ks[7], (84,), 120),
        "fc3_w": uni(ks[8], (10, 84), 84),
        "fc3_b": uni(ks[9], (10,), 84),
    }


if __name__ == "__main__":
    key = jax.random.PRNGKey(0)
    pkey, xkey = jax.random.split(key)
    params = init_params(pkey)
    prepped = prepare_params(params)                 # one-time weight prep
    # SimpleNet's 16*5*5 flatten implies 32x32 spatial input; batch=2, RGB.
    x = jax.random.normal(xkey, (2, 3, 32, 32), jnp.float32)

    fwd = jax.jit(simplenet_forward)
    out = jax.block_until_ready(fwd(prepped, x))
    assert out.shape == (2, 10) and out.dtype == jnp.float32
    print("KERNEL_OK")
</pallas_src>

<mosaic_0001>
module attributes {stable_mosaic.version = 11 : i64} {
  func.func @_conv_pool_kernel(%arg0: i32, %arg1: memref<1568x75xbf16, #tpu.memory_space<vmem>>, %arg2: memref<75x128xbf16, #tpu.memory_space<vmem>>, %arg3: memref<1x128xf32, #tpu.memory_space<vmem>>, %arg4: memref<392x128xf32, #tpu.memory_space<vmem>>) attributes {dimension_semantics = [#tpu.dimension_semantics<arbitrary>], iteration_bounds = array<i64: 1>, scalar_prefetch = 0 : i64, scratch_operands = 0 : i64, tpu.core_type = #tpu.core_type<tc>, window_params = [{pipeline_mode = #tpu.pipeline_mode<synchronous>, transform_indices = @transform_0, window_bounds = array<i64: 1568, 75>}, {pipeline_mode = #tpu.pipeline_mode<synchronous>, transform_indices = @transform_1, window_bounds = array<i64: 75, 128>}, {pipeline_mode = #tpu.pipeline_mode<synchronous>, transform_indices = @transform_2, window_bounds = array<i64: 1, 128>}, {pipeline_mode = #tpu.pipeline_mode<synchronous>, transform_indices = @transform_3, window_bounds = array<i64: 392, 128>}]} {
    %c0 = arith.constant 0 : index
    %c0_0 = arith.constant 0 : index
    %0 = vector.load %arg1[%c0, %c0_0] : memref<1568x75xbf16, #tpu.memory_space<vmem>>, vector<1568x75xbf16>
    %c0_1 = arith.constant 0 : index
    %c0_2 = arith.constant 0 : index
    %1 = vector.load %arg2[%c0_1, %c0_2] : memref<75x128xbf16, #tpu.memory_space<vmem>>, vector<75x128xbf16>
    %cst = arith.constant dense<0.000000e+00> : vector<1568x128xf32>
    %2 = tpu.matmul %0, %1, %cst {dimension_numbers = #tpu.dot_dimension_numbers<[1], [0], [0], [1], [0, 0, 1, 1], [], []>} : vector<1568x75xbf16>, vector<75x128xbf16>, vector<1568x128xf32> -> vector<1568x128xf32>
    %c0_3 = arith.constant 0 : index
    %c0_4 = arith.constant 0 : index
    %3 = vector.load %arg3[%c0_3, %c0_4] : memref<1x128xf32, #tpu.memory_space<vmem>>, vector<1x128xf32>
    %4 = vector.broadcast %3 : vector<1x128xf32> to vector<1568x128xf32>
    %5 = arith.addf %2, %4 : vector<1568x128xf32>
    %cst_5 = arith.constant 0.000000e+00 : f32
    %6 = vector.broadcast %cst_5 : f32 to vector<1568x128xf32>
    %7 = arith.maximumf %5, %6 : vector<1568x128xf32>
    %8 = vector.extract_strided_slice %7 {offsets = [0, 0], sizes = [392, 128], strides = [1, 1]} : vector<1568x128xf32> to vector<392x128xf32>
    %9 = vector.extract_strided_slice %7 {offsets = [392, 0], sizes = [392, 128], strides = [1, 1]} : vector<1568x128xf32> to vector<392x128xf32>
    %10 = arith.maximumf %8, %9 : vector<392x128xf32>
    %11 = vector.extract_strided_slice %7 {offsets = [784, 0], sizes = [392, 128], strides = [1, 1]} : vector<1568x128xf32> to vector<392x128xf32>
    %12 = vector.extract_strided_slice %7 {offsets = [1176, 0], sizes = [392, 128], strides = [1, 1]} : vector<1568x128xf32> to vector<392x128xf32>
    %13 = arith.maximumf %11, %12 : vector<392x128xf32>
    %14 = arith.maximumf %10, %13 : vector<392x128xf32>
    %c0_6 = arith.constant 0 : index
    %c0_7 = arith.constant 0 : index
    %15 = vector.load %arg4[%c0_6, %c0_7] : memref<392x128xf32, #tpu.memory_space<vmem>>, vector<392x128xf32>
    tpu.vector_store %arg4[%c0_6, %c0_7], %14 {strides = array<i32>} : memref<392x128xf32, #tpu.memory_space<vmem>>, vector<392x128xf32>,
    return
  }
  func.func @transform_0(%arg0: i32) -> (i32, i32) {
    %c0_i32 = arith.constant 0 : i32
    %c0_i32_0 = arith.constant 0 : i32
    %c0_i32_1 = arith.constant 0 : i32
    return %c0_i32, %c0_i32_0 : i32, i32
  }
  func.func @transform_1(%arg0: i32) -> (i32, i32) {
    %c0_i32 = arith.constant 0 : i32
    %c0_i32_0 = arith.constant 0 : i32
    %c0_i32_1 = arith.constant 0 : i32
    return %c0_i32, %c0_i32_0 : i32, i32
  }
  func.func @transform_2(%arg0: i32) -> (i32, i32) {
    %c0_i32 = arith.constant 0 : i32
    %c0_i32_0 = arith.constant 0 : i32
    %c0_i32_1 = arith.constant 0 : i32
    return %c0_i32, %c0_i32_0 : i32, i32
  }
  func.func @transform_3(%arg0: i32) -> (i32, i32) {
    %c0_i32 = arith.constant 0 : i32
    %c0_i32_0 = arith.constant 0 : i32
    %c0_i32_1 = arith.constant 0 : i32
    return %c0_i32, %c0_i32_0 : i32, i32
  }
}

module attributes {stable_mosaic.version = 11 : i64} {
  func.func @_conv_pool_fc_kernel(%arg0: i32, %arg1: memref<200x150xbf16, #tpu.memory_space<vmem>>, %arg2: memref<150x128xbf16, #tpu.memory_space<vmem>>, %arg3: memref<1x128xf32, #tpu.memory_space<vmem>>, %arg4: memref<25x128x128xbf16, #tpu.memory_space<vmem>>, %arg5: memref<1x128xf32, #tpu.memory_space<vmem>>, %arg6: memref<128x128xbf16, #tpu.memory_space<vmem>>, %arg7: memref<1x128xf32, #tpu.memory_space<vmem>>, %arg8: memref<128x128xbf16, #tpu.memory_space<vmem>>, %arg9: memref<1x128xf32, #tpu.memory_space<vmem>>, %arg10: memref<2x128xf32, #tpu.memory_space<vmem>>) attributes {dimension_semantics = [#tpu.dimension_semantics<arbitrary>], iteration_bounds = array<i64: 1>, scalar_prefetch = 0 : i64, scratch_operands = 0 : i64, tpu.core_type = #tpu.core_type<tc>, window_params = [{pipeline_mode = #tpu.pipeline_mode<synchronous>, transform_indices = @transform_0, window_bounds = array<i64: 200, 150>}, {pipeline_mode = #tpu.pipeline_mode<synchronous>, transform_indices = @transform_1, window_bounds = array<i64: 150, 128>}, {pipeline_mode = #tpu.pipeline_mode<synchronous>, transform_indices = @transform_2, window_bounds = array<i64: 1, 128>}, {pipeline_mode = #tpu.pipeline_mode<synchronous>, transform_indices = @transform_3, window_bounds = array<i64: 25, 128, 128>}, {pipeline_mode = #tpu.pipeline_mode<synchronous>, transform_indices = @transform_4, window_bounds = array<i64: 1, 128>}, {pipeline_mode = #tpu.pipeline_mode<synchronous>, transform_indices = @transform_5, window_bounds = array<i64: 128, 128>}, {pipeline_mode = #tpu.pipeline_mode<synchronous>, transform_indices = @transform_6, window_bounds = array<i64: 1, 128>}, {pipeline_mode = #tpu.pipeline_mode<synchronous>, transform_indices = @transform_7, window_bounds = array<i64: 128, 128>}, {pipeline_mode = #tpu.pipeline_mode<synchronous>, transform_indices = @transform_8, window_bounds = array<i64: 1, 128>}, {pipeline_mode = #tpu.pipeline_mode<synchronous>, transform_indices = @transform_9, window_bounds = array<i64: 2, 128>}]} {
    %c0 = arith.constant 0 : index
    %c0_0 = arith.constant 0 : index
    %0 = vector.load %arg1[%c0, %c0_0] : memref<200x150xbf16, #tpu.memory_space<vmem>>, vector<200x150xbf16>
    %c0_1 = arith.constant 0 : index
    %c0_2 = arith.constant 0 : index
    %1 = vector.load %arg2[%c0_1, %c0_2] : memref<150x128xbf16, #tpu.memory_space<vmem>>, vector<150x128xbf16>
    %cst = arith.constant dense<0.000000e+00> : vector<200x128xf32>
    %2 = tpu.matmul %0, %1, %cst {dimension_numbers = #tpu.dot_dimension_numbers<[1], [0], [0], [1], [0, 0, 1, 1], [], []>} : vector<200x150xbf16>, vector<150x128xbf16>, vector<200x128xf32> -> vector<200x128xf32>
    %c0_3 = arith.constant 0 : index
    %c0_4 = arith.constant 0 : index
    %3 = vector.load %arg3[%c0_3, %c0_4] : memref<1x128xf32, #tpu.memory_space<vmem>>, vector<1x128xf32>
    %4 = vector.broadcast %3 : vector<1x128xf32> to vector<200x128xf32>
    %5 = arith.addf %2, %4 : vector<200x128xf32>
    %cst_5 = arith.constant 0.000000e+00 : f32
    %6 = vector.broadcast %cst_5 : f32 to vector<200x128xf32>
    %7 = arith.maximumf %5, %6 : vector<200x128xf32>
    %8 = vector.extract_strided_slice %7 {offsets = [0, 0], sizes = [50, 128], strides = [1, 1]} : vector<200x128xf32> to vector<50x128xf32>
    %9 = vector.extract_strided_slice %7 {offsets = [50, 0], sizes = [50, 128], strides = [1, 1]} : vector<200x128xf32> to vector<50x128xf32>
    %10 = arith.maximumf %8, %9 : vector<50x128xf32>
    %11 = vector.extract_strided_slice %7 {offsets = [100, 0], sizes = [50, 128], strides = [1, 1]} : vector<200x128xf32> to vector<50x128xf32>
    %12 = vector.extract_strided_slice %7 {offsets = [150, 0], sizes = [50, 128], strides = [1, 1]} : vector<200x128xf32> to vector<50x128xf32>
    %13 = arith.maximumf %11, %12 : vector<50x128xf32>
    %14 = arith.maximumf %10, %13 : vector<50x128xf32>
    %cst_6 = arith.constant 0.000000e+00 : f32
    %15 = vector.broadcast %cst_6 : f32 to vector<2x128xf32>
    %16 = vector.extract_strided_slice %14 {offsets = [0, 0], sizes = [2, 128], strides = [1, 1]} : vector<50x128xf32> to vector<2x128xf32>
    %17 = arith.truncf %16 : vector<2x128xf32> to vector<2x128xbf16>
    %c0_7 = arith.constant 0 : index
    %c0_8 = arith.constant 0 : index
    %c0_9 = arith.constant 0 : index
    %18 = vector.load %arg4[%c0_7, %c0_8, %c0_9] : memref<25x128x128xbf16, #tpu.memory_space<vmem>>, vector<1x128x128xbf16>
    %19 = vector.shape_cast %18 : vector<1x128x128xbf16> to vector<128x128xbf16>
    %cst_10 = arith.constant dense<0.000000e+00> : vector<2x128xf32>
    %20 = tpu.matmul %17, %19, %cst_10 {dimension_numbers = #tpu.dot_dimension_numbers<[1], [0], [0], [1], [0, 0, 1, 1], [], []>} : vector<2x128xbf16>, vector<128x128xbf16>, vector<2x128xf32> -> vector<2x128xf32>
    %21 = arith.addf %15, %20 : vector<2x128xf32>
    %22 = vector.extract_strided_slice %14 {offsets = [2, 0], sizes = [2, 128], strides = [1, 1]} : vector<50x128xf32> to vector<2x128xf32>
    %23 = arith.truncf %22 : vector<2x128xf32> to vector<2x128xbf16>
    %c1 = arith.constant 1 : index
    %c0_11 = arith.constant 0 : index
    %c0_12 = arith.constant 0 : index
    %24 = vector.load %arg4[%c1, %c0_11, %c0_12] : memref<25x128x128xbf16, #tpu.memory_space<vmem>>, vector<1x128x128xbf16>
    %25 = vector.shape_cast %24 : vector<1x128x128xbf16> to vector<128x128xbf16>
    %cst_13 = arith.constant dense<0.000000e+00> : vector<2x128xf32>
    %26 = tpu.matmul %23, %25, %cst_13 {dimension_numbers = #tpu.dot_dimension_numbers<[1], [0], [0], [1], [0, 0, 1, 1], [], []>} : vector<2x128xbf16>, vector<128x128xbf16>, vector<2x128xf32> -> vector<2x128xf32>
    %27 = arith.addf %21, %26 : vector<2x128xf32>
    %28 = vector.extract_strided_slice %14 {offsets = [4, 0], sizes = [2, 128], strides = [1, 1]} : vector<50x128xf32> to vector<2x128xf32>
    %29 = arith.truncf %28 : vector<2x128xf32> to vector<2x128xbf16>
    %c2 = arith.constant 2 : index
    %c0_14 = arith.constant 0 : index
    %c0_15 = arith.constant 0 : index
    %30 = vector.load %arg4[%c2, %c0_14, %c0_15] : memref<25x128x128xbf16, #tpu.memory_space<vmem>>, vector<1x128x128xbf16>
    %31 = vector.shape_cast %30 : vector<1x128x128xbf16> to vector<128x128xbf16>
    %cst_16 = arith.constant dense<0.000000e+00> : vector<2x128xf32>
    %32 = tpu.matmul %29, %31, %cst_16 {dimension_numbers = #tpu.dot_dimension_numbers<[1], [0], [0], [1], [0, 0, 1, 1], [], []>} : vector<2x128xbf16>, vector<128x128xbf16>, vector<2x128xf32> -> vector<2x128xf32>
    %33 = arith.addf %27, %32 : vector<2x128xf32>
    %34 = vector.extract_strided_slice %14 {offsets = [6, 0], sizes = [2, 128], strides = [1, 1]} : vector<50x128xf32> to vector<2x128xf32>
    %35 = arith.truncf %34 : vector<2x128xf32> to vector<2x128xbf16>
    %c3 = arith.constant 3 : index
    %c0_17 = arith.constant 0 : index
    %c0_18 = arith.constant 0 : index
    %36 = vector.load %arg4[%c3, %c0_17, %c0_18] : memref<25x128x128xbf16, #tpu.memory_space<vmem>>, vector<1x128x128xbf16>
    %37 = vector.shape_cast %36 : vector<1x128x128xbf16> to vector<128x128xbf16>
    %cst_19 = arith.constant dense<0.000000e+00> : vector<2x128xf32>
    %38 = tpu.matmul %35, %37, %cst_19 {dimension_numbers = #tpu.dot_dimension_numbers<[1], [0], [0], [1], [0, 0, 1, 1], [], []>} : vector<2x128xbf16>, vector<128x128xbf16>, vector<2x128xf32> -> vector<2x128xf32>
    %39 = arith.addf %33, %38 : vector<2x128xf32>
    %40 = vector.extract_strided_slice %14 {offsets = [8, 0], sizes = [2, 128], strides = [1, 1]} : vector<50x128xf32> to vector<2x128xf32>
    %41 = arith.truncf %40 : vector<2x128xf32> to vector<2x128xbf16>
    %c4 = arith.constant 4 : index
    %c0_20 = arith.constant 0 : index
    %c0_21 = arith.constant 0 : index
    %42 = vector.load %arg4[%c4, %c0_20, %c0_21] : memref<25x128x128xbf16, #tpu.memory_space<vmem>>, vector<1x128x128xbf16>
    %43 = vector.shape_cast %42 : vector<1x128x128xbf16> to vector<128x128xbf16>
    %cst_22 = arith.constant dense<0.000000e+00> : vector<2x128xf32>
    %44 = tpu.matmul %41, %43, %cst_22 {dimension_numbers = #tpu.dot_dimension_numbers<[1], [0], [0], [1], [0, 0, 1, 1], [], []>} : vector<2x128xbf16>, vector<128x128xbf16>, vector<2x128xf32> -> vector<2x128xf32>
    %45 = arith.addf %39, %44 : vector<2x128xf32>
    %46 = vector.extract_strided_slice %14 {offsets = [10, 0], sizes = [2, 128], strides = [1, 1]} : vector<50x128xf32> to vector<2x128xf32>
    %47 = arith.truncf %46 : vector<2x128xf32> to vector<2x128xbf16>
    %c5 = arith.constant 5 : index
    %c0_23 = arith.constant 0 : index
    %c0_24 = arith.constant 0 : index
    %48 = vector.load %arg4[%c5, %c0_23, %c0_24] : memref<25x128x128xbf16, #tpu.memory_space<vmem>>, vector<1x128x128xbf16>
    %49 = vector.shape_cast %48 : vector<1x128x128xbf16> to vector<128x128xbf16>
    %cst_25 = arith.constant dense<0.000000e+00> : vector<2x128xf32>
    %50 = tpu.matmul %47, %49, %cst_25 {dimension_numbers = #tpu.dot_dimension_numbers<[1], [0], [0], [1], [0, 0, 1, 1], [], []>} : vector<2x128xbf16>, vector<128x128xbf16>, vector<2x128xf32> -> vector<2x128xf32>
    %51 = arith.addf %45, %50 : vector<2x128xf32>
    %52 = vector.extract_strided_slice %14 {offsets = [12, 0], sizes = [2, 128], strides = [1, 1]} : vector<50x128xf32> to vector<2x128xf32>
    %53 = arith.truncf %52 : vector<2x128xf32> to vector<2x128xbf16>
    %c6 = arith.constant 6 : index
    %c0_26 = arith.constant 0 : index
    %c0_27 = arith.constant 0 : index
    %54 = vector.load %arg4[%c6, %c0_26, %c0_27] : memref<25x128x128xbf16, #tpu.memory_space<vmem>>, vector<1x128x128xbf16>
    %55 = vector.shape_cast %54 : vector<1x128x128xbf16> to vector<128x128xbf16>
    %cst_28 = arith.constant dense<0.000000e+00> : vector<2x128xf32>
    %56 = tpu.matmul %53, %55, %cst_28 {dimension_numbers = #tpu.dot_dimension_numbers<[1], [0], [0], [1], [0, 0, 1, 1], [], []>} : vector<2x128xbf16>, vector<128x128xbf16>, vector<2x128xf32> -> vector<2x128xf32>
    %57 = arith.addf %51, %56 : vector<2x128xf32>
    %58 = vector.extract_strided_slice %14 {offsets = [14, 0], sizes = [2, 128], strides = [1, 1]} : vector<50x128xf32> to vector<2x128xf32>
    %59 = arith.truncf %58 : vector<2x128xf32> to vector<2x128xbf16>
    %c7 = arith.constant 7 : index
    %c0_29 = arith.constant 0 : index
    %c0_30 = arith.constant 0 : index
    %60 = vector.load %arg4[%c7, %c0_29, %c0_30] : memref<25x128x128xbf16, #tpu.memory_space<vmem>>, vector<1x128x128xbf16>
    %61 = vector.shape_cast %60 : vector<1x128x128xbf16> to vector<128x128xbf16>
    %cst_31 = arith.constant dense<0.000000e+00> : vector<2x128xf32>
    %62 = tpu.matmul %59, %61, %cst_31 {dimension_numbers = #tpu.dot_dimension_numbers<[1], [0], [0], [1], [0, 0, 1, 1], [], []>} : vector<2x128xbf16>, vector<128x128xbf16>, vector<2x128xf32> -> vector<2x128xf32>
    %63 = arith.addf %57, %62 : vector<2x128xf32>
    %64 = vector.extract_strided_slice %14 {offsets = [16, 0], sizes = [2, 128], strides = [1, 1]} : vector<50x128xf32> to vector<2x128xf32>
    %65 = arith.truncf %64 : vector<2x128xf32> to vector<2x128xbf16>
    %c8 = arith.constant 8 : index
    %c0_32 = arith.constant 0 : index
    %c0_33 = arith.constant 0 : index
    %66 = vector.load %arg4[%c8, %c0_32, %c0_33] : memref<25x128x128xbf16, #tpu.memory_space<vmem>>, vector<1x128x128xbf16>
    %67 = vector.shape_cast %66 : vector<1x128x128xbf16> to vector<128x128xbf16>
    %cst_34 = arith.constant dense<0.000000e+00> : vector<2x128xf32>
    %68 = tpu.matmul %65, %67, %cst_34 {dimension_numbers = #tpu.dot_dimension_numbers<[1], [0], [0], [1], [0, 0, 1, 1], [], []>} : vector<2x128xbf16>, vector<128x128xbf16>, vector<2x128xf32> -> vector<2x128xf32>
    %69 = arith.addf %63, %68 : vector<2x128xf32>
    %70 = vector.extract_strided_slice %14 {offsets = [18, 0], sizes = [2, 128], strides = [1, 1]} : vector<50x128xf32> to vector<2x128xf32>
    %71 = arith.truncf %70 : vector<2x128xf32> to vector<2x128xbf16>
    %c9 = arith.constant 9 : index
    %c0_35 = arith.constant 0 : index
    %c0_36 = arith.constant 0 : index
    %72 = vector.load %arg4[%c9, %c0_35, %c0_36] : memref<25x128x128xbf16, #tpu.memory_space<vmem>>, vector<1x128x128xbf16>
    %73 = vector.shape_cast %72 : vector<1x128x128xbf16> to vector<128x128xbf16>
    %cst_37 = arith.constant dense<0.000000e+00> : vector<2x128xf32>
    %74 = tpu.matmul %71, %73, %cst_37 {dimension_numbers = #tpu.dot_dimension_numbers<[1], [0], [0], [1], [0, 0, 1, 1], [], []>} : vector<2x128xbf16>, vector<128x128xbf16>, vector<2x128xf32> -> vector<2x128xf32>
    %75 = arith.addf %69, %74 : vector<2x128xf32>
    %76 = vector.extract_strided_slice %14 {offsets = [20, 0], sizes = [2, 128], strides = [1, 1]} : vector<50x128xf32> to vector<2x128xf32>
    %77 = arith.truncf %76 : vector<2x128xf32> to vector<2x128xbf16>
    %c10 = arith.constant 10 : index
    %c0_38 = arith.constant 0 : index
    %c0_39 = arith.constant 0 : index
    %78 = vector.load %arg4[%c10, %c0_38, %c0_39] : memref<25x128x128xbf16, #tpu.memory_space<vmem>>, vector<1x128x128xbf16>
    %79 = vector.shape_cast %78 : vector<1x128x128xbf16> to vector<128x128xbf16>
    %cst_40 = arith.constant dense<0.000000e+00> : vector<2x128xf32>
    %80 = tpu.matmul %77, %79, %cst_40 {dimension_numbers = #tpu.dot_dimension_numbers<[1], [0], [0], [1], [0, 0, 1, 1], [], []>} : vector<2x128xbf16>, vector<128x128xbf16>, vector<2x128xf32> -> vector<2x128xf32>
    %81 = arith.addf %75, %80 : vector<2x128xf32>
    %82 = vector.extract_strided_slice %14 {offsets = [22, 0], sizes = [2, 128], strides = [1, 1]} : vector<50x128xf32> to vector<2x128xf32>
    %83 = arith.truncf %82 : vector<2x128xf32> to vector<2x128xbf16>
    %c11 = arith.constant 11 : index
    %c0_41 = arith.constant 0 : index
    %c0_42 = arith.constant 0 : index
    %84 = vector.load %arg4[%c11, %c0_41, %c0_42] : memref<25x128x128xbf16, #tpu.memory_space<vmem>>, vector<1x128x128xbf16>
    %85 = vector.shape_cast %84 : vector<1x128x128xbf16> to vector<128x128xbf16>
    %cst_43 = arith.constant dense<0.000000e+00> : vector<2x128xf32>
    %86 = tpu.matmul %83, %85, %cst_43 {dimension_numbers = #tpu.dot_dimension_numbers<[1], [0], [0], [1], [0, 0, 1, 1], [], []>} : vector<2x128xbf16>, vector<128x128xbf16>, vector<2x128xf32> -> vector<2x128xf32>
    %87 = arith.addf %81, %86 : vector<2x128xf32>
    %88 = vector.extract_strided_slice %14 {offsets = [24, 0], sizes = [2, 128], strides = [1, 1]} : vector<50x128xf32> to vector<2x128xf32>
    %89 = arith.truncf %88 : vector<2x128xf32> to vector<2x128xbf16>
    %c12 = arith.constant 12 : index
    %c0_44 = arith.constant 0 : index
    %c0_45 = arith.constant 0 : index
    %90 = vector.load %arg4[%c12, %c0_44, %c0_45] : memref<25x128x128xbf16, #tpu.memory_space<vmem>>, vector<1x128x128xbf16>
    %91 = vector.shape_cast %90 : vector<1x128x128xbf16> to vector<128x128xbf16>
    %cst_46 = arith.constant dense<0.000000e+00> : vector<2x128xf32>
    %92 = tpu.matmul %89, %91, %cst_46 {dimension_numbers = #tpu.dot_dimension_numbers<[1], [0], [0], [1], [0, 0, 1, 1], [], []>} : vector<2x128xbf16>, vector<128x128xbf16>, vector<2x128xf32> -> vector<2x128xf32>
    %93 = arith.addf %87, %92 : vector<2x128xf32>
    %94 = vector.extract_strided_slice %14 {offsets = [26, 0], sizes = [2, 128], strides = [1, 1]} : vector<50x128xf32> to vector<2x128xf32>
    %95 = arith.truncf %94 : vector<2x128xf32> to vector<2x128xbf16>
    %c13 = arith.constant 13 : index
    %c0_47 = arith.constant 0 : index
    %c0_48 = arith.constant 0 : index
    %96 = vector.load %arg4[%c13, %c0_47, %c0_48] : memref<25x128x128xbf16, #tpu.memory_space<vmem>>, vector<1x128x128xbf16>
    %97 = vector.shape_cast %96 : vector<1x128x128xbf16> to vector<128x128xbf16>
    %cst_49 = arith.constant dense<0.000000e+00> : vector<2x128xf32>
    %98 = tpu.matmul %95, %97, %cst_49 {dimension_numbers = #tpu.dot_dimension_numbers<[1], [0], [0], [1], [0, 0, 1, 1], [], []>} : vector<2x128xbf16>, vector<128x128xbf16>, vector<2x128xf32> -> vector<2x128xf32>
    %99 = arith.addf %93, %98 : vector<2x128xf32>
    %100 = vector.extract_strided_slice %14 {offsets = [28, 0], sizes = [2, 128], strides = [1, 1]} : vector<50x128xf32> to vector<2x128xf32>
    %101 = arith.truncf %100 : vector<2x128xf32> to vector<2x128xbf16>
    %c14 = arith.constant 14 : index
    %c0_50 = arith.constant 0 : index
    %c0_51 = arith.constant 0 : index
    %102 = vector.load %arg4[%c14, %c0_50, %c0_51] : memref<25x128x128xbf16, #tpu.memory_space<vmem>>, vector<1x128x128xbf16>
    %103 = vector.shape_cast %102 : vector<1x128x128xbf16> to vector<128x128xbf16>
    %cst_52 = arith.constant dense<0.000000e+00> : vector<2x128xf32>
    %104 = tpu.matmul %101, %103, %cst_52 {dimension_numbers = #tpu.dot_dimension_numbers<[1], [0], [0], [1], [0, 0, 1, 1], [], []>} : vector<2x128xbf16>, vector<128x128xbf16>, vector<2x128xf32> -> vector<2x128xf32>
    %105 = arith.addf %99, %104 : vector<2x128xf32>
    %106 = vector.extract_strided_slice %14 {offsets = [30, 0], sizes = [2, 128], strides = [1, 1]} : vector<50x128xf32> to vector<2x128xf32>
    %107 = arith.truncf %106 : vector<2x128xf32> to vector<2x128xbf16>
    %c15 = arith.constant 15 : index
    %c0_53 = arith.constant 0 : index
    %c0_54 = arith.constant 0 : index
    %108 = vector.load %arg4[%c15, %c0_53, %c0_54] : memref<25x128x128xbf16, #tpu.memory_space<vmem>>, vector<1x128x128xbf16>
    %109 = vector.shape_cast %108 : vector<1x128x128xbf16> to vector<128x128xbf16>
    %cst_55 = arith.constant dense<0.000000e+00> : vector<2x128xf32>
    %110 = tpu.matmul %107, %109, %cst_55 {dimension_numbers = #tpu.dot_dimension_numbers<[1], [0], [0], [1], [0, 0, 1, 1], [], []>} : vector<2x128xbf16>, vector<128x128xbf16>, vector<2x128xf32> -> vector<2x128xf32>
    %111 = arith.addf %105, %110 : vector<2x128xf32>
    %112 = vector.extract_strided_slice %14 {offsets = [32, 0], sizes = [2, 128], strides = [1, 1]} : vector<50x128xf32> to vector<2x128xf32>
    %113 = arith.truncf %112 : vector<2x128xf32> to vector<2x128xbf16>
    %c16 = arith.constant 16 : index
    %c0_56 = arith.constant 0 : index
    %c0_57 = arith.constant 0 : index
    %114 = vector.load %arg4[%c16, %c0_56, %c0_57] : memref<25x128x128xbf16, #tpu.memory_space<vmem>>, vector<1x128x128xbf16>
    %115 = vector.shape_cast %114 : vector<1x128x128xbf16> to vector<128x128xbf16>
    %cst_58 = arith.constant dense<0.000000e+00> : vector<2x128xf32>
    %116 = tpu.matmul %113, %115, %cst_58 {dimension_numbers = #tpu.dot_dimension_numbers<[1], [0], [0], [1], [0, 0, 1, 1], [], []>} : vector<2x128xbf16>, vector<128x128xbf16>, vector<2x128xf32> -> vector<2x128xf32>
    %117 = arith.addf %111, %116 : vector<2x128xf32>
    %118 = vector.extract_strided_slice %14 {offsets = [34, 0], sizes = [2, 128], strides = [1, 1]} : vector<50x128xf32> to vector<2x128xf32>
    %119 = arith.truncf %118 : vector<2x128xf32> to vector<2x128xbf16>
    %c17 = arith.constant 17 : index
    %c0_59 = arith.constant 0 : index
    %c0_60 = arith.constant 0 : index
    %120 = vector.load %arg4[%c17, %c0_59, %c0_60] : memref<25x128x128xbf16, #tpu.memory_space<vmem>>, vector<1x128x128xbf16>
    %121 = vector.shape_cast %120 : vector<1x128x128xbf16> to vector<128x128xbf16>
    %cst_61 = arith.constant dense<0.000000e+00> : vector<2x128xf32>
    %122 = tpu.matmul %119, %121, %cst_61 {dimension_numbers = #tpu.dot_dimension_numbers<[1], [0], [0], [1], [0, 0, 1, 1], [], []>} : vector<2x128xbf16>, vector<128x128xbf16>, vector<2x128xf32> -> vector<2x128xf32>
    %123 = arith.addf %117, %122 : vector<2x128xf32>
    %124 = vector.extract_strided_slice %14 {offsets = [36, 0], sizes = [2, 128], strides = [1, 1]} : vector<50x128xf32> to vector<2x128xf32>
    %125 = arith.truncf %124 : vector<2x128xf32> to vector<2x128xbf16>
    %c18 = arith.constant 18 : index
    %c0_62 = arith.constant 0 : index
    %c0_63 = arith.constant 0 : index
    %126 = vector.load %arg4[%c18, %c0_62, %c0_63] : memref<25x128x128xbf16, #tpu.memory_space<vmem>>, vector<1x128x128xbf16>
    %127 = vector.shape_cast %126 : vector<1x128x128xbf16> to vector<128x128xbf16>
    %cst_64 = arith.constant dense<0.000000e+00> : vector<2x128xf32>
    %128 = tpu.matmul %125, %127, %cst_64 {dimension_numbers = #tpu.dot_dimension_numbers<[1], [0], [0], [1], [0, 0, 1, 1], [], []>} : vector<2x128xbf16>, vector<128x128xbf16>, vector<2x128xf32> -> vector<2x128xf32>
    %129 = arith.addf %123, %128 : vector<2x128xf32>
    %130 = vector.extract_strided_slice %14 {offsets = [38, 0], sizes = [2, 128], strides = [1, 1]} : vector<50x128xf32> to vector<2x128xf32>
    %131 = arith.truncf %130 : vector<2x128xf32> to vector<2x128xbf16>
    %c19 = arith.constant 19 : index
    %c0_65 = arith.constant 0 : index
    %c0_66 = arith.constant 0 : index
    %132 = vector.load %arg4[%c19, %c0_65, %c0_66] : memref<25x128x128xbf16, #tpu.memory_space<vmem>>, vector<1x128x128xbf16>
    %133 = vector.shape_cast %132 : vector<1x128x128xbf16> to vector<128x128xbf16>
    %cst_67 = arith.constant dense<0.000000e+00> : vector<2x128xf32>
    %134 = tpu.matmul %131, %133, %cst_67 {dimension_numbers = #tpu.dot_dimension_numbers<[1], [0], [0], [1], [0, 0, 1, 1], [], []>} : vector<2x128xbf16>, vector<128x128xbf16>, vector<2x128xf32> -> vector<2x128xf32>
    %135 = arith.addf %129, %134 : vector<2x128xf32>
    %136 = vector.extract_strided_slice %14 {offsets = [40, 0], sizes = [2, 128], strides = [1, 1]} : vector<50x128xf32> to vector<2x128xf32>
    %137 = arith.truncf %136 : vector<2x128xf32> to vector<2x128xbf16>
    %c20 = arith.constant 20 : index
    %c0_68 = arith.constant 0 : index
    %c0_69 = arith.constant 0 : index
    %138 = vector.load %arg4[%c20, %c0_68, %c0_69] : memref<25x128x128xbf16, #tpu.memory_space<vmem>>, vector<1x128x128xbf16>
    %139 = vector.shape_cast %138 : vector<1x128x128xbf16> to vector<128x128xbf16>
    %cst_70 = arith.constant dense<0.000000e+00> : vector<2x128xf32>
    %140 = tpu.matmul %137, %139, %cst_70 {dimension_numbers = #tpu.dot_dimension_numbers<[1], [0], [0], [1], [0, 0, 1, 1], [], []>} : vector<2x128xbf16>, vector<128x128xbf16>, vector<2x128xf32> -> vector<2x128xf32>
    %141 = arith.addf %135, %140 : vector<2x128xf32>
    %142 = vector.extract_strided_slice %14 {offsets = [42, 0], sizes = [2, 128], strides = [1, 1]} : vector<50x128xf32> to vector<2x128xf32>
    %143 = arith.truncf %142 : vector<2x128xf32> to vector<2x128xbf16>
    %c21 = arith.constant 21 : index
    %c0_71 = arith.constant 0 : index
    %c0_72 = arith.constant 0 : index
    %144 = vector.load %arg4[%c21, %c0_71, %c0_72] : memref<25x128x128xbf16, #tpu.memory_space<vmem>>, vector<1x128x128xbf16>
    %145 = vector.shape_cast %144 : vector<1x128x128xbf16> to vector<128x128xbf16>
    %cst_73 = arith.constant dense<0.000000e+00> : vector<2x128xf32>
    %146 = tpu.matmul %143, %145, %cst_73 {dimension_numbers = #tpu.dot_dimension_numbers<[1], [0], [0], [1], [0, 0, 1, 1], [], []>} : vector<2x128xbf16>, vector<128x128xbf16>, vector<2x128xf32> -> vector<2x128xf32>
    %147 = arith.addf %141, %146 : vector<2x128xf32>
    %148 = vector.extract_strided_slice %14 {offsets = [44, 0], sizes = [2, 128], strides = [1, 1]} : vector<50x128xf32> to vector<2x128xf32>
    %149 = arith.truncf %148 : vector<2x128xf32> to vector<2x128xbf16>
    %c22 = arith.constant 22 : index
    %c0_74 = arith.constant 0 : index
    %c0_75 = arith.constant 0 : index
    %150 = vector.load %arg4[%c22, %c0_74, %c0_75] : memref<25x128x128xbf16, #tpu.memory_space<vmem>>, vector<1x128x128xbf16>
    %151 = vector.shape_cast %150 : vector<1x128x128xbf16> to vector<128x128xbf16>
    %cst_76 = arith.constant dense<0.000000e+00> : vector<2x128xf32>
    %152 = tpu.matmul %149, %151, %cst_76 {dimension_numbers = #tpu.dot_dimension_numbers<[1], [0], [0], [1], [0, 0, 1, 1], [], []>} : vector<2x128xbf16>, vector<128x128xbf16>, vector<2x128xf32> -> vector<2x128xf32>
    %153 = arith.addf %147, %152 : vector<2x128xf32>
    %154 = vector.extract_strided_slice %14 {offsets = [46, 0], sizes = [2, 128], strides = [1, 1]} : vector<50x128xf32> to vector<2x128xf32>
    %155 = arith.truncf %154 : vector<2x128xf32> to vector<2x128xbf16>
    %c23 = arith.constant 23 : index
    %c0_77 = arith.constant 0 : index
    %c0_78 = arith.constant 0 : index
    %156 = vector.load %arg4[%c23, %c0_77, %c0_78] : memref<25x128x128xbf16, #tpu.memory_space<vmem>>, vector<1x128x128xbf16>
    %157 = vector.shape_cast %156 : vector<1x128x128xbf16> to vector<128x128xbf16>
    %cst_79 = arith.constant dense<0.000000e+00> : vector<2x128xf32>
    %158 = tpu.matmul %155, %157, %cst_79 {dimension_numbers = #tpu.dot_dimension_numbers<[1], [0], [0], [1], [0, 0, 1, 1], [], []>} : vector<2x128xbf16>, vector<128x128xbf16>, vector<2x128xf32> -> vector<2x128xf32>
    %159 = arith.addf %153, %158 : vector<2x128xf32>
    %160 = vector.extract_strided_slice %14 {offsets = [48, 0], sizes = [2, 128], strides = [1, 1]} : vector<50x128xf32> to vector<2x128xf32>
    %161 = arith.truncf %160 : vector<2x128xf32> to vector<2x128xbf16>
    %c24 = arith.constant 24 : index
    %c0_80 = arith.constant 0 : index
    %c0_81 = arith.constant 0 : index
    %162 = vector.load %arg4[%c24, %c0_80, %c0_81] : memref<25x128x128xbf16, #tpu.memory_space<vmem>>, vector<1x128x128xbf16>
    %163 = vector.shape_cast %162 : vector<1x128x128xbf16> to vector<128x128xbf16>
    %cst_82 = arith.constant dense<0.000000e+00> : vector<2x128xf32>
    %164 = tpu.matmul %161, %163, %cst_82 {dimension_numbers = #tpu.dot_dimension_numbers<[1], [0], [0], [1], [0, 0, 1, 1], [], []>} : vector<2x128xbf16>, vector<128x128xbf16>, vector<2x128xf32> -> vector<2x128xf32>
    %165 = arith.addf %159, %164 : vector<2x128xf32>
    %c0_83 = arith.constant 0 : index
    %c0_84 = arith.constant 0 : index
    %166 = vector.load %arg5[%c0_83, %c0_84] : memref<1x128xf32, #tpu.memory_space<vmem>>, vector<1x128xf32>
    %167 = vector.broadcast %166 : vector<1x128xf32> to vector<2x128xf32>
    %168 = arith.addf %165, %167 : vector<2x128xf32>
    %cst_85 = arith.constant 0.000000e+00 : f32
    %169 = vector.broadcast %cst_85 : f32 to vector<2x128xf32>
    %170 = arith.maximumf %168, %169 : vector<2x128xf32>
    %171 = arith.truncf %170 : vector<2x128xf32> to vector<2x128xbf16>
    %c0_86 = arith.constant 0 : index
    %c0_87 = arith.constant 0 : index
    %172 = vector.load %arg6[%c0_86, %c0_87] : memref<128x128xbf16, #tpu.memory_space<vmem>>, vector<128x128xbf16>
    %cst_88 = arith.constant dense<0.000000e+00> : vector<2x128xf32>
    %173 = tpu.matmul %171, %172, %cst_88 {dimension_numbers = #tpu.dot_dimension_numbers<[1], [0], [0], [1], [0, 0, 1, 1], [], []>} : vector<2x128xbf16>, vector<128x128xbf16>, vector<2x128xf32> -> vector<2x128xf32>
    %c0_89 = arith.constant 0 : index
    %c0_90 = arith.constant 0 : index
    %174 = vector.load %arg7[%c0_89, %c0_90] : memref<1x128xf32, #tpu.memory_space<vmem>>, vector<1x128xf32>
    %175 = vector.broadcast %174 : vector<1x128xf32> to vector<2x128xf32>
    %176 = arith.addf %173, %175 : vector<2x128xf32>
    %cst_91 = arith.constant 0.000000e+00 : f32
    %177 = vector.broadcast %cst_91 : f32 to vector<2x128xf32>
    %178 = arith.maximumf %176, %177 : vector<2x128xf32>
    %179 = arith.truncf %178 : vector<2x128xf32> to vector<2x128xbf16>
    %c0_92 = arith.constant 0 : index
    %c0_93 = arith.constant 0 : index
    %180 = vector.load %arg8[%c0_92, %c0_93] : memref<128x128xbf16, #tpu.memory_space<vmem>>, vector<128x128xbf16>
    %cst_94 = arith.constant dense<0.000000e+00> : vector<2x128xf32>
    %181 = tpu.matmul %179, %180, %cst_94 {dimension_numbers = #tpu.dot_dimension_numbers<[1], [0], [0], [1], [0, 0, 1, 1], [], []>} : vector<2x128xbf16>, vector<128x128xbf16>, vector<2x128xf32> -> vector<2x128xf32>
    %c0_95 = arith.constant 0 : index
    %c0_96 = arith.constant 0 : index
    %182 = vector.load %arg9[%c0_95, %c0_96] : memref<1x128xf32, #tpu.memory_space<vmem>>, vector<1x128xf32>
    %183 = vector.broadcast %182 : vector<1x128xf32> to vector<2x128xf32>
    %184 = arith.addf %181, %183 : vector<2x128xf32>
    %c0_97 = arith.constant 0 : index
    %c0_98 = arith.constant 0 : index
    %185 = vector.load %arg10[%c0_97, %c0_98] : memref<2x128xf32, #tpu.memory_space<vmem>>, vector<2x128xf32>
    tpu.vector_store %arg10[%c0_97, %c0_98], %184 {strides = array<i32>} : memref<2x128xf32, #tpu.memory_space<vmem>>, vector<2x128xf32>,
    return
  }
  func.func @transform_0(%arg0: i32) -> (i32, i32) {
    %c0_i32 = arith.constant 0 : i32
    %c0_i32_0 = arith.constant 0 : i32
    %c0_i32_1 = arith.constant 0 : i32
    return %c0_i32, %c0_i32_0 : i32, i32
  }
  func.func @transform_1(%arg0: i32) -> (i32, i32) {
    %c0_i32 = arith.constant 0 : i32
    %c0_i32_0 = arith.constant 0 : i32
    %c0_i32_1 = arith.constant 0 : i32
    return %c0_i32, %c0_i32_0 : i32, i32
  }
  func.func @transform_2(%arg0: i32) -> (i32, i32) {
    %c0_i32 = arith.constant 0 : i32
    %c0_i32_0 = arith.constant 0 : i32
    %c0_i32_1 = arith.constant 0 : i32
    return %c0_i32, %c0_i32_0 : i32, i32
  }
  func.func @transform_3(%arg0: i32) -> (i32, i32, i32) {
    %c0_i32 = arith.constant 0 : i32
    %c0_i32_0 = arith.constant 0 : i32
    %c0_i32_1 = arith.constant 0 : i32
    %c0_i32_2 = arith.constant 0 : i32
    return %c0_i32, %c0_i32_0, %c0_i32_1 : i32, i32, i32
  }
  func.func @transform_4(%arg0: i32) -> (i32, i32) {
    %c0_i32 = arith.constant 0 : i32
    %c0_i32_0 = arith.constant 0 : i32
    %c0_i32_1 = arith.constant 0 : i32
    return %c0_i32, %c0_i32_0 : i32, i32
  }
  func.func @transform_5(%arg0: i32) -> (i32, i32) {
    %c0_i32 = arith.constant 0 : i32
    %c0_i32_0 = arith.constant 0 : i32
    %c0_i32_1 = arith.constant 0 : i32
    return %c0_i32, %c0_i32_0 : i32, i32
  }
  func.func @transform_6(%arg0: i32) -> (i32, i32) {
    %c0_i32 = arith.constant 0 : i32
    %c0_i32_0 = arith.constant 0 : i32
    %c0_i32_1 = arith.constant 0 : i32
    return %c0_i32, %c0_i32_0 : i32, i32
  }
  func.func @transform_7(%arg0: i32) -> (i32, i32) {
    %c0_i32 = arith.constant 0 : i32
    %c0_i32_0 = arith.constant 0 : i32
    %c0_i32_1 = arith.constant 0 : i32
    return %c0_i32, %c0_i32_0 : i32, i32
  }
  func.func @transform_8(%arg0: i32) -> (i32, i32) {
    %c0_i32 = arith.constant 0 : i32
    %c0_i32_0 = arith.constant 0 : i32
    %c0_i32_1 = arith.constant 0 : i32
    return %c0_i32, %c0_i32_0 : i32, i32
  }
  func.func @transform_9(%arg0: i32) -> (i32, i32) {
    %c0_i32 = arith.constant 0 : i32
    %c0_i32_0 = arith.constant 0 : i32
    %c0_i32_1 = arith.constant 0 : i32
    return %c0_i32, %c0_i32_0 : i32, i32
  }
}

</mosaic_0001>

<llo_original>
// kernel: simplenet_forward.2
$region0: #{simplenet_forward.2}
  #allocation0 [shape = 'u32[]', space=smem, size = 0x4, offset = 0x4, fixed_abs, tag = 'smem constant byte address 0x4 - core index']
  #allocation1 [shape = 'u32[72,128]{1,0:T(1,128)}', space=vmem, size = 0x9000, scoped, tag = 'internal scratch']
  %s0 = inlined_call_operand.vmem [shape: bf16[1568,75], index: 0, kind: input, shape index: {}]
  %s1 = inlined_call_operand.vmem [shape: bf16[75,128], index: 1, kind: input, shape index: {}]
  %s2 = inlined_call_operand.vmem [shape: f32[1,128], index: 2, kind: input, shape index: {}]
  %s3 = inlined_call_operand.vmem [shape: f32[392,128], index: 3, kind: output, shape index: {}]
  %s4 = sld [smem:[#allocation0]]
  $region22: #{simplenet_forward.2} parent=0
    _
  %s6 = ssub.s32 1, %s4
  %s7 = scalar_select 0, %s6, %s4
  // Predicated region
  $region2: #{simplenet_forward.2} parent=0 // pred_check
    _
  $region3: #{simplenet_forward.2} parent=0 // pred_check_branch
    %9 = sbr.rel (0) target = $region5
  $region4: #{simplenet_forward.2} parent=0 // pred_region
    _
  $region5: #{simplenet_forward.2} parent=0 // pred_fallthru
    _
  // Predicated region
  $region6: #{simplenet_forward.2} parent=0 // pred_check
    _
  $region7: #{simplenet_forward.2} parent=0 // pred_check_branch
    %11 = sbr.rel (0) target = $region9
  $region8: #{simplenet_forward.2} parent=0 // pred_region
    _
  $region9: #{simplenet_forward.2} parent=0 // pred_fallthru
    _
  // Predicated region
  $region10: #{simplenet_forward.2} parent=0 // pred_check
    _
  $region11: #{simplenet_forward.2} parent=0 // pred_check_branch
    %13 = sbr.rel (0) target = $region13
  $region12: #{simplenet_forward.2} parent=0 // pred_region
    _
  $region13: #{simplenet_forward.2} parent=0 // pred_fallthru
    _
  %v15 = vld [vmem:[%s0] sm:$0xf]
  %v16 = vld [vmem:[%s0 + $0x4] sm:$0xf]
  %v17 = vld [vmem:[%s0 + $0x8] sm:$0xf]
  %v18 = vld [vmem:[%s0 + $0xc] sm:$0xf]
  %v19 = vld [vmem:[%s0 + $0x10] sm:$0xf]
  %v20 = vld [vmem:[%s0 + $0x14] sm:$0xf]
  %v21 = vld [vmem:[%s0 + $0x18] sm:$0xf]
  %v22 = vld [vmem:[%s0 + $0x1c] sm:$0xf]
  %v23 = vld [vmem:[%s0 + $0x20] sm:$0xf]
  %v24 = vld [vmem:[%s0 + $0x24] sm:$0xf]
  %v25 = vld [vmem:[%s0 + $0x28] sm:$0xf]
  %v26 = vld [vmem:[%s0 + $0x2c] sm:$0xf]
  %v27 = vld [vmem:[%s0 + $0x30] sm:$0xf]
  %v28 = vld [vmem:[%s0 + $0x34] sm:$0xf]
  %v29 = vld [vmem:[%s0 + $0x38] sm:$0xf]
  %v30 = vld [vmem:[%s0 + $0x3c] sm:$0xf]
  %v31 = vld [vmem:[%s0 + $0x40] sm:$0xf]
  %v32 = vld [vmem:[%s0 + $0x44] sm:$0xf]
  %v33 = vld [vmem:[%s0 + $0x48] sm:$0xf]
  %v34 = vld [vmem:[%s0 + $0x4c] sm:$0xf]
  %v35 = vld [vmem:[%s0 + $0x50] sm:$0xf]
  %v36 = vld [vmem:[%s0 + $0x54] sm:$0xf]
  %v37 = vld [vmem:[%s0 + $0x58] sm:$0xf]
  %v38 = vld [vmem:[%s0 + $0x5c] sm:$0xf]
  %v39 = vld [vmem:[%s0 + $0x60] sm:$0xf]
  %v40 = vld [vmem:[%s0 + $0x64] sm:$0xf]
  %v41 = vld [vmem:[%s0 + $0x68] sm:$0xf]
  %v42 = vld [vmem:[%s0 + $0x6c] sm:$0xf]
  %v43 = vld [vmem:[%s0 + $0x70] sm:$0xf]
  %v44 = vld [vmem:[%s0 + $0x74] sm:$0xf]
  %v45 = vld [vmem:[%s0 + $0x78] sm:$0xf]
  %v46 = vld [vmem:[%s0 + $0x7c] sm:$0xf]
  %v47 = vld [vmem:[%s0 + $0x80] sm:$0xf]
  %v48 = vld [vmem:[%s0 + $0x84] sm:$0xf]
  %v49 = vld [vmem:[%s0 + $0x88] sm:$0xf]
  %v50 = vld [vmem:[%s0 + $0x8c] sm:$0xf]
  %v51 = vld [vmem:[%s0 + $0x90] sm:$0xf]
  %v52 = vld [vmem:[%s0 + $0x94] sm:$0xf]
  %v53 = vld [vmem:[%s0 + $0x98] sm:$0xf]
  %v54 = vld [vmem:[%s0 + $0x9c] sm:$0xf]
  %v55 = vld [vmem:[%s0 + $0xa0] sm:$0xf]
  %v56 = vld [vmem:[%s0 + $0xa4] sm:$0xf]
  %v57 = vld [vmem:[%s0 + $0xa8] sm:$0xf]
  %v58 = vld [vmem:[%s0 + $0xac] sm:$0xf]
  %v59 = vld [vmem:[%s0 + $0xb0] sm:$0xf]
  %v60 = vld [vmem:[%s0 + $0xb4] sm:$0xf]
  %v61 = vld [vmem:[%s0 + $0xb8] sm:$0xf]
  %v62 = vld [vmem:[%s0 + $0xbc] sm:$0xf]
  %v63 = vld [vmem:[%s0 + $0xc0] sm:$0xf]
  %v64 = vld [vmem:[%s0 + $0xc4] sm:$0xf]
  %v65 = vld [vmem:[%s0 + $0xc8] sm:$0xf]
  %v66 = vld [vmem:[%s0 + $0xcc] sm:$0xf]
  %v67 = vld [vmem:[%s0 + $0xd0] sm:$0xf]
  %v68 = vld [vmem:[%s0 + $0xd4] sm:$0xf]
  %v69 = vld [vmem:[%s0 + $0xd8] sm:$0xf]
  %v70 = vld [vmem:[%s0 + $0xdc] sm:$0xf]
  %v71 = vld [vmem:[%s0 + $0xe0] sm:$0xf]
  %v72 = vld [vmem:[%s0 + $0xe4] sm:$0xf]
  %v73 = vld [vmem:[%s0 + $0xe8] sm:$0xf]
  %v74 = vld [vmem:[%s0 + $0xec] sm:$0xf]
  %v75 = vld [vmem:[%s0 + $0xf0] sm:$0xf]
  %v76 = vld [vmem:[%s0 + $0xf4] sm:$0xf]
  %v77 = vld [vmem:[%s0 + $0xf8] sm:$0xf]
  %v78 = vld [vmem:[%s0 + $0xfc] sm:$0xf]
  %v79 = vld [vmem:[%s0 + $0x100] sm:$0xf]
  %v80 = vld [vmem:[%s0 + $0x104] sm:$0xf]
  %v81 = vld [vmem:[%s0 + $0x108] sm:$0xf]
  %v82 = vld [vmem:[%s0 + $0x10c] sm:$0xf]
  %v83 = vld [vmem:[%s0 + $0x110] sm:$0xf]
  %v84 = vld [vmem:[%s0 + $0x114] sm:$0xf]
  %v85 = vld [vmem:[%s0 + $0x118] sm:$0xf]
  %v86 = vld [vmem:[%s0 + $0x11c] sm:$0xf]
  %v87 = vld [vmem:[%s0 + $0x120] sm:$0xf]
  %v88 = vld [vmem:[%s0 + $0x124] sm:$0xf]
  %v89 = vld [vmem:[%s0 + $0x128] sm:$0xf]
  %v90 = vld [vmem:[%s0 + $0x12c] sm:$0xf]
  %v91 = vld [vmem:[%s0 + $0x130] sm:$0xf]
  %v92 = vld [vmem:[%s0 + $0x134] sm:$0xf]
  %v93 = vld [vmem:[%s0 + $0x138] sm:$0xf]
  %v94 = vld [vmem:[%s0 + $0x13c] sm:$0xf]
  %v95 = vld [vmem:[%s0 + $0x140] sm:$0xf]
  %v96 = vld [vmem:[%s0 + $0x144] sm:$0xf]
  %v97 = vld [vmem:[%s0 + $0x148] sm:$0xf]
  %v98 = vld [vmem:[%s0 + $0x14c] sm:$0xf]
  %v99 = vld [vmem:[%s0 + $0x150] sm:$0xf]
  %v100 = vld [vmem:[%s0 + $0x154] sm:$0xf]
  %v101 = vld [vmem:[%s0 + $0x158] sm:$0xf]
  %v102 = vld [vmem:[%s0 + $0x15c] sm:$0xf]
  %v103 = vld [vmem:[%s0 + $0x160] sm:$0xf]
  %v104 = vld [vmem:[%s0 + $0x164] sm:$0xf]
  %v105 = vld [vmem:[%s0 + $0x168] sm:$0xf]
  %v106 = vld [vmem:[%s0 + $0x16c] sm:$0xf]
  %v107 = vld [vmem:[%s0 + $0x170] sm:$0xf]
  %v108 = vld [vmem:[%s0 + $0x174] sm:$0xf]
  %v109 = vld [vmem:[%s0 + $0x178] sm:$0xf]
  %v110 = vld [vmem:[%s0 + $0x17c] sm:$0xf]
  %v111 = vld [vmem:[%s0 + $0x180] sm:$0xf]
  %v112 = vld [vmem:[%s0 + $0x184] sm:$0xf]
  %v113 = vld [vmem:[%s0 + $0x188] sm:$0xf]
  %v114 = vld [vmem:[%s0 + $0x18c] sm:$0xf]
  %v115 = vld [vmem:[%s0 + $0x190] sm:$0xf]
  %v116 = vld [vmem:[%s0 + $0x194] sm:$0xf]
  %v117 = vld [vmem:[%s0 + $0x198] sm:$0xf]
  %v118 = vld [vmem:[%s0 + $0x19c] sm:$0xf]
  %v119 = vld [vmem:[%s0 + $0x1a0] sm:$0xf]
  %v120 = vld [vmem:[%s0 + $0x1a4] sm:$0xf]
  %v121 = vld [vmem:[%s0 + $0x1a8] sm:$0xf]
  %v122 = vld [vmem:[%s0 + $0x1ac] sm:$0xf]
  %v123 = vld [vmem:[%s0 + $0x1b0] sm:$0xf]
  %v124 = vld [vmem:[%s0 + $0x1b4] sm:$0xf]
  %v125 = vld [vmem:[%s0 + $0x1b8] sm:$0xf]
  %v126 = vld [vmem:[%s0 + $0x1bc] sm:$0xf]
  %v127 = vld [vmem:[%s0 + $0x1c0] sm:$0xf]
  %v128 = vld [vmem:[%s0 + $0x1c4] sm:$0xf]
  %v129 = vld [vmem:[%s0 + $0x1c8] sm:$0xf]
  %v130 = vld [vmem:[%s0 + $0x1cc] sm:$0xf]
  %v131 = vld [vmem:[%s0 + $0x1d0] sm:$0xf]
  %v132 = vld [vmem:[%s0 + $0x1d4] sm:$0xf]
  %v133 = vld [vmem:[%s0 + $0x1d8] sm:$0xf]
  %v134 = vld [vmem:[%s0 + $0x1dc] sm:$0xf]
  %v135 = vld [vmem:[%s0 + $0x1e0] sm:$0xf]
  %v136 = vld [vmem:[%s0 + $0x1e4] sm:$0xf]
  %v137 = vld [vmem:[%s0 + $0x1e8] sm:$0xf]
  %v138 = vld [vmem:[%s0 + $0x1ec] sm:$0xf]
  %v139 = vld [vmem:[%s0 + $0x1f0] sm:$0xf]
  %v140 = vld [vmem:[%s0 + $0x1f4] sm:$0xf]
  %v141 = vld [vmem:[%s0 + $0x1f8] sm:$0xf]
  %v142 = vld [vmem:[%s0 + $0x1fc] sm:$0xf]
  %v143 = vld [vmem:[%s0 + $0x200] sm:$0xf]
  %v144 = vld [vmem:[%s0 + $0x204] sm:$0xf]
  %v145 = vld [vmem:[%s0 + $0x208] sm:$0xf]
  %v146 = vld [vmem:[%s0 + $0x20c] sm:$0xf]
  %v147 = vld [vmem:[%s0 + $0x210] sm:$0xf]
  %v148 = vld [vmem:[%s0 + $0x214] sm:$0xf]
  %v149 = vld [vmem:[%s0 + $0x218] sm:$0xf]
  %v150 = vld [vmem:[%s0 + $0x21c] sm:$0xf]
  %v151 = vld [vmem:[%s0 + $0x220] sm:$0xf]
  %v152 = vld [vmem:[%s0 + $0x224] sm:$0xf]
  %v153 = vld [vmem:[%s0 + $0x228] sm:$0xf]
  %v154 = vld [vmem:[%s0 + $0x22c] sm:$0xf]
  %v155 = vld [vmem:[%s0 + $0x230] sm:$0xf]
  %v156 = vld [vmem:[%s0 + $0x234] sm:$0xf]
  %v157 = vld [vmem:[%s0 + $0x238] sm:$0xf]
  %v158 = vld [vmem:[%s0 + $0x23c] sm:$0xf]
  %v159 = vld [vmem:[%s0 + $0x240] sm:$0xf]
  %v160 = vld [vmem:[%s0 + $0x244] sm:$0xf]
  %v161 = vld [vmem:[%s0 + $0x248] sm:$0xf]
  %v162 = vld [vmem:[%s0 + $0x24c] sm:$0xf]
  %v163 = vld [vmem:[%s0 + $0x250] sm:$0xf]
  %v164 = vld [vmem:[%s0 + $0x254] sm:$0xf]
  %v165 = vld [vmem:[%s0 + $0x258] sm:$0xf]
  %v166 = vld [vmem:[%s0 + $0x25c] sm:$0xf]
  %v167 = vld [vmem:[%s0 + $0x260] sm:$0xf]
  %v168 = vld [vmem:[%s0 + $0x264] sm:$0xf]
  %v169 = vld [vmem:[%s0 + $0x268] sm:$0xf]
  %v170 = vld [vmem:[%s0 + $0x26c] sm:$0xf]
  %v171 = vld [vmem:[%s0 + $0x270] sm:$0xf]
  %v172 = vld [vmem:[%s0 + $0x274] sm:$0xf]
  %v173 = vld [vmem:[%s0 + $0x278] sm:$0xf]
  %v174 = vld [vmem:[%s0 + $0x27c] sm:$0xf]
  %v175 = vld [vmem:[%s0 + $0x280] sm:$0xf]
  %v176 = vld [vmem:[%s0 + $0x284] sm:$0xf]
  %v177 = vld [vmem:[%s0 + $0x288] sm:$0xf]
  %v178 = vld [vmem:[%s0 + $0x28c] sm:$0xf]
  %v179 = vld [vmem:[%s0 + $0x290] sm:$0xf]
  %v180 = vld [vmem:[%s0 + $0x294] sm:$0xf]
  %v181 = vld [vmem:[%s0 + $0x298] sm:$0xf]
  %v182 = vld [vmem:[%s0 + $0x29c] sm:$0xf]
  %v183 = vld [vmem:[%s0 + $0x2a0] sm:$0xf]
  %v184 = vld [vmem:[%s0 + $0x2a4] sm:$0xf]
  %v185 = vld [vmem:[%s0 + $0x2a8] sm:$0xf]
  %v186 = vld [vmem:[%s0 + $0x2ac] sm:$0xf]
  %v187 = vld [vmem:[%s0 + $0x2b0] sm:$0xf]
  %v188 = vld [vmem:[%s0 + $0x2b4] sm:$0xf]
  %v189 = vld [vmem:[%s0 + $0x2b8] sm:$0xf]
  %v190 = vld [vmem:[%s0 + $0x2bc] sm:$0xf]
  %v191 = vld [vmem:[%s0 + $0x2c0] sm:$0xf]
  %v192 = vld [vmem:[%s0 + $0x2c4] sm:$0xf]
  %v193 = vld [vmem:[%s0 + $0x2c8] sm:$0xf]
  %v194 = vld [vmem:[%s0 + $0x2cc] sm:$0xf]
  %v195 = vld [vmem:[%s0 + $0x2d0] sm:$0xf]
  %v196 = vld [vmem:[%s0 + $0x2d4] sm:$0xf]
  %v197 = vld [vmem:[%s0 + $0x2d8] sm:$0xf]
  %v198 = vld [vmem:[%s0 + $0x2dc] sm:$0xf]
  %v199 = vld [vmem:[%s0 + $0x2e0] sm:$0xf]
  %v200 = vld [vmem:[%s0 + $0x2e4] sm:$0xf]
  %v201 = vld [vmem:[%s0 + $0x2e8] sm:$0xf]
  %v202 = vld [vmem:[%s0 + $0x2ec] sm:$0xf]
  %v203 = vld [vmem:[%s0 + $0x2f0] sm:$0xf]
  %v204 = vld [vmem:[%s0 + $0x2f4] sm:$0xf]
  %v205 = vld [vmem:[%s0 + $0x2f8] sm:$0xf]
  %v206 = vld [vmem:[%s0 + $0x2fc] sm:$0xf]
  %v207 = vld [vmem:[%s0 + $0x300] sm:$0xf]
  %v208 = vld [vmem:[%s0 + $0x304] sm:$0xf]
  %v209 = vld [vmem:[%s0 + $0x308] sm:$0xf]
  %v210 = vld [vmem:[%s0 + $0x30c] sm:$0xf]
  %v211 = vld [vmem:[%s1] sm:$0xf]
  %v212 = vld [vmem:[%s1 + $0x4] sm:$0xf]
  %v213 = vld [vmem:[%s1 + $0x8] sm:$0xf]
  %v214 = vld [vmem:[%s1 + $0xc] sm:$0xf]
  %v215 = vld [vmem:[%s1 + $0x10] sm:$0xf]
  %v216 = vld [vmem:[%s1 + $0x14] sm:$0xf]
  %v217 = vld [vmem:[%s1 + $0x18] sm:$0xf]
  %v218 = vld [vmem:[%s1 + $0x1c] sm:$0xf]
  %v219 = vld [vmem:[%s1 + $0x20] sm:$0xf]
  %v220 = vld [vmem:[%s1 + $0x24] sm:$0x3]
  %v221 = vld [vmem:[%s2] sm:$0x1]
  %v223 = vperm.slane %v221, 0
  %v421 = vunpack.c.l.b16 %v15
  %v422 = vunpack.c.l.b16 %v16
  %v423 = vunpack.c.l.b16 %v17
  %v424 = vunpack.c.l.b16 %v18
  %v425 = vunpack.c.l.b16 %v19
  %v426 = vunpack.c.l.b16 %v20
  %v427 = vunpack.c.l.b16 %v21
  %v428 = vunpack.c.l.b16 %v22
  %v429 = vunpack.c.l.b16 %v23
  %v430 = vunpack.c.l.b16 %v24
  %v431 = vunpack.c.l.b16 %v25
  %v432 = vunpack.c.l.b16 %v26
  %v433 = vunpack.c.l.b16 %v27
  %v434 = vunpack.c.l.b16 %v28
  %v435 = vunpack.c.l.b16 %v29
  %v436 = vunpack.c.l.b16 %v30
  %v437 = vunpack.c.l.b16 %v31
  %v438 = vunpack.c.l.b16 %v32
  %v439 = vunpack.c.l.b16 %v33
  %v440 = vunpack.c.l.b16 %v34
  %v441 = vunpack.c.l.b16 %v35
  %v442 = vunpack.c.l.b16 %v36
  %v443 = vunpack.c.l.b16 %v37
  %v444 = vunpack.c.l.b16 %v38
  %v445 = vunpack.c.l.b16 %v39
  %v446 = vunpack.c.l.b16 %v40
  %v447 = vunpack.c.l.b16 %v41
  %v448 = vunpack.c.l.b16 %v42
  %v449 = vunpack.c.l.b16 %v43
  %v450 = vunpack.c.l.b16 %v44
  %v451 = vunpack.c.l.b16 %v45
  %v452 = vunpack.c.l.b16 %v46
  %v453 = vunpack.c.l.b16 %v47
  %v454 = vunpack.c.l.b16 %v48
  %v455 = vunpack.c.l.b16 %v49
  %v456 = vunpack.c.l.b16 %v50
  %v457 = vunpack.c.l.b16 %v51
  %v458 = vunpack.c.l.b16 %v52
  %v459 = vunpack.c.l.b16 %v53
  %v460 = vunpack.c.l.b16 %v54
  %v461 = vunpack.c.l.b16 %v55
  %v462 = vunpack.c.l.b16 %v56
  %v463 = vunpack.c.l.b16 %v57
  %v464 = vunpack.c.l.b16 %v58
  %v465 = vunpack.c.l.b16 %v59
  %v466 = vunpack.c.l.b16 %v60
  %v467 = vunpack.c.l.b16 %v61
  %v468 = vunpack.c.l.b16 %v62
  %v469 = vunpack.c.l.b16 %v63
  %v470 = vunpack.c.l.b16 %v64
  %v471 = vunpack.c.l.b16 %v65
  %v472 = vunpack.c.l.b16 %v66
  %v473 = vunpack.c.l.b16 %v67
  %v474 = vunpack.c.l.b16 %v68
  %v475 = vunpack.c.l.b16 %v69
  %v476 = vunpack.c.l.b16 %v70
  %v477 = vunpack.c.l.b16 %v71
  %v478 = vunpack.c.l.b16 %v72
  %v479 = vunpack.c.l.b16 %v73
  %v480 = vunpack.c.l.b16 %v74
  %v481 = vunpack.c.l.b16 %v75
  %v482 = vunpack.c.l.b16 %v76
  %v483 = vunpack.c.l.b16 %v77
  %v484 = vunpack.c.l.b16 %v78
  %v485 = vunpack.c.l.b16 %v79
  %v486 = vunpack.c.l.b16 %v80
  %v487 = vunpack.c.l.b16 %v81
  %v488 = vunpack.c.l.b16 %v82
  %v489 = vunpack.c.l.b16 %v83
  %v490 = vunpack.c.l.b16 %v84
  %v491 = vunpack.c.l.b16 %v85
  %v492 = vunpack.c.l.b16 %v86
  %v493 = vunpack.c.l.b16 %v87
  %v494 = vunpack.c.l.b16 %v88
  %v495 = vunpack.c.l.b16 %v89
  %v496 = vunpack.c.l.b16 %v90
  %v497 = vunpack.c.l.b16 %v91
  %v498 = vunpack.c.l.b16 %v92
  %v499 = vunpack.c.l.b16 %v93
  %v500 = vunpack.c.l.b16 %v94
  %v501 = vunpack.c.l.b16 %v95
  %v502 = vunpack.c.l.b16 %v96
  %v503 = vunpack.c.l.b16 %v97
  %v504 = vunpack.c.l.b16 %v98
  %v505 = vunpack.c.l.b16 %v99
  %v506 = vunpack.c.l.b16 %v100
  %v507 = vunpack.c.l.b16 %v101
  %v508 = vunpack.c.l.b16 %v102
  %v509 = vunpack.c.l.b16 %v103
  %v510 = vunpack.c.l.b16 %v104
  %v511 = vunpack.c.l.b16 %v105
  %v512 = vunpack.c.l.b16 %v106
  %v513 = vunpack.c.l.b16 %v107
  %v514 = vunpack.c.l.b16 %v108
  %v515 = vunpack.c.l.b16 %v109
  %v516 = vunpack.c.l.b16 %v110
  %v517 = vunpack.c.l.b16 %v111
  %v518 = vunpack.c.l.b16 %v112
  %v519 = vunpack.c.l.b16 %v113
  %v520 = vunpack.c.l.b16 %v114
  %v521 = vunpack.c.l.b16 %v115
  %v522 = vunpack.c.l.b16 %v116
  %v523 = vunpack.c.l.b16 %v117
  %v524 = vunpack.c.l.b16 %v118
  %v525 = vunpack.c.l.b16 %v119
  %v526 = vunpack.c.l.b16 %v120
  %v527 = vunpack.c.l.b16 %v121
  %v528 = vunpack.c.l.b16 %v122
  %v529 = vunpack.c.l.b16 %v123
  %v530 = vunpack.c.l.b16 %v124
  %v531 = vunpack.c.l.b16 %v125
  %v532 = vunpack.c.l.b16 %v126
  %v533 = vunpack.c.l.b16 %v127
  %v534 = vunpack.c.l.b16 %v128
  %v535 = vunpack.c.l.b16 %v129
  %v536 = vunpack.c.l.b16 %v130
  %v537 = vunpack.c.l.b16 %v131
  %v538 = vunpack.c.l.b16 %v132
  %v539 = vunpack.c.l.b16 %v133
  %v540 = vunpack.c.l.b16 %v134
  %v541 = vunpack.c.l.b16 %v135
  %v542 = vunpack.c.l.b16 %v136
  %v543 = vunpack.c.l.b16 %v137
  %v544 = vunpack.c.l.b16 %v138
  %v545 = vunpack.c.l.b16 %v139
  %v546 = vunpack.c.l.b16 %v140
  %v547 = vunpack.c.l.b16 %v141
  %v548 = vunpack.c.l.b16 %v142
  %v549 = vunpack.c.l.b16 %v143
  %v550 = vunpack.c.l.b16 %v144
  %v551 = vunpack.c.l.b16 %v145
  %v552 = vunpack.c.l.b16 %v146
  %v553 = vunpack.c.l.b16 %v147
  %v554 = vunpack.c.l.b16 %v148
  %v555 = vunpack.c.l.b16 %v149
  %v556 = vunpack.c.l.b16 %v150
  %v557 = vunpack.c.l.b16 %v151
  %v558 = vunpack.c.l.b16 %v152
  %v559 = vunpack.c.l.b16 %v153
  %v560 = vunpack.c.l.b16 %v154
  %v561 = vunpack.c.l.b16 %v155
  %v562 = vunpack.c.l.b16 %v156
  %v563 = vunpack.c.l.b16 %v157
  %v564 = vunpack.c.l.b16 %v158
  %v565 = vunpack.c.l.b16 %v159
  %v566 = vunpack.c.l.b16 %v160
  %v567 = vunpack.c.l.b16 %v161
  %v568 = vunpack.c.l.b16 %v162
  %v569 = vunpack.c.l.b16 %v163
  %v570 = vunpack.c.l.b16 %v164
  %v571 = vunpack.c.l.b16 %v165
  %v572 = vunpack.c.l.b16 %v166
  %v573 = vunpack.c.l.b16 %v167
  %v574 = vunpack.c.l.b16 %v168
  %v575 = vunpack.c.l.b16 %v169
  %v576 = vunpack.c.l.b16 %v170
  %v577 = vunpack.c.l.b16 %v171
  %v578 = vunpack.c.l.b16 %v172
  %v579 = vunpack.c.l.b16 %v173
  %v580 = vunpack.c.l.b16 %v174
  %v581 = vunpack.c.l.b16 %v175
  %v582 = vunpack.c.l.b16 %v176
  %v583 = vunpack.c.l.b16 %v177
  %v584 = vunpack.c.l.b16 %v178
  %v585 = vunpack.c.l.b16 %v179
  %v586 = vunpack.c.l.b16 %v180
  %v587 = vunpack.c.l.b16 %v181
  %v588 = vunpack.c.l.b16 %v182
  %v589 = vunpack.c.l.b16 %v183
  %v590 = vunpack.c.l.b16 %v184
  %v591 = vunpack.c.l.b16 %v185
  %v592 = vunpack.c.l.b16 %v186
  %v593 = vunpack.c.l.b16 %v187
  %v594 = vunpack.c.l.b16 %v188
  %v595 = vunpack.c.l.b16 %v189
  %v596 = vunpack.c.l.b16 %v190
  %v597 = vunpack.c.l.b16 %v191
  %v598 = vunpack.c.l.b16 %v192
  %v599 = vunpack.c.l.b16 %v193
  %v600 = vunpack.c.l.b16 %v194
  %v601 = vunpack.c.l.b16 %v195
  %v602 = vunpack.c.l.b16 %v196
  %v603 = vunpack.c.l.b16 %v197
  %v604 = vunpack.c.l.b16 %v198
  %v605 = vunpack.c.l.b16 %v199
  %v606 = vunpack.c.l.b16 %v200
  %v607 = vunpack.c.l.b16 %v201
  %v608 = vunpack.c.l.b16 %v202
  %v609 = vunpack.c.l.b16 %v203
  %v610 = vunpack.c.l.b16 %v204
  %v611 = vunpack.c.l.b16 %v205
  %v612 = vunpack.c.l.b16 %v206
  %v613 = vunpack.c.l.b16 %v207
  %v614 = vunpack.c.l.b16 %v208
  %v615 = vunpack.c.l.b16 %v209
  %v616 = vunpack.c.l.b16 %v210
  %v617 = vpack.c.b16 %v422, %v421
  %v618 = vpack.c.b16 %v424, %v423
  %v619 = vpack.c.b16 %v426, %v425
  %v620 = vpack.c.b16 %v428, %v427
  %v621 = vpack.c.b16 %v430, %v429
  %v622 = vpack.c.b16 %v432, %v431
  %v623 = vpack.c.b16 %v434, %v433
  %v624 = vpack.c.b16 %v436, %v435
  %v625 = vpack.c.b16 %v438, %v437
  %v626 = vpack.c.b16 %v440, %v439
  %v627 = vpack.c.b16 %v442, %v441
  %v628 = vpack.c.b16 %v444, %v443
  %v629 = vpack.c.b16 %v446, %v445
  %v630 = vpack.c.b16 %v448, %v447
  %v631 = vpack.c.b16 %v450, %v449
  %v632 = vpack.c.b16 %v452, %v451
  %v633 = vpack.c.b16 %v454, %v453
  %v634 = vpack.c.b16 %v456, %v455
  %v635 = vpack.c.b16 %v458, %v457
  %v636 = vpack.c.b16 %v460, %v459
  %v637 = vpack.c.b16 %v462, %v461
  %v638 = vpack.c.b16 %v464, %v463
  %v639 = vpack.c.b16 %v466, %v465
  %v640 = vpack.c.b16 %v468, %v467
  %v641 = vpack.c.b16 %v470, %v469
  %v642 = vpack.c.b16 %v472, %v471
  %v643 = vpack.c.b16 %v474, %v473
  %v644 = vpack.c.b16 %v476, %v475
  %v645 = vpack.c.b16 %v478, %v477
  %v646 = vpack.c.b16 %v480, %v479
  %v647 = vpack.c.b16 %v482, %v481
  %v648 = vpack.c.b16 %v484, %v483
  %v649 = vpack.c.b16 %v486, %v485
  %v650 = vpack.c.b16 %v488, %v487
  %v651 = vpack.c.b16 %v490, %v489
  %v652 = vpack.c.b16 %v492, %v491
  %v653 = vpack.c.b16 %v494, %v493
  %v654 = vpack.c.b16 %v496, %v495
  %v655 = vpack.c.b16 %v498, %v497
  %v656 = vpack.c.b16 %v500, %v499
  %v657 = vpack.c.b16 %v502, %v501
  %v658 = vpack.c.b16 %v504, %v503
  %v659 = vpack.c.b16 %v506, %v505
  %v660 = vpack.c.b16 %v508, %v507
  %v661 = vpack.c.b16 %v510, %v509
  %v662 = vpack.c.b16 %v512, %v511
  %v663 = vpack.c.b16 %v514, %v513
  %v664 = vpack.c.b16 %v516, %v515
  %v665 = vpack.c.b16 %v518, %v517
  %v666 = vpack.c.b16 %v520, %v519
  %v667 = vpack.c.b16 %v522, %v521
  %v668 = vpack.c.b16 %v524, %v523
  %v669 = vpack.c.b16 %v526, %v525
  %v670 = vpack.c.b16 %v528, %v527
  %v671 = vpack.c.b16 %v530, %v529
  %v672 = vpack.c.b16 %v532, %v531
  %v673 = vpack.c.b16 %v534, %v533
  %v674 = vpack.c.b16 %v536, %v535
  %v675 = vpack.c.b16 %v538, %v537
  %v676 = vpack.c.b16 %v540, %v539
  %v677 = vpack.c.b16 %v542, %v541
  %v678 = vpack.c.b16 %v544, %v543
  %v679 = vpack.c.b16 %v546, %v545
  %v680 = vpack.c.b16 %v548, %v547
  %v681 = vpack.c.b16 %v550, %v549
  %v682 = vpack.c.b16 %v552, %v551
  %v683 = vpack.c.b16 %v554, %v553
  %v684 = vpack.c.b16 %v556, %v555
  %v685 = vpack.c.b16 %v558, %v557
  %v686 = vpack.c.b16 %v560, %v559
  %v687 = vpack.c.b16 %v562, %v561
  %v688 = vpack.c.b16 %v564, %v563
  %v689 = vpack.c.b16 %v566, %v565
  %v690 = vpack.c.b16 %v568, %v567
  %v691 = vpack.c.b16 %v570, %v569
  %v692 = vpack.c.b16 %v572, %v571
  %v693 = vpack.c.b16 %v574, %v573
  %v694 = vpack.c.b16 %v576, %v575
  %v695 = vpack.c.b16 %v578, %v577
  %v696 = vpack.c.b16 %v580, %v579
  %v697 = vpack.c.b16 %v582, %v581
  %v698 = vpack.c.b16 %v584, %v583
  %v699 = vpack.c.b16 %v586, %v585
  %v700 = vpack.c.b16 %v588, %v587
  %v701 = vpack.c.b16 %v590, %v589
  %v702 = vpack.c.b16 %v592, %v591
  %v703 = vpack.c.b16 %v594, %v593
  %v704 = vpack.c.b16 %v596, %v595
  %v705 = vpack.c.b16 %v598, %v597
  %v706 = vpack.c.b16 %v600, %v599
  %v707 = vpack.c.b16 %v602, %v601
  %v708 = vpack.c.b16 %v604, %v603
  %v709 = vpack.c.b16 %v606, %v605
  %v710 = vpack.c.b16 %v608, %v607
  %v711 = vpack.c.b16 %v610, %v609
  %v712 = vpack.c.b16 %v612, %v611
  %v713 = vpack.c.b16 %v614, %v613
  %v714 = vpack.c.b16 %v616, %v615
  %v725 = vunpack.c.l.b16 %v211
  %v726 = vunpack.c.l.b16 %v212
  %v727 = vunpack.c.l.b16 %v213
  %v728 = vunpack.c.l.b16 %v214
  %v729 = vunpack.c.l.b16 %v215
  %v730 = vunpack.c.l.b16 %v216
  %v731 = vunpack.c.l.b16 %v217
  %v732 = vunpack.c.l.b16 %v218
  %v733 = vunpack.c.l.b16 %v219
  %v734 = vunpack.c.l.b16 %v220
  %v735 = vpack.c.b16 %v726, %v725
  %v736 = vpack.c.b16 %v728, %v727
  %v737 = vpack.c.b16 %v730, %v729
  %v738 = vpack.c.b16 %v732, %v731
  %v739 = vpack.c.b16 %v734, %v733
  %vm744 = vcmask 613376
  %v746 = vsel %vm744, %v617, 0
  %v749 = vsel %vm744, %v618, 0
  %v752 = vsel %vm744, %v619, 0
  %v755 = vsel %vm744, %v620, 0
  %v758 = vsel %vm744, %v621, 0
  %v761 = vsel %vm744, %v622, 0
  %v764 = vsel %vm744, %v623, 0
  %v767 = vsel %vm744, %v624, 0
  %v770 = vsel %vm744, %v625, 0
  %v773 = vsel %vm744, %v626, 0
  %v776 = vsel %vm744, %v627, 0
  %v779 = vsel %vm744, %v628, 0
  %v782 = vsel %vm744, %v629, 0
  %v785 = vsel %vm744, %v630, 0
  %v788 = vsel %vm744, %v631, 0
  %v791 = vsel %vm744, %v632, 0
  %v794 = vsel %vm744, %v633, 0
  %v797 = vsel %vm744, %v634, 0
  %v800 = vsel %vm744, %v635, 0
  %v803 = vsel %vm744, %v636, 0
  %v806 = vsel %vm744, %v637, 0
  %v809 = vsel %vm744, %v638, 0
  %v812 = vsel %vm744, %v639, 0
  %v815 = vsel %vm744, %v640, 0
  %v818 = vsel %vm744, %v641, 0
  %v821 = vsel %vm744, %v642, 0
  %v824 = vsel %vm744, %v643, 0
  %v827 = vsel %vm744, %v644, 0
  %v830 = vsel %vm744, %v645, 0
  %v833 = vsel %vm744, %v646, 0
  %v836 = vsel %vm744, %v647, 0
  %v839 = vsel %vm744, %v648, 0
  %v842 = vsel %vm744, %v649, 0
  %v845 = vsel %vm744, %v650, 0
  %v848 = vsel %vm744, %v651, 0
  %v851 = vsel %vm744, %v652, 0
  %v854 = vsel %vm744, %v653, 0
  %v857 = vsel %vm744, %v654, 0
  %v860 = vsel %vm744, %v655, 0
  %v863 = vsel %vm744, %v656, 0
  %v866 = vsel %vm744, %v657, 0
  %v869 = vsel %vm744, %v658, 0
  %v872 = vsel %vm744, %v659, 0
  %v875 = vsel %vm744, %v660, 0
  %v878 = vsel %vm744, %v661, 0
  %v881 = vsel %vm744, %v662, 0
  %v884 = vsel %vm744, %v663, 0
  %v887 = vsel %vm744, %v664, 0
  %v890 = vsel %vm744, %v665, 0
  %v893 = vsel %vm744, %v666, 0
  %v896 = vsel %vm744, %v667, 0
  %v899 = vsel %vm744, %v668, 0
  %v902 = vsel %vm744, %v669, 0
  %v905 = vsel %vm744, %v670, 0
  %v908 = vsel %vm744, %v671, 0
  %v911 = vsel %vm744, %v672, 0
  %v914 = vsel %vm744, %v673, 0
  %v917 = vsel %vm744, %v674, 0
  %v920 = vsel %vm744, %v675, 0
  %v923 = vsel %vm744, %v676, 0
  %v926 = vsel %vm744, %v677, 0
  %v929 = vsel %vm744, %v678, 0
  %v932 = vsel %vm744, %v679, 0
  %v935 = vsel %vm744, %v680, 0
  %v938 = vsel %vm744, %v681, 0
  %v941 = vsel %vm744, %v682, 0
  %v944 = vsel %vm744, %v683, 0
  %v947 = vsel %vm744, %v684, 0
  %v950 = vsel %vm744, %v685, 0
  %v953 = vsel %vm744, %v686, 0
  %v956 = vsel %vm744, %v687, 0
  %v959 = vsel %vm744, %v688, 0
  %v962 = vsel %vm744, %v689, 0
  %v965 = vsel %vm744, %v690, 0
  %v968 = vsel %vm744, %v691, 0
  %v971 = vsel %vm744, %v692, 0
  %v974 = vsel %vm744, %v693, 0
  %v977 = vsel %vm744, %v694, 0
  %v980 = vsel %vm744, %v695, 0
  %v983 = vsel %vm744, %v696, 0
  %v986 = vsel %vm744, %v697, 0
  %v989 = vsel %vm744, %v698, 0
  %v992 = vsel %vm744, %v699, 0
  %v995 = vsel %vm744, %v700, 0
  %v998 = vsel %vm744, %v701, 0
  %v1001 = vsel %vm744, %v702, 0
  %v1004 = vsel %vm744, %v703, 0
  %v1007 = vsel %vm744, %v704, 0
  %v1010 = vsel %vm744, %v705, 0
  %v1013 = vsel %vm744, %v706, 0
  %v1016 = vsel %vm744, %v707, 0
  %v1019 = vsel %vm744, %v708, 0
  %v1022 = vsel %vm744, %v709, 0
  %v1025 = vsel %vm744, %v710, 0
  %v1028 = vsel %vm744, %v711, 0
  %v1031 = vsel %vm744, %v712, 0
  %v1034 = vsel %vm744, %v713, 0
  %v1037 = vsel %vm744, %v714, 0
  %vm1039 = vcmask 1044480
  %vm1040 = vcmask 1045504
  %v1041 = vsel %vm1039, 4294967295, 65535
  %v1042 = vsel %vm1040, %v1041, 0
  %v1044 = vand.u32 %v739, %v1042
  %1046 = vmatpush.bf16.msra.mxu0 0
  %1047 = vmatpush.bf16.msra.mxu0 0
  %1048 = vmatpush.bf16.msra.mxu0 0
  %1049 = vmatpush.bf16.msra.mxu0 %v1044
  %1050 = vmatpush.bf16.msra.mxu0 %v738
  %1051 = vmatpush.bf16.msra.mxu0 %v737
  %1052 = vmatpush.bf16.msra.mxu0 %v736
  %1053 = vmatpush.bf16.msra.mxu0 %v735
  %1054 = vmatmul.bf16.gmra.mxu0 %v746
  %v1055 = vpop.f32.mrf.mxu0
  %v1056 = vadd.f32 %v223, %v1055
  %v1057 = vpop.f32.mrf.mxu0
  %v1058 = vadd.f32 %v223, %v1057
  %1059 = vmatmul.bf16.gmra.mxu0 %v749
  %v1060 = vpop.f32.mrf.mxu0
  %v1061 = vadd.f32 %v223, %v1060
  %v1062 = vpop.f32.mrf.mxu0
  %v1063 = vadd.f32 %v223, %v1062
  %1064 = vmatmul.bf16.gmra.mxu0 %v752
  %v1065 = vpop.f32.mrf.mxu0
  %v1066 = vadd.f32 %v223, %v1065
  %v1067 = vpop.f32.mrf.mxu0
  %v1068 = vadd.f32 %v223, %v1067
  %1069 = vmatmul.bf16.gmra.mxu0 %v755
  %v1070 = vpop.f32.mrf.mxu0
  %v1071 = vadd.f32 %v223, %v1070
  %v1072 = vpop.f32.mrf.mxu0
  %v1073 = vadd.f32 %v223, %v1072
  %1074 = vmatmul.bf16.gmra.mxu0 %v758
  %v1075 = vpop.f32.mrf.mxu0
  %v1076 = vadd.f32 %v223, %v1075
  %v1077 = vpop.f32.mrf.mxu0
  %v1078 = vadd.f32 %v223, %v1077
  %1079 = vmatmul.bf16.gmra.mxu0 %v761
  %v1080 = vpop.f32.mrf.mxu0
  %v1081 = vadd.f32 %v223, %v1080
  %v1082 = vpop.f32.mrf.mxu0
  %v1083 = vadd.f32 %v223, %v1082
  %1084 = vmatmul.bf16.gmra.mxu0 %v764
  %v1085 = vpop.f32.mrf.mxu0
  %v1086 = vadd.f32 %v223, %v1085
  %v1087 = vpop.f32.mrf.mxu0
  %v1088 = vadd.f32 %v223, %v1087
  %1089 = vmatmul.bf16.gmra.mxu0 %v767
  %v1090 = vpop.f32.mrf.mxu0
  %v1091 = vadd.f32 %v223, %v1090
  %v1092 = vpop.f32.mrf.mxu0
  %v1093 = vadd.f32 %v223, %v1092
  %1094 = vmatmul.bf16.gmra.mxu0 %v770
  %v1095 = vpop.f32.mrf.mxu0
  %v1096 = vadd.f32 %v223, %v1095
  %v1097 = vpop.f32.mrf.mxu0
  %v1098 = vadd.f32 %v223, %v1097
  %1099 = vmatmul.bf16.gmra.mxu0 %v773
  %v1100 = vpop.f32.mrf.mxu0
  %v1101 = vadd.f32 %v223, %v1100
  %v1102 = vpop.f32.mrf.mxu0
  %v1103 = vadd.f32 %v223, %v1102
  %1104 = vmatmul.bf16.gmra.mxu0 %v776
  %v1105 = vpop.f32.mrf.mxu0
  %v1106 = vadd.f32 %v223, %v1105
  %v1107 = vpop.f32.mrf.mxu0
  %v1108 = vadd.f32 %v223, %v1107
  %1109 = vmatmul.bf16.gmra.mxu0 %v779
  %v1110 = vpop.f32.mrf.mxu0
  %v1111 = vadd.f32 %v223, %v1110
  %v1112 = vpop.f32.mrf.mxu0
  %v1113 = vadd.f32 %v223, %v1112
  %1114 = vmatmul.bf16.gmra.mxu0 %v782
  %v1115 = vpop.f32.mrf.mxu0
  %v1116 = vadd.f32 %v223, %v1115
  %v1117 = vpop.f32.mrf.mxu0
  %v1118 = vadd.f32 %v223, %v1117
  %1119 = vmatmul.bf16.gmra.mxu0 %v785
  %v1120 = vpop.f32.mrf.mxu0
  %v1121 = vadd.f32 %v223, %v1120
  %v1122 = vpop.f32.mrf.mxu0
  %v1123 = vadd.f32 %v223, %v1122
  %1124 = vmatmul.bf16.gmra.mxu0 %v788
  %v1125 = vpop.f32.mrf.mxu0
  %v1126 = vadd.f32 %v223, %v1125
  %v1127 = vpop.f32.mrf.mxu0
  %v1128 = vadd.f32 %v223, %v1127
  %1129 = vmatmul.bf16.gmra.mxu0 %v791
  %v1130 = vpop.f32.mrf.mxu0
  %v1131 = vadd.f32 %v223, %v1130
  %v1132 = vpop.f32.mrf.mxu0
  %v1133 = vadd.f32 %v223, %v1132
  %1134 = vmatmul.bf16.gmra.mxu0 %v794
  %v1135 = vpop.f32.mrf.mxu0
  %v1136 = vadd.f32 %v223, %v1135
  %v1137 = vpop.f32.mrf.mxu0
  %v1138 = vadd.f32 %v223, %v1137
  %1139 = vmatmul.bf16.gmra.mxu0 %v797
  %v1140 = vpop.f32.mrf.mxu0
  %v1141 = vadd.f32 %v223, %v1140
  %v1142 = vpop.f32.mrf.mxu0
  %v1143 = vadd.f32 %v223, %v1142
  %1144 = vmatmul.bf16.gmra.mxu0 %v800
  %v1145 = vpop.f32.mrf.mxu0
  %v1146 = vadd.f32 %v223, %v1145
  %v1147 = vpop.f32.mrf.mxu0
  %v1148 = vadd.f32 %v223, %v1147
  %1149 = vmatmul.bf16.gmra.mxu0 %v803
  %v1150 = vpop.f32.mrf.mxu0
  %v1151 = vadd.f32 %v223, %v1150
  %v1152 = vpop.f32.mrf.mxu0
  %v1153 = vadd.f32 %v223, %v1152
  %1154 = vmatmul.bf16.gmra.mxu0 %v806
  %v1155 = vpop.f32.mrf.mxu0
  %v1156 = vadd.f32 %v223, %v1155
  %v1157 = vpop.f32.mrf.mxu0
  %v1158 = vadd.f32 %v223, %v1157
  %1159 = vmatmul.bf16.gmra.mxu0 %v809
  %v1160 = vpop.f32.mrf.mxu0
  %v1161 = vadd.f32 %v223, %v1160
  %v1162 = vpop.f32.mrf.mxu0
  %v1163 = vadd.f32 %v223, %v1162
  %1164 = vmatmul.bf16.gmra.mxu0 %v812
  %v1165 = vpop.f32.mrf.mxu0
  %v1166 = vadd.f32 %v223, %v1165
  %v1167 = vpop.f32.mrf.mxu0
  %v1168 = vadd.f32 %v223, %v1167
  %1169 = vmatmul.bf16.gmra.mxu0 %v815
  %v1170 = vpop.f32.mrf.mxu0
  %v1171 = vadd.f32 %v223, %v1170
  %v1172 = vpop.f32.mrf.mxu0
  %v1173 = vadd.f32 %v223, %v1172
  %1174 = vmatmul.bf16.gmra.mxu0 %v818
  %v1175 = vpop.f32.mrf.mxu0
  %v1176 = vadd.f32 %v223, %v1175
  %v1177 = vpop.f32.mrf.mxu0
  %v1178 = vadd.f32 %v223, %v1177
  %1179 = vmatmul.bf16.gmra.mxu0 %v821
  %v1180 = vpop.f32.mrf.mxu0
  %v1181 = vadd.f32 %v223, %v1180
  %v1182 = vpop.f32.mrf.mxu0
  %v1183 = vadd.f32 %v223, %v1182
  %1184 = vmatmul.bf16.gmra.mxu0 %v824
  %v1185 = vpop.f32.mrf.mxu0
  %v1186 = vadd.f32 %v223, %v1185
  %v1187 = vpop.f32.mrf.mxu0
  %v1188 = vadd.f32 %v223, %v1187
  %1189 = vmatmul.bf16.gmra.mxu0 %v827
  %v1190 = vpop.f32.mrf.mxu0
  %v1191 = vadd.f32 %v223, %v1190
  %v1192 = vpop.f32.mrf.mxu0
  %v1193 = vadd.f32 %v223, %v1192
  %1194 = vmatmul.bf16.gmra.mxu0 %v830
  %v1195 = vpop.f32.mrf.mxu0
  %v1196 = vadd.f32 %v223, %v1195
  %v1197 = vpop.f32.mrf.mxu0
  %v1198 = vadd.f32 %v223, %v1197
  %1199 = vmatmul.bf16.gmra.mxu0 %v833
  %v1200 = vpop.f32.mrf.mxu0
  %v1201 = vadd.f32 %v223, %v1200
  %v1202 = vpop.f32.mrf.mxu0
  %v1203 = vadd.f32 %v223, %v1202
  %1204 = vmatmul.bf16.gmra.mxu0 %v836
  %v1205 = vpop.f32.mrf.mxu0
  %v1206 = vadd.f32 %v223, %v1205
  %v1207 = vpop.f32.mrf.mxu0
  %v1208 = vadd.f32 %v223, %v1207
  %1209 = vmatmul.bf16.gmra.mxu0 %v839
  %v1210 = vpop.f32.mrf.mxu0
  %v1211 = vadd.f32 %v223, %v1210
  %v1212 = vpop.f32.mrf.mxu0
  %v1213 = vadd.f32 %v223, %v1212
  %1214 = vmatmul.bf16.gmra.mxu0 %v842
  %v1215 = vpop.f32.mrf.mxu0
  %v1216 = vadd.f32 %v223, %v1215
  %v1217 = vpop.f32.mrf.mxu0
  %v1218 = vadd.f32 %v223, %v1217
  %1219 = vmatmul.bf16.gmra.mxu0 %v845
  %v1220 = vpop.f32.mrf.mxu0
  %v1221 = vadd.f32 %v223, %v1220
  %v1222 = vpop.f32.mrf.mxu0
  %v1223 = vadd.f32 %v223, %v1222
  %1224 = vmatmul.bf16.gmra.mxu0 %v848
  %v1225 = vpop.f32.mrf.mxu0
  %v1226 = vadd.f32 %v223, %v1225
  %v1227 = vpop.f32.mrf.mxu0
  %v1228 = vadd.f32 %v223, %v1227
  %1229 = vmatmul.bf16.gmra.mxu0 %v851
  %v1230 = vpop.f32.mrf.mxu0
  %v1231 = vadd.f32 %v223, %v1230
  %v1232 = vpop.f32.mrf.mxu0
  %v1233 = vadd.f32 %v223, %v1232
  %1234 = vmatmul.bf16.gmra.mxu0 %v854
  %v1235 = vpop.f32.mrf.mxu0
  %v1236 = vadd.f32 %v223, %v1235
  %v1237 = vpop.f32.mrf.mxu0
  %v1238 = vadd.f32 %v223, %v1237
  %1239 = vmatmul.bf16.gmra.mxu0 %v857
  %v1240 = vpop.f32.mrf.mxu0
  %v1241 = vadd.f32 %v223, %v1240
  %v1242 = vpop.f32.mrf.mxu0
  %v1243 = vadd.f32 %v223, %v1242
  %1244 = vmatmul.bf16.gmra.mxu0 %v860
  %v1245 = vpop.f32.mrf.mxu0
  %v1246 = vadd.f32 %v223, %v1245
  %v1247 = vpop.f32.mrf.mxu0
  %v1248 = vadd.f32 %v223, %v1247
  %1249 = vmatmul.bf16.gmra.mxu0 %v863
  %v1250 = vpop.f32.mrf.mxu0
  %v1251 = vadd.f32 %v223, %v1250
  %v1252 = vpop.f32.mrf.mxu0
  %v1253 = vadd.f32 %v223, %v1252
  %1254 = vmatmul.bf16.gmra.mxu0 %v866
  %v1255 = vpop.f32.mrf.mxu0
  %v1256 = vadd.f32 %v223, %v1255
  %v1257 = vpop.f32.mrf.mxu0
  %v1258 = vadd.f32 %v223, %v1257
  %1259 = vmatmul.bf16.gmra.mxu0 %v869
  %v1260 = vpop.f32.mrf.mxu0
  %v1261 = vadd.f32 %v223, %v1260
  %v1262 = vpop.f32.mrf.mxu0
  %v1263 = vadd.f32 %v223, %v1262
  %1264 = vmatmul.bf16.gmra.mxu0 %v872
  %v1265 = vpop.f32.mrf.mxu0
  %v1266 = vadd.f32 %v223, %v1265
  %v1267 = vpop.f32.mrf.mxu0
  %v1268 = vadd.f32 %v223, %v1267
  %1269 = vmatmul.bf16.gmra.mxu0 %v875
  %v1270 = vpop.f32.mrf.mxu0
  %v1271 = vadd.f32 %v223, %v1270
  %v1272 = vpop.f32.mrf.mxu0
  %v1273 = vadd.f32 %v223, %v1272
  %1274 = vmatmul.bf16.gmra.mxu0 %v878
  %v1275 = vpop.f32.mrf.mxu0
  %v1276 = vadd.f32 %v223, %v1275
  %v1277 = vpop.f32.mrf.mxu0
  %v1278 = vadd.f32 %v223, %v1277
  %1279 = vmatmul.bf16.gmra.mxu0 %v881
  %v1280 = vpop.f32.mrf.mxu0
  %v1281 = vadd.f32 %v223, %v1280
  %v1282 = vpop.f32.mrf.mxu0
  %v1283 = vadd.f32 %v223, %v1282
  %1284 = vmatmul.bf16.gmra.mxu0 %v884
  %v1285 = vpop.f32.mrf.mxu0
  %v1286 = vadd.f32 %v223, %v1285
  %v1287 = vpop.f32.mrf.mxu0
  %v1288 = vadd.f32 %v223, %v1287
  %1289 = vmatmul.bf16.gmra.mxu0 %v887
  %v1290 = vpop.f32.mrf.mxu0
  %v1291 = vadd.f32 %v223, %v1290
  %v1292 = vpop.f32.mrf.mxu0
  %v1293 = vadd.f32 %v223, %v1292
  %1294 = vmatmul.bf16.gmra.mxu0 %v890
  %v1295 = vpop.f32.mrf.mxu0
  %v1296 = vadd.f32 %v223, %v1295
  %v1297 = vpop.f32.mrf.mxu0
  %v1298 = vadd.f32 %v223, %v1297
  %1299 = vmatmul.bf16.gmra.mxu0 %v893
  %v1300 = vpop.f32.mrf.mxu0
  %v1301 = vadd.f32 %v223, %v1300
  %v1302 = vpop.f32.mrf.mxu0
  %v1303 = vadd.f32 %v223, %v1302
  %1304 = vmatmul.bf16.gmra.mxu0 %v896
  %v1305 = vpop.f32.mrf.mxu0
  %v1306 = vadd.f32 %v223, %v1305
  %v1307 = vpop.f32.mrf.mxu0
  %v1308 = vadd.f32 %v223, %v1307
  %1309 = vmatmul.bf16.gmra.mxu0 %v899
  %v1310 = vpop.f32.mrf.mxu0
  %v1311 = vadd.f32 %v223, %v1310
  %v1312 = vpop.f32.mrf.mxu0
  %v1313 = vadd.f32 %v223, %v1312
  %1314 = vmatmul.bf16.gmra.mxu0 %v902
  %v1315 = vpop.f32.mrf.mxu0
  %v1316 = vadd.f32 %v223, %v1315
  %v1317 = vpop.f32.mrf.mxu0
  %v1318 = vadd.f32 %v223, %v1317
  %1319 = vmatmul.bf16.gmra.mxu0 %v905
  %v1320 = vpop.f32.mrf.mxu0
  %v1321 = vadd.f32 %v223, %v1320
  %v1322 = vpop.f32.mrf.mxu0
  %v1323 = vadd.f32 %v223, %v1322
  %1324 = vmatmul.bf16.gmra.mxu0 %v908
  %v1325 = vpop.f32.mrf.mxu0
  %v1326 = vadd.f32 %v223, %v1325
  %v1327 = vpop.f32.mrf.mxu0
  %v1328 = vadd.f32 %v223, %v1327
  %1329 = vmatmul.bf16.gmra.mxu0 %v911
  %v1330 = vpop.f32.mrf.mxu0
  %v1331 = vadd.f32 %v223, %v1330
  %v1332 = vpop.f32.mrf.mxu0
  %v1333 = vadd.f32 %v223, %v1332
  %1334 = vmatmul.bf16.gmra.mxu0 %v914
  %v1335 = vpop.f32.mrf.mxu0
  %v1336 = vadd.f32 %v223, %v1335
  %v1337 = vpop.f32.mrf.mxu0
  %v1338 = vadd.f32 %v223, %v1337
  %1339 = vmatmul.bf16.gmra.mxu0 %v917
  %v1340 = vpop.f32.mrf.mxu0
  %v1341 = vadd.f32 %v223, %v1340
  %v1342 = vpop.f32.mrf.mxu0
  %v1343 = vadd.f32 %v223, %v1342
  %1344 = vmatmul.bf16.gmra.mxu0 %v920
  %v1345 = vpop.f32.mrf.mxu0
  %v1346 = vadd.f32 %v223, %v1345
  %v1347 = vpop.f32.mrf.mxu0
  %v1348 = vadd.f32 %v223, %v1347
  %1349 = vmatmul.bf16.gmra.mxu0 %v923
  %v1350 = vpop.f32.mrf.mxu0
  %v1351 = vadd.f32 %v223, %v1350
  %v1352 = vpop.f32.mrf.mxu0
  %v1353 = vadd.f32 %v223, %v1352
  %1354 = vmatmul.bf16.gmra.mxu0 %v926
  %v1355 = vpop.f32.mrf.mxu0
  %v1356 = vadd.f32 %v223, %v1355
  %v1357 = vpop.f32.mrf.mxu0
  %v1358 = vadd.f32 %v223, %v1357
  %1359 = vmatmul.bf16.gmra.mxu0 %v929
  %v1360 = vpop.f32.mrf.mxu0
  %v1361 = vadd.f32 %v223, %v1360
  %v1362 = vpop.f32.mrf.mxu0
  %v1363 = vadd.f32 %v223, %v1362
  %1364 = vmatmul.bf16.gmra.mxu0 %v932
  %v1365 = vpop.f32.mrf.mxu0
  %v1366 = vadd.f32 %v223, %v1365
  %v1367 = vpop.f32.mrf.mxu0
  %v1368 = vadd.f32 %v223, %v1367
  %1369 = vmatmul.bf16.gmra.mxu0 %v935
  %v1370 = vpop.f32.mrf.mxu0
  %v1371 = vadd.f32 %v223, %v1370
  %v1372 = vpop.f32.mrf.mxu0
  %v1373 = vadd.f32 %v223, %v1372
  %1374 = vmatmul.bf16.gmra.mxu0 %v938
  %v1375 = vpop.f32.mrf.mxu0
  %v1376 = vadd.f32 %v223, %v1375
  %v1377 = vpop.f32.mrf.mxu0
  %v1378 = vadd.f32 %v223, %v1377
  %1379 = vmatmul.bf16.gmra.mxu0 %v941
  %v1380 = vpop.f32.mrf.mxu0
  %v1381 = vadd.f32 %v223, %v1380
  %v1382 = vpop.f32.mrf.mxu0
  %v1383 = vadd.f32 %v223, %v1382
  %1384 = vmatmul.bf16.gmra.mxu0 %v944
  %v1385 = vpop.f32.mrf.mxu0
  %v1386 = vadd.f32 %v223, %v1385
  %v1387 = vpop.f32.mrf.mxu0
  %v1388 = vadd.f32 %v223, %v1387
  %1389 = vmatmul.bf16.gmra.mxu0 %v947
  %v1390 = vpop.f32.mrf.mxu0
  %v1391 = vadd.f32 %v223, %v1390
  %v1392 = vpop.f32.mrf.mxu0
  %v1393 = vadd.f32 %v223, %v1392
  %1394 = vmatmul.bf16.gmra.mxu0 %v950
  %v1395 = vpop.f32.mrf.mxu0
  %v1396 = vadd.f32 %v223, %v1395
  %v1397 = vpop.f32.mrf.mxu0
  %v1398 = vadd.f32 %v223, %v1397
  %1399 = vmatmul.bf16.gmra.mxu0 %v953
  %v1400 = vpop.f32.mrf.mxu0
  %v1401 = vadd.f32 %v223, %v1400
  %v1402 = vpop.f32.mrf.mxu0
  %v1403 = vadd.f32 %v223, %v1402
  %1404 = vmatmul.bf16.gmra.mxu0 %v956
  %v1405 = vpop.f32.mrf.mxu0
  %v1406 = vadd.f32 %v223, %v1405
  %v1407 = vpop.f32.mrf.mxu0
  %v1408 = vadd.f32 %v223, %v1407
  %1409 = vmatmul.bf16.gmra.mxu0 %v959
  %v1410 = vpop.f32.mrf.mxu0
  %v1411 = vadd.f32 %v223, %v1410
  %v1412 = vpop.f32.mrf.mxu0
  %v1413 = vadd.f32 %v223, %v1412
  %1414 = vmatmul.bf16.gmra.mxu0 %v962
  %v1415 = vpop.f32.mrf.mxu0
  %v1416 = vadd.f32 %v223, %v1415
  %v1417 = vpop.f32.mrf.mxu0
  %v1418 = vadd.f32 %v223, %v1417
  %1419 = vmatmul.bf16.gmra.mxu0 %v965
  %v1420 = vpop.f32.mrf.mxu0
  %v1421 = vadd.f32 %v223, %v1420
  %v1422 = vpop.f32.mrf.mxu0
  %v1423 = vadd.f32 %v223, %v1422
  %1424 = vmatmul.bf16.gmra.mxu0 %v968
  %v1425 = vpop.f32.mrf.mxu0
  %v1426 = vadd.f32 %v223, %v1425
  %v1427 = vpop.f32.mrf.mxu0
  %v1428 = vadd.f32 %v223, %v1427
  %1429 = vmatmul.bf16.gmra.mxu0 %v971
  %v1430 = vpop.f32.mrf.mxu0
  %v1431 = vadd.f32 %v223, %v1430
  %v1432 = vpop.f32.mrf.mxu0
  %v1433 = vadd.f32 %v223, %v1432
  %1434 = vmatmul.bf16.gmra.mxu0 %v974
  %v1435 = vpop.f32.mrf.mxu0
  %v1436 = vadd.f32 %v223, %v1435
  %v1437 = vpop.f32.mrf.mxu0
  %v1438 = vadd.f32 %v223, %v1437
  %1439 = vmatmul.bf16.gmra.mxu0 %v977
  %v1440 = vpop.f32.mrf.mxu0
  %v1441 = vadd.f32 %v223, %v1440
  %v1442 = vpop.f32.mrf.mxu0
  %v1443 = vadd.f32 %v223, %v1442
  %1444 = vmatmul.bf16.gmra.mxu0 %v980
  %v1445 = vpop.f32.mrf.mxu0
  %v1446 = vadd.f32 %v223, %v1445
  %v1447 = vpop.f32.mrf.mxu0
  %v1448 = vadd.f32 %v223, %v1447
  %1449 = vmatmul.bf16.gmra.mxu0 %v983
  %v1450 = vpop.f32.mrf.mxu0
  %v1451 = vadd.f32 %v223, %v1450
  %v1452 = vpop.f32.mrf.mxu0
  %v1453 = vadd.f32 %v223, %v1452
  %1454 = vmatmul.bf16.gmra.mxu0 %v986
  %v1455 = vpop.f32.mrf.mxu0
  %v1456 = vadd.f32 %v223, %v1455
  %v1457 = vpop.f32.mrf.mxu0
  %v1458 = vadd.f32 %v223, %v1457
  %1459 = vmatmul.bf16.gmra.mxu0 %v989
  %v1460 = vpop.f32.mrf.mxu0
  %v1461 = vadd.f32 %v223, %v1460
  %v1462 = vpop.f32.mrf.mxu0
  %v1463 = vadd.f32 %v223, %v1462
  %1464 = vmatmul.bf16.gmra.mxu0 %v992
  %v1465 = vpop.f32.mrf.mxu0
  %v1466 = vadd.f32 %v223, %v1465
  %v1467 = vpop.f32.mrf.mxu0
  %v1468 = vadd.f32 %v223, %v1467
  %1469 = vmatmul.bf16.gmra.mxu0 %v995
  %v1470 = vpop.f32.mrf.mxu0
  %v1471 = vadd.f32 %v223, %v1470
  %v1472 = vpop.f32.mrf.mxu0
  %v1473 = vadd.f32 %v223, %v1472
  %1474 = vmatmul.bf16.gmra.mxu0 %v998
  %v1475 = vpop.f32.mrf.mxu0
  %v1476 = vadd.f32 %v223, %v1475
  %v1477 = vpop.f32.mrf.mxu0
  %v1478 = vadd.f32 %v223, %v1477
  %1479 = vmatmul.bf16.gmra.mxu0 %v1001
  %v1480 = vpop.f32.mrf.mxu0
  %v1481 = vadd.f32 %v223, %v1480
  %v1482 = vpop.f32.mrf.mxu0
  %v1483 = vadd.f32 %v223, %v1482
  %1484 = vmatmul.bf16.gmra.mxu0 %v1004
  %v1485 = vpop.f32.mrf.mxu0
  %v1486 = vadd.f32 %v223, %v1485
  %v1487 = vpop.f32.mrf.mxu0
  %v1488 = vadd.f32 %v223, %v1487
  %1489 = vmatmul.bf16.gmra.mxu0 %v1007
  %v1490 = vpop.f32.mrf.mxu0
  %v1491 = vadd.f32 %v223, %v1490
  %v1492 = vpop.f32.mrf.mxu0
  %v1493 = vadd.f32 %v223, %v1492
  %1494 = vmatmul.bf16.gmra.mxu0 %v1010
  %v1495 = vpop.f32.mrf.mxu0
  %v1496 = vadd.f32 %v223, %v1495
  %v1497 = vpop.f32.mrf.mxu0
  %v1498 = vadd.f32 %v223, %v1497
  %1499 = vmatmul.bf16.gmra.mxu0 %v1013
  %v1500 = vpop.f32.mrf.mxu0
  %v1501 = vadd.f32 %v223, %v1500
  %v1502 = vpop.f32.mrf.mxu0
  %v1503 = vadd.f32 %v223, %v1502
  %1504 = vmatmul.bf16.gmra.mxu0 %v1016
  %v1505 = vpop.f32.mrf.mxu0
  %v1506 = vadd.f32 %v223, %v1505
  %v1507 = vpop.f32.mrf.mxu0
  %v1508 = vadd.f32 %v223, %v1507
  %1509 = vmatmul.bf16.gmra.mxu0 %v1019
  %v1510 = vpop.f32.mrf.mxu0
  %v1511 = vadd.f32 %v223, %v1510
  %v1512 = vpop.f32.mrf.mxu0
  %v1513 = vadd.f32 %v223, %v1512
  %1514 = vmatmul.bf16.gmra.mxu0 %v1022
  %v1515 = vpop.f32.mrf.mxu0
  %v1516 = vadd.f32 %v223, %v1515
  %v1517 = vpop.f32.mrf.mxu0
  %v1518 = vadd.f32 %v223, %v1517
  %1519 = vmatmul.bf16.gmra.mxu0 %v1025
  %v1520 = vpop.f32.mrf.mxu0
  %v1521 = vadd.f32 %v223, %v1520
  %v1522 = vpop.f32.mrf.mxu0
  %v1523 = vadd.f32 %v223, %v1522
  %1524 = vmatmul.bf16.gmra.mxu0 %v1028
  %v1525 = vpop.f32.mrf.mxu0
  %v1526 = vadd.f32 %v223, %v1525
  %v1527 = vpop.f32.mrf.mxu0
  %v1528 = vadd.f32 %v223, %v1527
  %1529 = vmatmul.bf16.gmra.mxu0 %v1031
  %v1530 = vpop.f32.mrf.mxu0
  %v1531 = vadd.f32 %v223, %v1530
  %v1532 = vpop.f32.mrf.mxu0
  %v1533 = vadd.f32 %v223, %v1532
  %1534 = vmatmul.bf16.gmra.mxu0 %v1034
  %v1535 = vpop.f32.mrf.mxu0
  %v1536 = vadd.f32 %v223, %v1535
  %v1537 = vpop.f32.mrf.mxu0
  %v1538 = vadd.f32 %v223, %v1537
  %1539 = vmatmul.bf16.gmra.mxu0 %v1037
  %v1540 = vpop.f32.mrf.mxu0
  %v1541 = vadd.f32 %v223, %v1540
  %v1542 = vpop.f32.mrf.mxu0
  %v1543 = vadd.f32 %v223, %v1542
  %1544 = vdwg.mxu0
  %v1545 = vmax.f32 %v1056, 0.0
  %v1546 = vmax.f32 %v1058, 0.0
  %v1547 = vmax.f32 %v1061, 0.0
  %v1548 = vmax.f32 %v1063, 0.0
  %v1549 = vmax.f32 %v1066, 0.0
  %v1550 = vmax.f32 %v1068, 0.0
  %v1551 = vmax.f32 %v1071, 0.0
  %v1552 = vmax.f32 %v1073, 0.0
  %v1553 = vmax.f32 %v1076, 0.0
  %v1554 = vmax.f32 %v1078, 0.0
  %v1555 = vmax.f32 %v1081, 0.0
  %v1556 = vmax.f32 %v1083, 0.0
  %v1557 = vmax.f32 %v1086, 0.0
  %v1558 = vmax.f32 %v1088, 0.0
  %v1559 = vmax.f32 %v1091, 0.0
  %v1560 = vmax.f32 %v1093, 0.0
  %v1561 = vmax.f32 %v1096, 0.0
  %v1562 = vmax.f32 %v1098, 0.0
  %v1563 = vmax.f32 %v1101, 0.0
  %v1564 = vmax.f32 %v1103, 0.0
  %v1565 = vmax.f32 %v1106, 0.0
  %v1566 = vmax.f32 %v1108, 0.0
  %v1567 = vmax.f32 %v1111, 0.0
  %v1568 = vmax.f32 %v1113, 0.0
  %v1569 = vmax.f32 %v1116, 0.0
  %v1570 = vmax.f32 %v1118, 0.0
  %v1571 = vmax.f32 %v1121, 0.0
  %v1572 = vmax.f32 %v1123, 0.0
  %v1573 = vmax.f32 %v1126, 0.0
  %v1574 = vmax.f32 %v1128, 0.0
  %v1575 = vmax.f32 %v1131, 0.0
  %v1576 = vmax.f32 %v1133, 0.0
  %v1577 = vmax.f32 %v1136, 0.0
  %v1578 = vmax.f32 %v1138, 0.0
  %v1579 = vmax.f32 %v1141, 0.0
  %v1580 = vmax.f32 %v1143, 0.0
  %v1581 = vmax.f32 %v1146, 0.0
  %v1582 = vmax.f32 %v1148, 0.0
  %v1583 = vmax.f32 %v1151, 0.0
  %v1584 = vmax.f32 %v1153, 0.0
  %v1585 = vmax.f32 %v1156, 0.0
  %v1586 = vmax.f32 %v1158, 0.0
  %v1587 = vmax.f32 %v1161, 0.0
  %v1588 = vmax.f32 %v1163, 0.0
  %v1589 = vmax.f32 %v1166, 0.0
  %v1590 = vmax.f32 %v1168, 0.0
  %v1591 = vmax.f32 %v1171, 0.0
  %v1592 = vmax.f32 %v1173, 0.0
  %v1593 = vmax.f32 %v1176, 0.0
  %v1594 = vmax.f32 %v1178, 0.0
  %v1595 = vmax.f32 %v1181, 0.0
  %v1596 = vmax.f32 %v1183, 0.0
  %v1597 = vmax.f32 %v1186, 0.0
  %v1598 = vmax.f32 %v1188, 0.0
  %v1599 = vmax.f32 %v1191, 0.0
  %v1600 = vmax.f32 %v1193, 0.0
  %v1601 = vmax.f32 %v1196, 0.0
  %v1602 = vmax.f32 %v1198, 0.0
  %v1603 = vmax.f32 %v1201, 0.0
  %v1604 = vmax.f32 %v1203, 0.0
  %v1605 = vmax.f32 %v1206, 0.0
  %v1606 = vmax.f32 %v1208, 0.0
  %v1607 = vmax.f32 %v1211, 0.0
  %v1608 = vmax.f32 %v1213, 0.0
  %v1609 = vmax.f32 %v1216, 0.0
  %v1610 = vmax.f32 %v1218, 0.0
  %v1611 = vmax.f32 %v1221, 0.0
  %v1612 = vmax.f32 %v1223, 0.0
  %v1613 = vmax.f32 %v1226, 0.0
  %v1614 = vmax.f32 %v1228, 0.0
  %v1615 = vmax.f32 %v1231, 0.0
  %v1616 = vmax.f32 %v1233, 0.0
  %v1617 = vmax.f32 %v1236, 0.0
  %v1618 = vmax.f32 %v1238, 0.0
  %v1619 = vmax.f32 %v1241, 0.0
  %v1620 = vmax.f32 %v1243, 0.0
  %v1621 = vmax.f32 %v1246, 0.0
  %v1622 = vmax.f32 %v1248, 0.0
  %v1623 = vmax.f32 %v1251, 0.0
  %v1624 = vmax.f32 %v1253, 0.0
  %v1625 = vmax.f32 %v1256, 0.0
  %v1626 = vmax.f32 %v1258, 0.0
  %v1627 = vmax.f32 %v1261, 0.0
  %v1628 = vmax.f32 %v1263, 0.0
  %v1629 = vmax.f32 %v1266, 0.0
  %v1630 = vmax.f32 %v1268, 0.0
  %v1631 = vmax.f32 %v1271, 0.0
  %v1632 = vmax.f32 %v1273, 0.0
  %v1633 = vmax.f32 %v1276, 0.0
  %v1634 = vmax.f32 %v1278, 0.0
  %v1635 = vmax.f32 %v1281, 0.0
  %v1636 = vmax.f32 %v1283, 0.0
  %v1637 = vmax.f32 %v1286, 0.0
  %v1638 = vmax.f32 %v1288, 0.0
  %v1639 = vmax.f32 %v1291, 0.0
  %v1640 = vmax.f32 %v1293, 0.0
  %v1641 = vmax.f32 %v1296, 0.0
  %v1642 = vmax.f32 %v1298, 0.0
  %v1643 = vmax.f32 %v1301, 0.0
  %v1644 = vmax.f32 %v1303, 0.0
  %v1645 = vmax.f32 %v1306, 0.0
  %v1646 = vmax.f32 %v1308, 0.0
  %v1647 = vmax.f32 %v1311, 0.0
  %v1648 = vmax.f32 %v1313, 0.0
  %v1649 = vmax.f32 %v1316, 0.0
  %v1650 = vmax.f32 %v1318, 0.0
  %v1651 = vmax.f32 %v1321, 0.0
  %v1652 = vmax.f32 %v1323, 0.0
  %v1653 = vmax.f32 %v1326, 0.0
  %v1654 = vmax.f32 %v1328, 0.0
  %v1655 = vmax.f32 %v1331, 0.0
  %v1656 = vmax.f32 %v1333, 0.0
  %v1657 = vmax.f32 %v1336, 0.0
  %v1658 = vmax.f32 %v1338, 0.0
  %v1659 = vmax.f32 %v1341, 0.0
  %v1660 = vmax.f32 %v1343, 0.0
  %v1661 = vmax.f32 %v1346, 0.0
  %v1662 = vmax.f32 %v1348, 0.0
  %v1663 = vmax.f32 %v1351, 0.0
  %v1664 = vmax.f32 %v1353, 0.0
  %v1665 = vmax.f32 %v1356, 0.0
  %v1666 = vmax.f32 %v1358, 0.0
  %v1667 = vmax.f32 %v1361, 0.0
  %v1668 = vmax.f32 %v1363, 0.0
  %v1669 = vmax.f32 %v1366, 0.0
  %v1670 = vmax.f32 %v1368, 0.0
  %v1671 = vmax.f32 %v1371, 0.0
  %v1672 = vmax.f32 %v1373, 0.0
  %v1673 = vmax.f32 %v1376, 0.0
  %v1674 = vmax.f32 %v1378, 0.0
  %v1675 = vmax.f32 %v1381, 0.0
  %v1676 = vmax.f32 %v1383, 0.0
  %v1677 = vmax.f32 %v1386, 0.0
  %v1678 = vmax.f32 %v1388, 0.0
  %v1679 = vmax.f32 %v1391, 0.0
  %v1680 = vmax.f32 %v1393, 0.0
  %v1681 = vmax.f32 %v1396, 0.0
  %v1682 = vmax.f32 %v1398, 0.0
  %v1683 = vmax.f32 %v1401, 0.0
  %v1684 = vmax.f32 %v1403, 0.0
  %v1685 = vmax.f32 %v1406, 0.0
  %v1686 = vmax.f32 %v1408, 0.0
  %v1687 = vmax.f32 %v1411, 0.0
  %v1688 = vmax.f32 %v1413, 0.0
  %v1689 = vmax.f32 %v1416, 0.0
  %v1690 = vmax.f32 %v1418, 0.0
  %v1691 = vmax.f32 %v1421, 0.0
  %v1692 = vmax.f32 %v1423, 0.0
  %v1693 = vmax.f32 %v1426, 0.0
  %v1694 = vmax.f32 %v1428, 0.0
  %v1695 = vmax.f32 %v1431, 0.0
  %v1696 = vmax.f32 %v1433, 0.0
  %v1697 = vmax.f32 %v1436, 0.0
  %v1698 = vmax.f32 %v1438, 0.0
  %v1699 = vmax.f32 %v1441, 0.0
  %v1700 = vmax.f32 %v1443, 0.0
  %v1701 = vmax.f32 %v1446, 0.0
  %v1702 = vmax.f32 %v1448, 0.0
  %v1703 = vmax.f32 %v1451, 0.0
  %v1704 = vmax.f32 %v1453, 0.0
  %v1705 = vmax.f32 %v1456, 0.0
  %v1706 = vmax.f32 %v1458, 0.0
  %v1707 = vmax.f32 %v1461, 0.0
  %v1708 = vmax.f32 %v1463, 0.0
  %v1709 = vmax.f32 %v1466, 0.0
  %v1710 = vmax.f32 %v1468, 0.0
  %v1711 = vmax.f32 %v1471, 0.0
  %v1712 = vmax.f32 %v1473, 0.0
  %v1713 = vmax.f32 %v1476, 0.0
  %v1714 = vmax.f32 %v1478, 0.0
  %v1715 = vmax.f32 %v1481, 0.0
  %v1716 = vmax.f32 %v1483, 0.0
  %v1717 = vmax.f32 %v1486, 0.0
  %v1718 = vmax.f32 %v1488, 0.0
  %v1719 = vmax.f32 %v1491, 0.0
  %v1720 = vmax.f32 %v1493, 0.0
  %v1721 = vmax.f32 %v1496, 0.0
  %v1722 = vmax.f32 %v1498, 0.0
  %v1723 = vmax.f32 %v1501, 0.0
  %v1724 = vmax.f32 %v1503, 0.0
  %v1725 = vmax.f32 %v1506, 0.0
  %v1726 = vmax.f32 %v1508, 0.0
  %v1727 = vmax.f32 %v1511, 0.0
  %v1728 = vmax.f32 %v1513, 0.0
  %v1729 = vmax.f32 %v1516, 0.0
  %v1730 = vmax.f32 %v1518, 0.0
  %v1731 = vmax.f32 %v1521, 0.0
  %v1732 = vmax.f32 %v1523, 0.0
  %v1733 = vmax.f32 %v1526, 0.0
  %v1734 = vmax.f32 %v1528, 0.0
  %v1735 = vmax.f32 %v1531, 0.0
  %v1736 = vmax.f32 %v1533, 0.0
  %v1737 = vmax.f32 %v1536, 0.0
  %v1738 = vmax.f32 %v1538, 0.0
  %v1739 = vmax.f32 %v1541, 0.0
  %v1740 = vmax.f32 %v1543, 0.0
  %v1741 = vmax.f32 %v1545, %v1594
  %v1742 = vmax.f32 %v1546, %v1595
  %v1743 = vmax.f32 %v1547, %v1596
  %v1744 = vmax.f32 %v1548, %v1597
  %v1745 = vmax.f32 %v1549, %v1598
  %v1746 = vmax.f32 %v1550, %v1599
  %v1747 = vmax.f32 %v1551, %v1600
  %v1748 = vmax.f32 %v1552, %v1601
  %v1749 = vmax.f32 %v1553, %v1602
  %v1750 = vmax.f32 %v1554, %v1603
  %v1751 = vmax.f32 %v1555, %v1604
  %v1752 = vmax.f32 %v1556, %v1605
  %v1753 = vmax.f32 %v1557, %v1606
  %v1754 = vmax.f32 %v1558, %v1607
  %v1755 = vmax.f32 %v1559, %v1608
  %v1756 = vmax.f32 %v1560, %v1609
  %v1757 = vmax.f32 %v1561, %v1610
  %v1758 = vmax.f32 %v1562, %v1611
  %v1759 = vmax.f32 %v1563, %v1612
  %v1760 = vmax.f32 %v1564, %v1613
  %v1761 = vmax.f32 %v1565, %v1614
  %v1762 = vmax.f32 %v1566, %v1615
  %v1763 = vmax.f32 %v1567, %v1616
  %v1764 = vmax.f32 %v1568, %v1617
  %v1765 = vmax.f32 %v1569, %v1618
  %v1766 = vmax.f32 %v1570, %v1619
  %v1767 = vmax.f32 %v1571, %v1620
  %v1768 = vmax.f32 %v1572, %v1621
  %v1769 = vmax.f32 %v1573, %v1622
  %v1770 = vmax.f32 %v1574, %v1623
  %v1771 = vmax.f32 %v1575, %v1624
  %v1772 = vmax.f32 %v1576, %v1625
  %v1773 = vmax.f32 %v1577, %v1626
  %v1774 = vmax.f32 %v1578, %v1627
  %v1775 = vmax.f32 %v1579, %v1628
  %v1776 = vmax.f32 %v1580, %v1629
  %v1777 = vmax.f32 %v1581, %v1630
  %v1778 = vmax.f32 %v1582, %v1631
  %v1779 = vmax.f32 %v1583, %v1632
  %v1780 = vmax.f32 %v1584, %v1633
  %v1781 = vmax.f32 %v1585, %v1634
  %v1782 = vmax.f32 %v1586, %v1635
  %v1783 = vmax.f32 %v1587, %v1636
  %v1784 = vmax.f32 %v1588, %v1637
  %v1785 = vmax.f32 %v1589, %v1638
  %v1786 = vmax.f32 %v1590, %v1639
  %v1787 = vmax.f32 %v1591, %v1640
  %v1788 = vmax.f32 %v1592, %v1641
  %v1789 = vmax.f32 %v1593, %v1642
  %v1790 = vmax.f32 %v1643, %v1692
  %v1791 = vmax.f32 %v1644, %v1693
  %v1792 = vmax.f32 %v1645, %v1694
  %v1793 = vmax.f32 %v1646, %v1695
  %v1794 = vmax.f32 %v1647, %v1696
  %v1795 = vmax.f32 %v1648, %v1697
  %v1796 = vmax.f32 %v1649, %v1698
  %v1797 = vmax.f32 %v1650, %v1699
  %v1798 = vmax.f32 %v1651, %v1700
  %v1799 = vmax.f32 %v1652, %v1701
  %v1800 = vmax.f32 %v1653, %v1702
  %v1801 = vmax.f32 %v1654, %v1703
  %v1802 = vmax.f32 %v1655, %v1704
  %v1803 = vmax.f32 %v1656, %v1705
  %v1804 = vmax.f32 %v1657, %v1706
  %v1805 = vmax.f32 %v1658, %v1707
  %v1806 = vmax.f32 %v1659, %v1708
  %v1807 = vmax.f32 %v1660, %v1709
  %v1808 = vmax.f32 %v1661, %v1710
  %v1809 = vmax.f32 %v1662, %v1711
  %v1810 = vmax.f32 %v1663, %v1712
  %v1811 = vmax.f32 %v1664, %v1713
  %v1812 = vmax.f32 %v1665, %v1714
  %v1813 = vmax.f32 %v1666, %v1715
  %v1814 = vmax.f32 %v1667, %v1716
  %v1815 = vmax.f32 %v1668, %v1717
  %v1816 = vmax.f32 %v1669, %v1718
  %v1817 = vmax.f32 %v1670, %v1719
  %v1818 = vmax.f32 %v1671, %v1720
  %v1819 = vmax.f32 %v1672, %v1721
  %v1820 = vmax.f32 %v1673, %v1722
  %v1821 = vmax.f32 %v1674, %v1723
  %v1822 = vmax.f32 %v1675, %v1724
  %v1823 = vmax.f32 %v1676, %v1725
  %v1824 = vmax.f32 %v1677, %v1726
  %v1825 = vmax.f32 %v1678, %v1727
  %v1826 = vmax.f32 %v1679, %v1728
  %v1827 = vmax.f32 %v1680, %v1729
  %v1828 = vmax.f32 %v1681, %v1730
  %v1829 = vmax.f32 %v1682, %v1731
  %v1830 = vmax.f32 %v1683, %v1732
  %v1831 = vmax.f32 %v1684, %v1733
  %v1832 = vmax.f32 %v1685, %v1734
  %v1833 = vmax.f32 %v1686, %v1735
  %v1834 = vmax.f32 %v1687, %v1736
  %v1835 = vmax.f32 %v1688, %v1737
  %v1836 = vmax.f32 %v1689, %v1738
  %v1837 = vmax.f32 %v1690, %v1739
  %v1838 = vmax.f32 %v1691, %v1740
  %v1839 = vmax.f32 %v1741, %v1790
  %v1840 = vmax.f32 %v1742, %v1791
  %v1841 = vmax.f32 %v1743, %v1792
  %v1842 = vmax.f32 %v1744, %v1793
  %v1843 = vmax.f32 %v1745, %v1794
  %v1844 = vmax.f32 %v1746, %v1795
  %v1845 = vmax.f32 %v1747, %v1796
  %v1846 = vmax.f32 %v1748, %v1797
  %v1847 = vmax.f32 %v1749, %v1798
  %v1848 = vmax.f32 %v1750, %v1799
  %v1849 = vmax.f32 %v1751, %v1800
  %v1850 = vmax.f32 %v1752, %v1801
  %v1851 = vmax.f32 %v1753, %v1802
  %v1852 = vmax.f32 %v1754, %v1803
  %v1853 = vmax.f32 %v1755, %v1804
  %v1854 = vmax.f32 %v1756, %v1805
  %v1855 = vmax.f32 %v1757, %v1806
  %v1856 = vmax.f32 %v1758, %v1807
  %v1857 = vmax.f32 %v1759, %v1808
  %v1858 = vmax.f32 %v1760, %v1809
  %v1859 = vmax.f32 %v1761, %v1810
  %v1860 = vmax.f32 %v1762, %v1811
  %v1861 = vmax.f32 %v1763, %v1812
  %v1862 = vmax.f32 %v1764, %v1813
  %v1863 = vmax.f32 %v1765, %v1814
  %v1864 = vmax.f32 %v1766, %v1815
  %v1865 = vmax.f32 %v1767, %v1816
  %v1866 = vmax.f32 %v1768, %v1817
  %v1867 = vmax.f32 %v1769, %v1818
  %v1868 = vmax.f32 %v1770, %v1819
  %v1869 = vmax.f32 %v1771, %v1820
  %v1870 = vmax.f32 %v1772, %v1821
  %v1871 = vmax.f32 %v1773, %v1822
  %v1872 = vmax.f32 %v1774, %v1823
  %v1873 = vmax.f32 %v1775, %v1824
  %v1874 = vmax.f32 %v1776, %v1825
  %v1875 = vmax.f32 %v1777, %v1826
  %v1876 = vmax.f32 %v1778, %v1827
  %v1877 = vmax.f32 %v1779, %v1828
  %v1878 = vmax.f32 %v1780, %v1829
  %v1879 = vmax.f32 %v1781, %v1830
  %v1880 = vmax.f32 %v1782, %v1831
  %v1881 = vmax.f32 %v1783, %v1832
  %v1882 = vmax.f32 %v1784, %v1833
  %v1883 = vmax.f32 %v1785, %v1834
  %v1884 = vmax.f32 %v1786, %v1835
  %v1885 = vmax.f32 %v1787, %v1836
  %v1886 = vmax.f32 %v1788, %v1837
  %v1887 = vmax.f32 %v1789, %v1838
  %1888 = vst [vmem:[%s3] sm:$0xff] %v1839
  %1889 = vst [vmem:[%s3 + $0x8] sm:$0xff] %v1840
  %1890 = vst [vmem:[%s3 + $0x10] sm:$0xff] %v1841
  %1891 = vst [vmem:[%s3 + $0x18] sm:$0xff] %v1842
  %1892 = vst [vmem:[%s3 + $0x20] sm:$0xff] %v1843
  %1893 = vst [vmem:[%s3 + $0x28] sm:$0xff] %v1844
  %1894 = vst [vmem:[%s3 + $0x30] sm:$0xff] %v1845
  %1895 = vst [vmem:[%s3 + $0x38] sm:$0xff] %v1846
  %1896 = vst [vmem:[%s3 + $0x40] sm:$0xff] %v1847
  %1897 = vst [vmem:[%s3 + $0x48] sm:$0xff] %v1848
  %1898 = vst [vmem:[%s3 + $0x50] sm:$0xff] %v1849
  %1899 = vst [vmem:[%s3 + $0x58] sm:$0xff] %v1850
  %1900 = vst [vmem:[%s3 + $0x60] sm:$0xff] %v1851
  %1901 = vst [vmem:[%s3 + $0x68] sm:$0xff] %v1852
  %1902 = vst [vmem:[%s3 + $0x70] sm:$0xff] %v1853
  %1903 = vst [vmem:[%s3 + $0x78] sm:$0xff] %v1854
  %1904 = vst [vmem:[%s3 + $0x80] sm:$0xff] %v1855
  %1905 = vst [vmem:[%s3 + $0x88] sm:$0xff] %v1856
  %1906 = vst [vmem:[%s3 + $0x90] sm:$0xff] %v1857
  %1907 = vst [vmem:[%s3 + $0x98] sm:$0xff] %v1858
  %1908 = vst [vmem:[%s3 + $0xa0] sm:$0xff] %v1859
  %1909 = vst [vmem:[%s3 + $0xa8] sm:$0xff] %v1860
  %1910 = vst [vmem:[%s3 + $0xb0] sm:$0xff] %v1861
  %1911 = vst [vmem:[%s3 + $0xb8] sm:$0xff] %v1862
  %1912 = vst [vmem:[%s3 + $0xc0] sm:$0xff] %v1863
  %1913 = vst [vmem:[%s3 + $0xc8] sm:$0xff] %v1864
  %1914 = vst [vmem:[%s3 + $0xd0] sm:$0xff] %v1865
  %1915 = vst [vmem:[%s3 + $0xd8] sm:$0xff] %v1866
  %1916 = vst [vmem:[%s3 + $0xe0] sm:$0xff] %v1867
  %1917 = vst [vmem:[%s3 + $0xe8] sm:$0xff] %v1868
  %1918 = vst [vmem:[%s3 + $0xf0] sm:$0xff] %v1869
  %1919 = vst [vmem:[%s3 + $0xf8] sm:$0xff] %v1870
  %1920 = vst [vmem:[%s3 + $0x100] sm:$0xff] %v1871
  %1921 = vst [vmem:[%s3 + $0x108] sm:$0xff] %v1872
  %1922 = vst [vmem:[%s3 + $0x110] sm:$0xff] %v1873
  %1923 = vst [vmem:[%s3 + $0x118] sm:$0xff] %v1874
  %1924 = vst [vmem:[%s3 + $0x120] sm:$0xff] %v1875
  %1925 = vst [vmem:[%s3 + $0x128] sm:$0xff] %v1876
  %1926 = vst [vmem:[%s3 + $0x130] sm:$0xff] %v1877
  %1927 = vst [vmem:[%s3 + $0x138] sm:$0xff] %v1878
  %1928 = vst [vmem:[%s3 + $0x140] sm:$0xff] %v1879
  %1929 = vst [vmem:[%s3 + $0x148] sm:$0xff] %v1880
  %1930 = vst [vmem:[%s3 + $0x150] sm:$0xff] %v1881
  %1931 = vst [vmem:[%s3 + $0x158] sm:$0xff] %v1882
  %1932 = vst [vmem:[%s3 + $0x160] sm:$0xff] %v1883
  %1933 = vst [vmem:[%s3 + $0x168] sm:$0xff] %v1884
  %1934 = vst [vmem:[%s3 + $0x170] sm:$0xff] %v1885
  %1935 = vst [vmem:[%s3 + $0x178] sm:$0xff] %v1886
  %1936 = vst [vmem:[%s3 + $0x180] sm:$0xff] %v1887
  // Predicated region
  $region14: #{simplenet_forward.2} parent=0 // pred_check
    _
  $region15: #{simplenet_forward.2} parent=0 // pred_check_branch
    %1938 = sbr.rel (0) target = $region17
  $region16: #{simplenet_forward.2} parent=0 // pred_region
    _
  $region17: #{simplenet_forward.2} parent=0 // pred_fallthru
    _
  // Predicated region
  $region18: #{simplenet_forward.2} parent=0 // pred_check
    _
  $region19: #{simplenet_forward.2} parent=0 // pred_check_branch
    %1940 = sbr.rel (0) target = $region21
  $region20: #{simplenet_forward.2} parent=0 // pred_region
    _
  $region21: #{simplenet_forward.2} parent=0 // pred_fallthru
    _

// kernel: simplenet_forward.3
$region0: #{simplenet_forward.3}
  #allocation0 [shape = 'u32[]', space=smem, size = 0x4, offset = 0x4, fixed_abs, tag = 'smem constant byte address 0x4 - core index']
  #allocation1 [shape = 'u32[72,128]{1,0:T(1,128)}', space=vmem, size = 0x9000, scoped, tag = 'internal scratch']
  %s0 = inlined_call_operand.vmem [shape: bf16[200,150], index: 0, kind: input, shape index: {}]
  %s1 = inlined_call_operand.vmem [shape: bf16[150,128], index: 1, kind: input, shape index: {}]
  %s2 = inlined_call_operand.vmem [shape: f32[1,128], index: 2, kind: input, shape index: {}]
  %s3 = inlined_call_operand.vmem [shape: bf16[25,128,128], index: 3, kind: input, shape index: {}]
  %s4 = inlined_call_operand.vmem [shape: f32[1,128], index: 4, kind: input, shape index: {}]
  %s5 = inlined_call_operand.vmem [shape: bf16[128,128], index: 5, kind: input, shape index: {}]
  %s6 = inlined_call_operand.vmem [shape: f32[1,128], index: 6, kind: input, shape index: {}]
  %s7 = inlined_call_operand.vmem [shape: bf16[128,128], index: 7, kind: input, shape index: {}]
  %s8 = inlined_call_operand.vmem [shape: f32[1,128], index: 8, kind: input, shape index: {}]
  %s9 = inlined_call_operand.hbm [shape: f32[2,128], index: 9, kind: output, shape index: {}]
  %s10 = sld [smem:[#allocation0]]
  $region46: #{simplenet_forward.3} parent=0
    _
  %s12 = ssub.s32 1, %s10
  %s13 = scalar_select 0, %s12, %s10
  $region1: #{simplenet_forward.3} parent=0
    #allocation2 [shape = 'u8[1024]{0}', space=vmem, size = 0x400, scoped, tag = 'output window, operand 0, single buffered']
    #allocation3 [shape = 's32[1]{0}', space=sflag, size = 0x4, scoped, tag = 'scoped memory for simplenet_forward.3']
    %14 = vsyncpa [#allocation3], 0
    // Predicated region
    $region2: #{simplenet_forward.3} parent=1 // pred_check
      _
    $region3: #{simplenet_forward.3} parent=1 // pred_check_branch
      %16 = sbr.rel (0) target = $region5
    $region4: #{simplenet_forward.3} parent=1 // pred_region
      _
    $region5: #{simplenet_forward.3} parent=1 // pred_fallthru
      _
    // Predicated region
    $region6: #{simplenet_forward.3} parent=1 // pred_check
      _
    $region7: #{simplenet_forward.3} parent=1 // pred_check_branch
      %18 = sbr.rel (0) target = $region9
    $region8: #{simplenet_forward.3} parent=1 // pred_region
      _
    $region9: #{simplenet_forward.3} parent=1 // pred_fallthru
      _
    // Predicated region
    $region10: #{simplenet_forward.3} parent=1 // pred_check
      _
    $region11: #{simplenet_forward.3} parent=1 // pred_check_branch
      %20 = sbr.rel (0) target = $region13
    $region12: #{simplenet_forward.3} parent=1 // pred_region
      _
    $region13: #{simplenet_forward.3} parent=1 // pred_fallthru
      _
    // Predicated region
    $region14: #{simplenet_forward.3} parent=1 // pred_check
      _
    $region15: #{simplenet_forward.3} parent=1 // pred_check_branch
      %22 = sbr.rel (0) target = $region17
    $region16: #{simplenet_forward.3} parent=1 // pred_region
      _
    $region17: #{simplenet_forward.3} parent=1 // pred_fallthru
      _
    // Predicated region
    $region18: #{simplenet_forward.3} parent=1 // pred_check
      _
    $region19: #{simplenet_forward.3} parent=1 // pred_check_branch
      %24 = sbr.rel (0) target = $region21
    $region20: #{simplenet_forward.3} parent=1 // pred_region
      _
    $region21: #{simplenet_forward.3} parent=1 // pred_fallthru
      _
    // Predicated region
    $region22: #{simplenet_forward.3} parent=1 // pred_check
      _
    $region23: #{simplenet_forward.3} parent=1 // pred_check_branch
      %26 = sbr.rel (0) target = $region25
    $region24: #{simplenet_forward.3} parent=1 // pred_region
      _
    $region25: #{simplenet_forward.3} parent=1 // pred_fallthru
      _
    // Predicated region
    $region26: #{simplenet_forward.3} parent=1 // pred_check
      _
    $region27: #{simplenet_forward.3} parent=1 // pred_check_branch
      %28 = sbr.rel (0) target = $region29
    $region28: #{simplenet_forward.3} parent=1 // pred_region
      _
    $region29: #{simplenet_forward.3} parent=1 // pred_fallthru
      _
    // Predicated region
    $region30: #{simplenet_forward.3} parent=1 // pred_check
      _
    $region31: #{simplenet_forward.3} parent=1 // pred_check_branch
      %30 = sbr.rel (0) target = $region33
    $region32: #{simplenet_forward.3} parent=1 // pred_region
      _
    $region33: #{simplenet_forward.3} parent=1 // pred_fallthru
      _
    // Predicated region
    $region34: #{simplenet_forward.3} parent=1 // pred_check
      _
    $region35: #{simplenet_forward.3} parent=1 // pred_check_branch
      %32 = sbr.rel (0) target = $region37
    $region36: #{simplenet_forward.3} parent=1 // pred_region
      _
    $region37: #{simplenet_forward.3} parent=1 // pred_fallthru
      _
    %v34 = vld [vmem:[%s0] sm:$0xff]
    %v35 = vld [vmem:[%s0 + $0x8] sm:$0xff]
    %v36 = vld [vmem:[%s0 + $0x10] sm:$0xff]
    %v37 = vld [vmem:[%s0 + $0x18] sm:$0xff]
    %v38 = vld [vmem:[%s0 + $0x20] sm:$0xff]
    %v39 = vld [vmem:[%s0 + $0x28] sm:$0xff]
    %v40 = vld [vmem:[%s0 + $0x30] sm:$0xff]
    %v41 = vld [vmem:[%s0 + $0x38] sm:$0xff]
    %v42 = vld [vmem:[%s0 + $0x40] sm:$0xff]
    %v43 = vld [vmem:[%s0 + $0x48] sm:$0xff]
    %v44 = vld [vmem:[%s0 + $0x50] sm:$0xff]
    %v45 = vld [vmem:[%s0 + $0x58] sm:$0xff]
    %v46 = vld [vmem:[%s0 + $0x60] sm:$0xff]
    %v47 = vld [vmem:[%s0 + $0x68] sm:$0xff]
    %v48 = vld [vmem:[%s0 + $0x70] sm:$0xff]
    %v49 = vld [vmem:[%s0 + $0x78] sm:$0xff]
    %v50 = vld [vmem:[%s0 + $0x80] sm:$0xff]
    %v51 = vld [vmem:[%s0 + $0x88] sm:$0xff]
    %v52 = vld [vmem:[%s0 + $0x90] sm:$0xff]
    %v53 = vld [vmem:[%s0 + $0x98] sm:$0xff]
    %v54 = vld [vmem:[%s0 + $0xa0] sm:$0xff]
    %v55 = vld [vmem:[%s0 + $0xa8] sm:$0xff]
    %v56 = vld [vmem:[%s0 + $0xb0] sm:$0xff]
    %v57 = vld [vmem:[%s0 + $0xb8] sm:$0xff]
    %v58 = vld [vmem:[%s0 + $0xc0] sm:$0xff]
    %v59 = vld [vmem:[%s1] sm:$0xf]
    %v60 = vld [vmem:[%s1 + $0x4] sm:$0xf]
    %v61 = vld [vmem:[%s1 + $0x8] sm:$0xf]
    %v62 = vld [vmem:[%s1 + $0xc] sm:$0xf]
    %v63 = vld [vmem:[%s1 + $0x10] sm:$0xf]
    %v64 = vld [vmem:[%s1 + $0x14] sm:$0xf]
    %v65 = vld [vmem:[%s1 + $0x18] sm:$0xf]
    %v66 = vld [vmem:[%s1 + $0x1c] sm:$0xf]
    %v67 = vld [vmem:[%s1 + $0x20] sm:$0xf]
    %v68 = vld [vmem:[%s1 + $0x24] sm:$0xf]
    %v69 = vld [vmem:[%s1 + $0x28] sm:$0xf]
    %v70 = vld [vmem:[%s1 + $0x2c] sm:$0xf]
    %v71 = vld [vmem:[%s1 + $0x30] sm:$0xf]
    %v72 = vld [vmem:[%s1 + $0x34] sm:$0xf]
    %v73 = vld [vmem:[%s1 + $0x38] sm:$0xf]
    %v74 = vld [vmem:[%s1 + $0x3c] sm:$0xf]
    %v75 = vld [vmem:[%s1 + $0x40] sm:$0xf]
    %v76 = vld [vmem:[%s1 + $0x44] sm:$0xf]
    %v77 = vld [vmem:[%s1 + $0x48] sm:$0x7]
    %v78 = vld [vmem:[%s2] sm:$0x1]
    %v80 = vperm.slane %v78, 0
    %v107 = vunpack.c.l.b16 %v34
    %v108 = vunpack.c.h.b16 %v34
    %v109 = vunpack.c.l.b16 %v35
    %v110 = vunpack.c.h.b16 %v35
    %v111 = vunpack.c.l.b16 %v36
    %v112 = vunpack.c.h.b16 %v36
    %v113 = vunpack.c.l.b16 %v37
    %v114 = vunpack.c.h.b16 %v37
    %v115 = vunpack.c.l.b16 %v38
    %v116 = vunpack.c.h.b16 %v38
    %v117 = vunpack.c.l.b16 %v39
    %v118 = vunpack.c.h.b16 %v39
    %v119 = vunpack.c.l.b16 %v40
    %v120 = vunpack.c.h.b16 %v40
    %v121 = vunpack.c.l.b16 %v41
    %v122 = vunpack.c.h.b16 %v41
    %v123 = vunpack.c.l.b16 %v42
    %v124 = vunpack.c.h.b16 %v42
    %v125 = vunpack.c.l.b16 %v43
    %v126 = vunpack.c.h.b16 %v43
    %v127 = vunpack.c.l.b16 %v44
    %v128 = vunpack.c.h.b16 %v44
    %v129 = vunpack.c.l.b16 %v45
    %v130 = vunpack.c.h.b16 %v45
    %v131 = vunpack.c.l.b16 %v46
    %v132 = vunpack.c.h.b16 %v46
    %v133 = vunpack.c.l.b16 %v47
    %v134 = vunpack.c.h.b16 %v47
    %v135 = vunpack.c.l.b16 %v48
    %v136 = vunpack.c.h.b16 %v48
    %v137 = vunpack.c.l.b16 %v49
    %v138 = vunpack.c.h.b16 %v49
    %v139 = vunpack.c.l.b16 %v50
    %v140 = vunpack.c.h.b16 %v50
    %v141 = vunpack.c.l.b16 %v51
    %v142 = vunpack.c.h.b16 %v51
    %v143 = vunpack.c.l.b16 %v52
    %v144 = vunpack.c.h.b16 %v52
    %v145 = vunpack.c.l.b16 %v53
    %v146 = vunpack.c.h.b16 %v53
    %v147 = vunpack.c.l.b16 %v54
    %v148 = vunpack.c.h.b16 %v54
    %v149 = vunpack.c.l.b16 %v55
    %v150 = vunpack.c.h.b16 %v55
    %v151 = vunpack.c.l.b16 %v56
    %v152 = vunpack.c.h.b16 %v56
    %v153 = vunpack.c.l.b16 %v57
    %v154 = vunpack.c.h.b16 %v57
    %v155 = vunpack.c.l.b16 %v58
    %v156 = vunpack.c.h.b16 %v58
    %v157 = vpack.c.b16 %v109, %v107
    %v158 = vpack.c.b16 %v110, %v108
    %v159 = vpack.c.b16 %v113, %v111
    %v160 = vpack.c.b16 %v114, %v112
    %v161 = vpack.c.b16 %v117, %v115
    %v162 = vpack.c.b16 %v118, %v116
    %v163 = vpack.c.b16 %v121, %v119
    %v164 = vpack.c.b16 %v122, %v120
    %v165 = vpack.c.b16 %v125, %v123
    %v166 = vpack.c.b16 %v126, %v124
    %v167 = vpack.c.b16 %v129, %v127
    %v168 = vpack.c.b16 %v130, %v128
    %v169 = vpack.c.b16 %v133, %v131
    %v170 = vpack.c.b16 %v134, %v132
    %v171 = vpack.c.b16 %v137, %v135
    %v172 = vpack.c.b16 %v138, %v136
    %v173 = vpack.c.b16 %v141, %v139
    %v174 = vpack.c.b16 %v142, %v140
    %v175 = vpack.c.b16 %v145, %v143
    %v176 = vpack.c.b16 %v146, %v144
    %v177 = vpack.c.b16 %v149, %v147
    %v178 = vpack.c.b16 %v150, %v148
    %v179 = vpack.c.b16 %v153, %v151
    %v180 = vpack.c.b16 %v154, %v152
    %v181 = vpack.c.b16 %v155, %v155
    %v182 = vpack.c.b16 %v156, %v156
    %v215 = vunpack.c.l.b16 %v59
    %v216 = vunpack.c.l.b16 %v60
    %v217 = vunpack.c.l.b16 %v61
    %v218 = vunpack.c.l.b16 %v62
    %v219 = vunpack.c.l.b16 %v63
    %v220 = vunpack.c.l.b16 %v64
    %v221 = vunpack.c.l.b16 %v65
    %v222 = vunpack.c.l.b16 %v66
    %v223 = vunpack.c.l.b16 %v67
    %v224 = vunpack.c.l.b16 %v68
    %v225 = vunpack.c.l.b16 %v69
    %v226 = vunpack.c.l.b16 %v70
    %v227 = vunpack.c.l.b16 %v71
    %v228 = vunpack.c.l.b16 %v72
    %v229 = vunpack.c.l.b16 %v73
    %v230 = vunpack.c.l.b16 %v74
    %v231 = vunpack.c.l.b16 %v75
    %v232 = vunpack.c.l.b16 %v76
    %v233 = vunpack.c.l.b16 %v77
    %v234 = vpack.c.b16 %v216, %v215
    %v235 = vpack.c.b16 %v218, %v217
    %v236 = vpack.c.b16 %v220, %v219
    %v237 = vpack.c.b16 %v222, %v221
    %v238 = vpack.c.b16 %v224, %v223
    %v239 = vpack.c.b16 %v226, %v225
    %v240 = vpack.c.b16 %v228, %v227
    %v241 = vpack.c.b16 %v230, %v229
    %v242 = vpack.c.b16 %v232, %v231
    %v243 = vpack.c.b16 %v233, %v233
    %vm253 = vcmask 179200
    %v255 = vsel %vm253, %v158, 0
    %v258 = vsel %vm253, %v160, 0
    %v261 = vsel %vm253, %v162, 0
    %v264 = vsel %vm253, %v164, 0
    %v267 = vsel %vm253, %v166, 0
    %v270 = vsel %vm253, %v168, 0
    %v273 = vsel %vm253, %v170, 0
    %v276 = vsel %vm253, %v172, 0
    %v279 = vsel %vm253, %v174, 0
    %v282 = vsel %vm253, %v176, 0
    %v285 = vsel %vm253, %v178, 0
    %v288 = vsel %vm253, %v180, 0
    %v291 = vsel %vm253, %v182, 0
    %vm293 = vcmask 1042432
    %v295 = vsel %vm293, %v243, 0
    %297 = vmatpush.bf16.msra.mxu0 %v241
    %298 = vmatpush.bf16.msra.mxu0 %v240
    %299 = vmatpush.bf16.msra.mxu0 %v239
    %300 = vmatpush.bf16.msra.mxu0 %v238
    %301 = vmatpush.bf16.msra.mxu0 %v237
    %302 = vmatpush.bf16.msra.mxu0 %v236
    %303 = vmatpush.bf16.msra.mxu0 %v235
    %304 = vmatpush.bf16.msra.mxu0 %v234
    %305 = vmatmul.bf16.gmra.mxu0 %v157
    %v306 = vpop.f32.mrf.mxu0
    %v307 = vadd.f32 %v80, %v306
    %v308 = vpop.f32.mrf.mxu0
    %v309 = vadd.f32 %v80, %v308
    %310 = vmatmul.bf16.gmra.mxu0 %v159
    %v311 = vpop.f32.mrf.mxu0
    %v312 = vadd.f32 %v80, %v311
    %v313 = vpop.f32.mrf.mxu0
    %v314 = vadd.f32 %v80, %v313
    %315 = vmatmul.bf16.gmra.mxu0 %v161
    %v316 = vpop.f32.mrf.mxu0
    %v317 = vadd.f32 %v80, %v316
    %v318 = vpop.f32.mrf.mxu0
    %v319 = vadd.f32 %v80, %v318
    %320 = vmatmul.bf16.gmra.mxu0 %v163
    %v321 = vpop.f32.mrf.mxu0
    %v322 = vadd.f32 %v80, %v321
    %v323 = vpop.f32.mrf.mxu0
    %v324 = vadd.f32 %v80, %v323
    %325 = vmatmul.bf16.gmra.mxu0 %v165
    %v326 = vpop.f32.mrf.mxu0
    %v327 = vadd.f32 %v80, %v326
    %v328 = vpop.f32.mrf.mxu0
    %v329 = vadd.f32 %v80, %v328
    %330 = vmatmul.bf16.gmra.mxu0 %v167
    %v331 = vpop.f32.mrf.mxu0
    %v332 = vadd.f32 %v80, %v331
    %v333 = vpop.f32.mrf.mxu0
    %v334 = vadd.f32 %v80, %v333
    %335 = vmatmul.bf16.gmra.mxu0 %v169
    %v336 = vpop.f32.mrf.mxu0
    %v337 = vadd.f32 %v80, %v336
    %v338 = vpop.f32.mrf.mxu0
    %v339 = vadd.f32 %v80, %v338
    %340 = vmatmul.bf16.gmra.mxu0 %v171
    %v341 = vpop.f32.mrf.mxu0
    %v342 = vadd.f32 %v80, %v341
    %v343 = vpop.f32.mrf.mxu0
    %v344 = vadd.f32 %v80, %v343
    %345 = vmatmul.bf16.gmra.mxu0 %v173
    %v346 = vpop.f32.mrf.mxu0
    %v347 = vadd.f32 %v80, %v346
    %v348 = vpop.f32.mrf.mxu0
    %v349 = vadd.f32 %v80, %v348
    %350 = vmatmul.bf16.gmra.mxu0 %v175
    %v351 = vpop.f32.mrf.mxu0
    %v352 = vadd.f32 %v80, %v351
    %v353 = vpop.f32.mrf.mxu0
    %v354 = vadd.f32 %v80, %v353
    %355 = vmatmul.bf16.gmra.mxu0 %v177
    %v356 = vpop.f32.mrf.mxu0
    %v357 = vadd.f32 %v80, %v356
    %v358 = vpop.f32.mrf.mxu0
    %v359 = vadd.f32 %v80, %v358
    %360 = vmatmul.bf16.gmra.mxu0 %v179
    %v361 = vpop.f32.mrf.mxu0
    %v362 = vadd.f32 %v80, %v361
    %v363 = vpop.f32.mrf.mxu0
    %v364 = vadd.f32 %v80, %v363
    %365 = vmatmul.bf16.gmra.mxu0 %v181
    %v366 = vpop.f32.mrf.mxu0
    %v367 = vadd.f32 %v80, %v366
    %v368 = vpop.f32.mrf.mxu0
    %369 = vdwg.mxu0
    %370 = vmatpush.bf16.msra.mxu0 0
    %371 = vmatpush.bf16.msra.mxu0 0
    %372 = vmatpush.bf16.msra.mxu0 0
    %373 = vmatpush.bf16.msra.mxu0 0
    %374 = vmatpush.bf16.msra.mxu0 0
    %375 = vmatpush.bf16.msra.mxu0 0
    %376 = vmatpush.bf16.msra.mxu0 %v295
    %377 = vmatpush.bf16.msra.mxu0 %v242
    %378 = vmatmul.bf16.gmra.mxu0 %v255
    %v379 = vpop.f32.mrf.mxu0
    %v380 = vadd.f32 %v307, %v379
    %v381 = vpop.f32.mrf.mxu0
    %v382 = vadd.f32 %v309, %v381
    %383 = vmatmul.bf16.gmra.mxu0 %v258
    %v384 = vpop.f32.mrf.mxu0
    %v385 = vadd.f32 %v312, %v384
    %v386 = vpop.f32.mrf.mxu0
    %v387 = vadd.f32 %v314, %v386
    %388 = vmatmul.bf16.gmra.mxu0 %v261
    %v389 = vpop.f32.mrf.mxu0
    %v390 = vadd.f32 %v317, %v389
    %v391 = vpop.f32.mrf.mxu0
    %v392 = vadd.f32 %v319, %v391
    %393 = vmatmul.bf16.gmra.mxu0 %v264
    %v394 = vpop.f32.mrf.mxu0
    %v395 = vadd.f32 %v322, %v394
    %v396 = vpop.f32.mrf.mxu0
    %v397 = vadd.f32 %v324, %v396
    %398 = vmatmul.bf16.gmra.mxu0 %v267
    %v399 = vpop.f32.mrf.mxu0
    %v400 = vadd.f32 %v327, %v399
    %v401 = vpop.f32.mrf.mxu0
    %v402 = vadd.f32 %v329, %v401
    %403 = vmatmul.bf16.gmra.mxu0 %v270
    %v404 = vpop.f32.mrf.mxu0
    %v405 = vadd.f32 %v332, %v404
    %v406 = vpop.f32.mrf.mxu0
    %v407 = vadd.f32 %v334, %v406
    %408 = vmatmul.bf16.gmra.mxu0 %v273
    %v409 = vpop.f32.mrf.mxu0
    %v410 = vadd.f32 %v337, %v409
    %v411 = vpop.f32.mrf.mxu0
    %v412 = vadd.f32 %v339, %v411
    %413 = vmatmul.bf16.gmra.mxu0 %v276
    %v414 = vpop.f32.mrf.mxu0
    %v415 = vadd.f32 %v342, %v414
    %v416 = vpop.f32.mrf.mxu0
    %v417 = vadd.f32 %v344, %v416
    %418 = vmatmul.bf16.gmra.mxu0 %v279
    %v419 = vpop.f32.mrf.mxu0
    %v420 = vadd.f32 %v347, %v419
    %v421 = vpop.f32.mrf.mxu0
    %v422 = vadd.f32 %v349, %v421
    %423 = vmatmul.bf16.gmra.mxu0 %v282
    %v424 = vpop.f32.mrf.mxu0
    %v425 = vadd.f32 %v352, %v424
    %v426 = vpop.f32.mrf.mxu0
    %v427 = vadd.f32 %v354, %v426
    %428 = vmatmul.bf16.gmra.mxu0 %v285
    %v429 = vpop.f32.mrf.mxu0
    %v430 = vadd.f32 %v357, %v429
    %v431 = vpop.f32.mrf.mxu0
    %v432 = vadd.f32 %v359, %v431
    %433 = vmatmul.bf16.gmra.mxu0 %v288
    %v434 = vpop.f32.mrf.mxu0
    %v435 = vadd.f32 %v362, %v434
    %v436 = vpop.f32.mrf.mxu0
    %v437 = vadd.f32 %v364, %v436
    %438 = vmatmul.bf16.gmra.mxu0 %v291
    %v439 = vpop.f32.mrf.mxu0
    %v440 = vadd.f32 %v367, %v439
    %v441 = vpop.f32.mrf.mxu0
    %442 = vdwg.mxu0
    %v443 = vmax.f32 %v380, 0.0
    %v444 = vmax.f32 %v382, 0.0
    %v445 = vmax.f32 %v385, 0.0
    %v446 = vmax.f32 %v387, 0.0
    %v447 = vmax.f32 %v390, 0.0
    %v448 = vmax.f32 %v392, 0.0
    %v449 = vmax.f32 %v395, 0.0
    %v450 = vmax.f32 %v397, 0.0
    %v451 = vmax.f32 %v400, 0.0
    %v452 = vmax.f32 %v402, 0.0
    %v453 = vmax.f32 %v405, 0.0
    %v454 = vmax.f32 %v407, 0.0
    %v455 = vmax.f32 %v410, 0.0
    %v456 = vmax.f32 %v412, 0.0
    %v457 = vmax.f32 %v415, 0.0
    %v458 = vmax.f32 %v417, 0.0
    %v459 = vmax.f32 %v420, 0.0
    %v460 = vmax.f32 %v422, 0.0
    %v461 = vmax.f32 %v425, 0.0
    %v462 = vmax.f32 %v427, 0.0
    %v463 = vmax.f32 %v430, 0.0
    %v464 = vmax.f32 %v432, 0.0
    %v465 = vmax.f32 %v435, 0.0
    %v466 = vmax.f32 %v437, 0.0
    %v467 = vmax.f32 %v440, 0.0
    %vm475 = vcmask 1045504
    %v476 = vrot.slane %v449, 2
    %v477 = vrot.slane %v450, 2
    %v478 = vsel %vm475, %v476, %v477
    %v479 = vrot.slane %v451, 2
    %v480 = vsel %vm475, %v477, %v479
    %v481 = vrot.slane %v452, 2
    %v482 = vsel %vm475, %v479, %v481
    %v483 = vrot.slane %v453, 2
    %v484 = vsel %vm475, %v481, %v483
    %v485 = vrot.slane %v454, 2
    %v486 = vsel %vm475, %v483, %v485
    %v487 = vrot.slane %v455, 2
    %v488 = vsel %vm475, %v485, %v487
    %v496 = vmax.f32 %v443, %v478
    %v497 = vmax.f32 %v444, %v480
    %v498 = vmax.f32 %v445, %v482
    %v499 = vmax.f32 %v446, %v484
    %v500 = vmax.f32 %v447, %v486
    %v501 = vmax.f32 %v448, %v488
    %v502 = vmax.f32 %v449, %v487
    %v510 = vrot.slane %v461, 2
    %v511 = vrot.slane %v462, 2
    %v512 = vsel %vm475, %v510, %v511
    %v513 = vrot.slane %v463, 2
    %v514 = vsel %vm475, %v511, %v513
    %v515 = vrot.slane %v464, 2
    %v516 = vsel %vm475, %v513, %v515
    %v517 = vrot.slane %v465, 2
    %v518 = vsel %vm475, %v515, %v517
    %v519 = vrot.slane %v466, 2
    %v520 = vsel %vm475, %v517, %v519
    %v521 = vrot.slane %v467, 2
    %v522 = vsel %vm475, %v519, %v521
    %v530 = vmax.f32 %v455, %v512
    %v531 = vmax.f32 %v456, %v514
    %v532 = vmax.f32 %v457, %v516
    %v533 = vmax.f32 %v458, %v518
    %v534 = vmax.f32 %v459, %v520
    %v535 = vmax.f32 %v460, %v522
    %v536 = vmax.f32 %v461, %v521
    %vm544 = vcmask 1043456
    %v545 = vrot.slane %v530, 4
    %v546 = vrot.slane %v531, 4
    %v547 = vsel %vm544, %v545, %v546
    %v548 = vrot.slane %v532, 4
    %v549 = vsel %vm544, %v546, %v548
    %v550 = vrot.slane %v533, 4
    %v551 = vsel %vm544, %v548, %v550
    %v552 = vrot.slane %v534, 4
    %v553 = vsel %vm544, %v550, %v552
    %v554 = vrot.slane %v535, 4
    %v555 = vsel %vm544, %v552, %v554
    %v556 = vrot.slane %v536, 4
    %v557 = vsel %vm544, %v554, %v556
    %v565 = vmax.f32 %v496, %v547
    %v566 = vmax.f32 %v497, %v549
    %v567 = vmax.f32 %v498, %v551
    %v568 = vmax.f32 %v499, %v553
    %v569 = vmax.f32 %v500, %v555
    %v570 = vmax.f32 %v501, %v557
    %v571 = vmax.f32 %v502, %v556
    %v572 = vpack.c.bf16 %v565, %v565
    %v573 = vld [vmem:[%s3] sm:$0xf]
    %v574 = vld [vmem:[%s3 + $0x4] sm:$0xf]
    %v575 = vld [vmem:[%s3 + $0x8] sm:$0xf]
    %v576 = vld [vmem:[%s3 + $0xc] sm:$0xf]
    %v577 = vld [vmem:[%s3 + $0x10] sm:$0xf]
    %v578 = vld [vmem:[%s3 + $0x14] sm:$0xf]
    %v579 = vld [vmem:[%s3 + $0x18] sm:$0xf]
    %v580 = vld [vmem:[%s3 + $0x1c] sm:$0xf]
    %v581 = vld [vmem:[%s3 + $0x20] sm:$0xf]
    %v582 = vld [vmem:[%s3 + $0x24] sm:$0xf]
    %v583 = vld [vmem:[%s3 + $0x28] sm:$0xf]
    %v584 = vld [vmem:[%s3 + $0x2c] sm:$0xf]
    %v585 = vld [vmem:[%s3 + $0x30] sm:$0xf]
    %v586 = vld [vmem:[%s3 + $0x34] sm:$0xf]
    %v587 = vld [vmem:[%s3 + $0x38] sm:$0xf]
    %v588 = vld [vmem:[%s3 + $0x3c] sm:$0xf]
    %s589 = scalar_lea.vmem %s3, 64
    %v590 = vld [vmem:[%s589] sm:$0xf]
    %v591 = vld [vmem:[%s589 + $0x4] sm:$0xf]
    %v592 = vld [vmem:[%s589 + $0x8] sm:$0xf]
    %v593 = vld [vmem:[%s589 + $0xc] sm:$0xf]
    %v594 = vld [vmem:[%s589 + $0x10] sm:$0xf]
    %v595 = vld [vmem:[%s589 + $0x14] sm:$0xf]
    %v596 = vld [vmem:[%s589 + $0x18] sm:$0xf]
    %v597 = vld [vmem:[%s589 + $0x1c] sm:$0xf]
    %v598 = vld [vmem:[%s589 + $0x20] sm:$0xf]
    %v599 = vld [vmem:[%s589 + $0x24] sm:$0xf]
    %v600 = vld [vmem:[%s589 + $0x28] sm:$0xf]
    %v601 = vld [vmem:[%s589 + $0x2c] sm:$0xf]
    %v602 = vld [vmem:[%s589 + $0x30] sm:$0xf]
    %v603 = vld [vmem:[%s589 + $0x34] sm:$0xf]
    %v604 = vld [vmem:[%s589 + $0x38] sm:$0xf]
    %v605 = vld [vmem:[%s589 + $0x3c] sm:$0xf]
    %v607 = vrot.slane %v572, 1
    %v625 = vunpack.c.l.b16 %v590
    %v626 = vunpack.c.l.b16 %v591
    %v627 = vunpack.c.l.b16 %v592
    %v628 = vunpack.c.l.b16 %v593
    %v629 = vunpack.c.l.b16 %v594
    %v630 = vunpack.c.l.b16 %v595
    %v631 = vunpack.c.l.b16 %v596
    %v632 = vunpack.c.l.b16 %v597
    %v633 = vunpack.c.l.b16 %v598
    %v634 = vunpack.c.l.b16 %v599
    %v635 = vunpack.c.l.b16 %v600
    %v636 = vunpack.c.l.b16 %v601
    %v637 = vunpack.c.l.b16 %v602
    %v638 = vunpack.c.l.b16 %v603
    %v639 = vunpack.c.l.b16 %v604
    %v640 = vunpack.c.l.b16 %v605
    %v641 = vpack.c.b16 %v626, %v625
    %v642 = vpack.c.b16 %v628, %v627
    %v643 = vpack.c.b16 %v630, %v629
    %v644 = vpack.c.b16 %v632, %v631
    %v645 = vpack.c.b16 %v634, %v633
    %v646 = vpack.c.b16 %v636, %v635
    %v647 = vpack.c.b16 %v638, %v637
    %v648 = vpack.c.b16 %v640, %v639
    %657 = vmatpush.bf16.msra.mxu0 %v648
    %658 = vmatpush.bf16.msra.mxu0 %v647
    %659 = vmatpush.bf16.msra.mxu0 %v646
    %660 = vmatpush.bf16.msra.mxu0 %v645
    %661 = vmatpush.bf16.msra.mxu0 %v644
    %662 = vmatpush.bf16.msra.mxu0 %v643
    %663 = vmatpush.bf16.msra.mxu0 %v642
    %664 = vmatpush.bf16.msra.mxu0 %v641
    %665 = vmatmul.bf16.gmra.mxu0 %v607
    %v666 = vpop.f32.mrf.mxu0
    %v667 = vadd.f32 0.0, %v666
    %v668 = vpop.f32.mrf.mxu0
    %669 = vdwg.mxu0
    %v686 = vunpack.c.l.b16 %v573
    %v687 = vunpack.c.l.b16 %v574
    %v688 = vunpack.c.l.b16 %v575
    %v689 = vunpack.c.l.b16 %v576
    %v690 = vunpack.c.l.b16 %v577
    %v691 = vunpack.c.l.b16 %v578
    %v692 = vunpack.c.l.b16 %v579
    %v693 = vunpack.c.l.b16 %v580
    %v694 = vunpack.c.l.b16 %v581
    %v695 = vunpack.c.l.b16 %v582
    %v696 = vunpack.c.l.b16 %v583
    %v697 = vunpack.c.l.b16 %v584
    %v698 = vunpack.c.l.b16 %v585
    %v699 = vunpack.c.l.b16 %v586
    %v700 = vunpack.c.l.b16 %v587
    %v701 = vunpack.c.l.b16 %v588
    %v702 = vpack.c.b16 %v687, %v686
    %v703 = vpack.c.b16 %v689, %v688
    %v704 = vpack.c.b16 %v691, %v690
    %v705 = vpack.c.b16 %v693, %v692
    %v706 = vpack.c.b16 %v695, %v694
    %v707 = vpack.c.b16 %v697, %v696
    %v708 = vpack.c.b16 %v699, %v698
    %v709 = vpack.c.b16 %v701, %v700
    %718 = vmatpush.bf16.msra.mxu0 %v709
    %719 = vmatpush.bf16.msra.mxu0 %v708
    %720 = vmatpush.bf16.msra.mxu0 %v707
    %721 = vmatpush.bf16.msra.mxu0 %v706
    %722 = vmatpush.bf16.msra.mxu0 %v705
    %723 = vmatpush.bf16.msra.mxu0 %v704
    %724 = vmatpush.bf16.msra.mxu0 %v703
    %725 = vmatpush.bf16.msra.mxu0 %v702
    %726 = vmatmul.bf16.gmra.mxu0 %v572
    %v727 = vpop.f32.mrf.mxu0
    %v728 = vadd.f32 %v667, %v727
    %v729 = vpop.f32.mrf.mxu0
    %730 = vdwg.mxu0
    %s731 = scalar_lea.vmem %s3, 128
    %v732 = vld [vmem:[%s731] sm:$0xf]
    %v733 = vld [vmem:[%s731 + $0x4] sm:$0xf]
    %v734 = vld [vmem:[%s731 + $0x8] sm:$0xf]
    %v735 = vld [vmem:[%s731 + $0xc] sm:$0xf]
    %v736 = vld [vmem:[%s731 + $0x10] sm:$0xf]
    %v737 = vld [vmem:[%s731 + $0x14] sm:$0xf]
    %v738 = vld [vmem:[%s731 + $0x18] sm:$0xf]
    %v739 = vld [vmem:[%s731 + $0x1c] sm:$0xf]
    %v740 = vld [vmem:[%s731 + $0x20] sm:$0xf]
    %v741 = vld [vmem:[%s731 + $0x24] sm:$0xf]
    %v742 = vld [vmem:[%s731 + $0x28] sm:$0xf]
    %v743 = vld [vmem:[%s731 + $0x2c] sm:$0xf]
    %v744 = vld [vmem:[%s731 + $0x30] sm:$0xf]
    %v745 = vld [vmem:[%s731 + $0x34] sm:$0xf]
    %v746 = vld [vmem:[%s731 + $0x38] sm:$0xf]
    %v747 = vld [vmem:[%s731 + $0x3c] sm:$0xf]
    %v748 = vrot.slane %v572, 2
    %v766 = vunpack.c.l.b16 %v732
    %v767 = vunpack.c.l.b16 %v733
    %v768 = vunpack.c.l.b16 %v734
    %v769 = vunpack.c.l.b16 %v735
    %v770 = vunpack.c.l.b16 %v736
    %v771 = vunpack.c.l.b16 %v737
    %v772 = vunpack.c.l.b16 %v738
    %v773 = vunpack.c.l.b16 %v739
    %v774 = vunpack.c.l.b16 %v740
    %v775 = vunpack.c.l.b16 %v741
    %v776 = vunpack.c.l.b16 %v742
    %v777 = vunpack.c.l.b16 %v743
    %v778 = vunpack.c.l.b16 %v744
    %v779 = vunpack.c.l.b16 %v745
    %v780 = vunpack.c.l.b16 %v746
    %v781 = vunpack.c.l.b16 %v747
    %v782 = vpack.c.b16 %v767, %v766
    %v783 = vpack.c.b16 %v769, %v768
    %v784 = vpack.c.b16 %v771, %v770
    %v785 = vpack.c.b16 %v773, %v772
    %v786 = vpack.c.b16 %v775, %v774
    %v787 = vpack.c.b16 %v777, %v776
    %v788 = vpack.c.b16 %v779, %v778
    %v789 = vpack.c.b16 %v781, %v780
    %798 = vmatpush.bf16.msra.mxu0 %v789
    %799 = vmatpush.bf16.msra.mxu0 %v788
    %800 = vmatpush.bf16.msra.mxu0 %v787
    %801 = vmatpush.bf16.msra.mxu0 %v786
    %802 = vmatpush.bf16.msra.mxu0 %v785
    %803 = vmatpush.bf16.msra.mxu0 %v784
    %804 = vmatpush.bf16.msra.mxu0 %v783
    %805 = vmatpush.bf16.msra.mxu0 %v782
    %806 = vmatmul.bf16.gmra.mxu0 %v748
    %v807 = vpop.f32.mrf.mxu0
    %v808 = vadd.f32 0.0, %v807
    %v809 = vpop.f32.mrf.mxu0
    %810 = vdwg.mxu0
    %v811 = vadd.f32 %v728, %v808
    %s812 = scalar_lea.vmem %s3, 192
    %v813 = vld [vmem:[%s812] sm:$0xf]
    %v814 = vld [vmem:[%s812 + $0x4] sm:$0xf]
    %v815 = vld [vmem:[%s812 + $0x8] sm:$0xf]
    %v816 = vld [vmem:[%s812 + $0xc] sm:$0xf]
    %v817 = vld [vmem:[%s812 + $0x10] sm:$0xf]
    %v818 = vld [vmem:[%s812 + $0x14] sm:$0xf]
    %v819 = vld [vmem:[%s812 + $0x18] sm:$0xf]
    %v820 = vld [vmem:[%s812 + $0x1c] sm:$0xf]
    %v821 = vld [vmem:[%s812 + $0x20] sm:$0xf]
    %v822 = vld [vmem:[%s812 + $0x24] sm:$0xf]
    %v823 = vld [vmem:[%s812 + $0x28] sm:$0xf]
    %v824 = vld [vmem:[%s812 + $0x2c] sm:$0xf]
    %v825 = vld [vmem:[%s812 + $0x30] sm:$0xf]
    %v826 = vld [vmem:[%s812 + $0x34] sm:$0xf]
    %v827 = vld [vmem:[%s812 + $0x38] sm:$0xf]
    %v828 = vld [vmem:[%s812 + $0x3c] sm:$0xf]
    %v829 = vrot.slane %v572, 3
    %v847 = vunpack.c.l.b16 %v813
    %v848 = vunpack.c.l.b16 %v814
    %v849 = vunpack.c.l.b16 %v815
    %v850 = vunpack.c.l.b16 %v816
    %v851 = vunpack.c.l.b16 %v817
    %v852 = vunpack.c.l.b16 %v818
    %v853 = vunpack.c.l.b16 %v819
    %v854 = vunpack.c.l.b16 %v820
    %v855 = vunpack.c.l.b16 %v821
    %v856 = vunpack.c.l.b16 %v822
    %v857 = vunpack.c.l.b16 %v823
    %v858 = vunpack.c.l.b16 %v824
    %v859 = vunpack.c.l.b16 %v825
    %v860 = vunpack.c.l.b16 %v826
    %v861 = vunpack.c.l.b16 %v827
    %v862 = vunpack.c.l.b16 %v828
    %v863 = vpack.c.b16 %v848, %v847
    %v864 = vpack.c.b16 %v850, %v849
    %v865 = vpack.c.b16 %v852, %v851
    %v866 = vpack.c.b16 %v854, %v853
    %v867 = vpack.c.b16 %v856, %v855
    %v868 = vpack.c.b16 %v858, %v857
    %v869 = vpack.c.b16 %v860, %v859
    %v870 = vpack.c.b16 %v862, %v861
    %879 = vmatpush.bf16.msra.mxu0 %v870
    %880 = vmatpush.bf16.msra.mxu0 %v869
    %881 = vmatpush.bf16.msra.mxu0 %v868
    %882 = vmatpush.bf16.msra.mxu0 %v867
    %883 = vmatpush.bf16.msra.mxu0 %v866
    %884 = vmatpush.bf16.msra.mxu0 %v865
    %885 = vmatpush.bf16.msra.mxu0 %v864
    %886 = vmatpush.bf16.msra.mxu0 %v863
    %887 = vmatmul.bf16.gmra.mxu0 %v829
    %v888 = vpop.f32.mrf.mxu0
    %v889 = vadd.f32 0.0, %v888
    %v890 = vpop.f32.mrf.mxu0
    %891 = vdwg.mxu0
    %v892 = vadd.f32 %v811, %v889
    %v893 = vpack.c.bf16 %v566, %v566
    %s894 = scalar_lea.vmem %s3, 256
    %v895 = vld [vmem:[%s894] sm:$0xf]
    %v896 = vld [vmem:[%s894 + $0x4] sm:$0xf]
    %v897 = vld [vmem:[%s894 + $0x8] sm:$0xf]
    %v898 = vld [vmem:[%s894 + $0xc] sm:$0xf]
    %v899 = vld [vmem:[%s894 + $0x10] sm:$0xf]
    %v900 = vld [vmem:[%s894 + $0x14] sm:$0xf]
    %v901 = vld [vmem:[%s894 + $0x18] sm:$0xf]
    %v902 = vld [vmem:[%s894 + $0x1c] sm:$0xf]
    %v903 = vld [vmem:[%s894 + $0x20] sm:$0xf]
    %v904 = vld [vmem:[%s894 + $0x24] sm:$0xf]
    %v905 = vld [vmem:[%s894 + $0x28] sm:$0xf]
    %v906 = vld [vmem:[%s894 + $0x2c] sm:$0xf]
    %v907 = vld [vmem:[%s894 + $0x30] sm:$0xf]
    %v908 = vld [vmem:[%s894 + $0x34] sm:$0xf]
    %v909 = vld [vmem:[%s894 + $0x38] sm:$0xf]
    %v910 = vld [vmem:[%s894 + $0x3c] sm:$0xf]
    %v927 = vunpack.c.l.b16 %v895
    %v928 = vunpack.c.l.b16 %v896
    %v929 = vunpack.c.l.b16 %v897
    %v930 = vunpack.c.l.b16 %v898
    %v931 = vunpack.c.l.b16 %v899
    %v932 = vunpack.c.l.b16 %v900
    %v933 = vunpack.c.l.b16 %v901
    %v934 = vunpack.c.l.b16 %v902
    %v935 = vunpack.c.l.b16 %v903
    %v936 = vunpack.c.l.b16 %v904
    %v937 = vunpack.c.l.b16 %v905
    %v938 = vunpack.c.l.b16 %v906
    %v939 = vunpack.c.l.b16 %v907
    %v940 = vunpack.c.l.b16 %v908
    %v941 = vunpack.c.l.b16 %v909
    %v942 = vunpack.c.l.b16 %v910
    %v943 = vpack.c.b16 %v928, %v927
    %v944 = vpack.c.b16 %v930, %v929
    %v945 = vpack.c.b16 %v932, %v931
    %v946 = vpack.c.b16 %v934, %v933
    %v947 = vpack.c.b16 %v936, %v935
    %v948 = vpack.c.b16 %v938, %v937
    %v949 = vpack.c.b16 %v940, %v939
    %v950 = vpack.c.b16 %v942, %v941
    %959 = vmatpush.bf16.msra.mxu0 %v950
    %960 = vmatpush.bf16.msra.mxu0 %v949
    %961 = vmatpush.bf16.msra.mxu0 %v948
    %962 = vmatpush.bf16.msra.mxu0 %v947
    %963 = vmatpush.bf16.msra.mxu0 %v946
    %964 = vmatpush.bf16.msra.mxu0 %v945
    %965 = vmatpush.bf16.msra.mxu0 %v944
    %966 = vmatpush.bf16.msra.mxu0 %v943
    %967 = vmatmul.bf16.gmra.mxu0 %v893
    %v968 = vpop.f32.mrf.mxu0
    %v969 = vadd.f32 0.0, %v968
    %v970 = vpop.f32.mrf.mxu0
    %971 = vdwg.mxu0
    %v972 = vadd.f32 %v892, %v969
    %s973 = scalar_lea.vmem %s3, 320
    %v974 = vld [vmem:[%s973] sm:$0xf]
    %v975 = vld [vmem:[%s973 + $0x4] sm:$0xf]
    %v976 = vld [vmem:[%s973 + $0x8] sm:$0xf]
    %v977 = vld [vmem:[%s973 + $0xc] sm:$0xf]
    %v978 = vld [vmem:[%s973 + $0x10] sm:$0xf]
    %v979 = vld [vmem:[%s973 + $0x14] sm:$0xf]
    %v980 = vld [vmem:[%s973 + $0x18] sm:$0xf]
    %v981 = vld [vmem:[%s973 + $0x1c] sm:$0xf]
    %v982 = vld [vmem:[%s973 + $0x20] sm:$0xf]
    %v983 = vld [vmem:[%s973 + $0x24] sm:$0xf]
    %v984 = vld [vmem:[%s973 + $0x28] sm:$0xf]
    %v985 = vld [vmem:[%s973 + $0x2c] sm:$0xf]
    %v986 = vld [vmem:[%s973 + $0x30] sm:$0xf]
    %v987 = vld [vmem:[%s973 + $0x34] sm:$0xf]
    %v988 = vld [vmem:[%s973 + $0x38] sm:$0xf]
    %v989 = vld [vmem:[%s973 + $0x3c] sm:$0xf]
    %v991 = vrot.slane %v893, 1
    %v1009 = vunpack.c.l.b16 %v974
    %v1010 = vunpack.c.l.b16 %v975
    %v1011 = vunpack.c.l.b16 %v976
    %v1012 = vunpack.c.l.b16 %v977
    %v1013 = vunpack.c.l.b16 %v978
    %v1014 = vunpack.c.l.b16 %v979
    %v1015 = vunpack.c.l.b16 %v980
    %v1016 = vunpack.c.l.b16 %v981
    %v1017 = vunpack.c.l.b16 %v982
    %v1018 = vunpack.c.l.b16 %v983
    %v1019 = vunpack.c.l.b16 %v984
    %v1020 = vunpack.c.l.b16 %v985
    %v1021 = vunpack.c.l.b16 %v986
    %v1022 = vunpack.c.l.b16 %v987
    %v1023 = vunpack.c.l.b16 %v988
    %v1024 = vunpack.c.l.b16 %v989
    %v1025 = vpack.c.b16 %v1010, %v1009
    %v1026 = vpack.c.b16 %v1012, %v1011
    %v1027 = vpack.c.b16 %v1014, %v1013
    %v1028 = vpack.c.b16 %v1016, %v1015
    %v1029 = vpack.c.b16 %v1018, %v1017
    %v1030 = vpack.c.b16 %v1020, %v1019
    %v1031 = vpack.c.b16 %v1022, %v1021
    %v1032 = vpack.c.b16 %v1024, %v1023
    %1041 = vmatpush.bf16.msra.mxu0 %v1032
    %1042 = vmatpush.bf16.msra.mxu0 %v1031
    %1043 = vmatpush.bf16.msra.mxu0 %v1030
    %1044 = vmatpush.bf16.msra.mxu0 %v1029
    %1045 = vmatpush.bf16.msra.mxu0 %v1028
    %1046 = vmatpush.bf16.msra.mxu0 %v1027
    %1047 = vmatpush.bf16.msra.mxu0 %v1026
    %1048 = vmatpush.bf16.msra.mxu0 %v1025
    %1049 = vmatmul.bf16.gmra.mxu0 %v991
    %v1050 = vpop.f32.mrf.mxu0
    %v1051 = vadd.f32 0.0, %v1050
    %v1052 = vpop.f32.mrf.mxu0
    %1053 = vdwg.mxu0
    %v1054 = vadd.f32 %v972, %v1051
    %s1055 = scalar_lea.vmem %s3, 384
    %v1056 = vld [vmem:[%s1055] sm:$0xf]
    %v1057 = vld [vmem:[%s1055 + $0x4] sm:$0xf]
    %v1058 = vld [vmem:[%s1055 + $0x8] sm:$0xf]
    %v1059 = vld [vmem:[%s1055 + $0xc] sm:$0xf]
    %v1060 = vld [vmem:[%s1055 + $0x10] sm:$0xf]
    %v1061 = vld [vmem:[%s1055 + $0x14] sm:$0xf]
    %v1062 = vld [vmem:[%s1055 + $0x18] sm:$0xf]
    %v1063 = vld [vmem:[%s1055 + $0x1c] sm:$0xf]
    %v1064 = vld [vmem:[%s1055 + $0x20] sm:$0xf]
    %v1065 = vld [vmem:[%s1055 + $0x24] sm:$0xf]
    %v1066 = vld [vmem:[%s1055 + $0x28] sm:$0xf]
    %v1067 = vld [vmem:[%s1055 + $0x2c] sm:$0xf]
    %v1068 = vld [vmem:[%s1055 + $0x30] sm:$0xf]
    %v1069 = vld [vmem:[%s1055 + $0x34] sm:$0xf]
    %v1070 = vld [vmem:[%s1055 + $0x38] sm:$0xf]
    %v1071 = vld [vmem:[%s1055 + $0x3c] sm:$0xf]
    %v1072 = vrot.slane %v893, 2
    %v1090 = vunpack.c.l.b16 %v1056
    %v1091 = vunpack.c.l.b16 %v1057
    %v1092 = vunpack.c.l.b16 %v1058
    %v1093 = vunpack.c.l.b16 %v1059
    %v1094 = vunpack.c.l.b16 %v1060
    %v1095 = vunpack.c.l.b16 %v1061
    %v1096 = vunpack.c.l.b16 %v1062
    %v1097 = vunpack.c.l.b16 %v1063
    %v1098 = vunpack.c.l.b16 %v1064
    %v1099 = vunpack.c.l.b16 %v1065
    %v1100 = vunpack.c.l.b16 %v1066
    %v1101 = vunpack.c.l.b16 %v1067
    %v1102 = vunpack.c.l.b16 %v1068
    %v1103 = vunpack.c.l.b16 %v1069
    %v1104 = vunpack.c.l.b16 %v1070
    %v1105 = vunpack.c.l.b16 %v1071
    %v1106 = vpack.c.b16 %v1091, %v1090
    %v1107 = vpack.c.b16 %v1093, %v1092
    %v1108 = vpack.c.b16 %v1095, %v1094
    %v1109 = vpack.c.b16 %v1097, %v1096
    %v1110 = vpack.c.b16 %v1099, %v1098
    %v1111 = vpack.c.b16 %v1101, %v1100
    %v1112 = vpack.c.b16 %v1103, %v1102
    %v1113 = vpack.c.b16 %v1105, %v1104
    %1122 = vmatpush.bf16.msra.mxu0 %v1113
    %1123 = vmatpush.bf16.msra.mxu0 %v1112
    %1124 = vmatpush.bf16.msra.mxu0 %v1111
    %1125 = vmatpush.bf16.msra.mxu0 %v1110
    %1126 = vmatpush.bf16.msra.mxu0 %v1109
    %1127 = vmatpush.bf16.msra.mxu0 %v1108
    %1128 = vmatpush.bf16.msra.mxu0 %v1107
    %1129 = vmatpush.bf16.msra.mxu0 %v1106
    %1130 = vmatmul.bf16.gmra.mxu0 %v1072
    %v1131 = vpop.f32.mrf.mxu0
    %v1132 = vadd.f32 0.0, %v1131
    %v1133 = vpop.f32.mrf.mxu0
    %1134 = vdwg.mxu0
    %v1135 = vadd.f32 %v1054, %v1132
    %s1136 = scalar_lea.vmem %s3, 448
    %v1137 = vld [vmem:[%s1136] sm:$0xf]
    %v1138 = vld [vmem:[%s1136 + $0x4] sm:$0xf]
    %v1139 = vld [vmem:[%s1136 + $0x8] sm:$0xf]
    %v1140 = vld [vmem:[%s1136 + $0xc] sm:$0xf]
    %v1141 = vld [vmem:[%s1136 + $0x10] sm:$0xf]
    %v1142 = vld [vmem:[%s1136 + $0x14] sm:$0xf]
    %v1143 = vld [vmem:[%s1136 + $0x18] sm:$0xf]
    %v1144 = vld [vmem:[%s1136 + $0x1c] sm:$0xf]
    %v1145 = vld [vmem:[%s1136 + $0x20] sm:$0xf]
    %v1146 = vld [vmem:[%s1136 + $0x24] sm:$0xf]
    %v1147 = vld [vmem:[%s1136 + $0x28] sm:$0xf]
    %v1148 = vld [vmem:[%s1136 + $0x2c] sm:$0xf]
    %v1149 = vld [vmem:[%s1136 + $0x30] sm:$0xf]
    %v1150 = vld [vmem:[%s1136 + $0x34] sm:$0xf]
    %v1151 = vld [vmem:[%s1136 + $0x38] sm:$0xf]
    %v1152 = vld [vmem:[%s1136 + $0x3c] sm:$0xf]
    %v1153 = vrot.slane %v893, 3
    %v1171 = vunpack.c.l.b16 %v1137
    %v1172 = vunpack.c.l.b16 %v1138
    %v1173 = vunpack.c.l.b16 %v1139
    %v1174 = vunpack.c.l.b16 %v1140
    %v1175 = vunpack.c.l.b16 %v1141
    %v1176 = vunpack.c.l.b16 %v1142
    %v1177 = vunpack.c.l.b16 %v1143
    %v1178 = vunpack.c.l.b16 %v1144
    %v1179 = vunpack.c.l.b16 %v1145
    %v1180 = vunpack.c.l.b16 %v1146
    %v1181 = vunpack.c.l.b16 %v1147
    %v1182 = vunpack.c.l.b16 %v1148
    %v1183 = vunpack.c.l.b16 %v1149
    %v1184 = vunpack.c.l.b16 %v1150
    %v1185 = vunpack.c.l.b16 %v1151
    %v1186 = vunpack.c.l.b16 %v1152
    %v1187 = vpack.c.b16 %v1172, %v1171
    %v1188 = vpack.c.b16 %v1174, %v1173
    %v1189 = vpack.c.b16 %v1176, %v1175
    %v1190 = vpack.c.b16 %v1178, %v1177
    %v1191 = vpack.c.b16 %v1180, %v1179
    %v1192 = vpack.c.b16 %v1182, %v1181
    %v1193 = vpack.c.b16 %v1184, %v1183
    %v1194 = vpack.c.b16 %v1186, %v1185
    %1203 = vmatpush.bf16.msra.mxu0 %v1194
    %1204 = vmatpush.bf16.msra.mxu0 %v1193
    %1205 = vmatpush.bf16.msra.mxu0 %v1192
    %1206 = vmatpush.bf16.msra.mxu0 %v1191
    %1207 = vmatpush.bf16.msra.mxu0 %v1190
    %1208 = vmatpush.bf16.msra.mxu0 %v1189
    %1209 = vmatpush.bf16.msra.mxu0 %v1188
    %1210 = vmatpush.bf16.msra.mxu0 %v1187
    %1211 = vmatmul.bf16.gmra.mxu0 %v1153
    %v1212 = vpop.f32.mrf.mxu0
    %v1213 = vadd.f32 0.0, %v1212
    %v1214 = vpop.f32.mrf.mxu0
    %1215 = vdwg.mxu0
    %v1216 = vadd.f32 %v1135, %v1213
    %v1217 = vpack.c.bf16 %v567, %v567
    %s1218 = scalar_lea.vmem %s3, 512
    %v1219 = vld [vmem:[%s1218] sm:$0xf]
    %v1220 = vld [vmem:[%s1218 + $0x4] sm:$0xf]
    %v1221 = vld [vmem:[%s1218 + $0x8] sm:$0xf]
    %v1222 = vld [vmem:[%s1218 + $0xc] sm:$0xf]
    %v1223 = vld [vmem:[%s1218 + $0x10] sm:$0xf]
    %v1224 = vld [vmem:[%s1218 + $0x14] sm:$0xf]
    %v1225 = vld [vmem:[%s1218 + $0x18] sm:$0xf]
    %v1226 = vld [vmem:[%s1218 + $0x1c] sm:$0xf]
    %v1227 = vld [vmem:[%s1218 + $0x20] sm:$0xf]
    %v1228 = vld [vmem:[%s1218 + $0x24] sm:$0xf]
    %v1229 = vld [vmem:[%s1218 + $0x28] sm:$0xf]
    %v1230 = vld [vmem:[%s1218 + $0x2c] sm:$0xf]
    %v1231 = vld [vmem:[%s1218 + $0x30] sm:$0xf]
    %v1232 = vld [vmem:[%s1218 + $0x34] sm:$0xf]
    %v1233 = vld [vmem:[%s1218 + $0x38] sm:$0xf]
    %v1234 = vld [vmem:[%s1218 + $0x3c] sm:$0xf]
    %v1251 = vunpack.c.l.b16 %v1219
    %v1252 = vunpack.c.l.b16 %v1220
    %v1253 = vunpack.c.l.b16 %v1221
    %v1254 = vunpack.c.l.b16 %v1222
    %v1255 = vunpack.c.l.b16 %v1223
    %v1256 = vunpack.c.l.b16 %v1224
    %v1257 = vunpack.c.l.b16 %v1225
    %v1258 = vunpack.c.l.b16 %v1226
    %v1259 = vunpack.c.l.b16 %v1227
    %v1260 = vunpack.c.l.b16 %v1228
    %v1261 = vunpack.c.l.b16 %v1229
    %v1262 = vunpack.c.l.b16 %v1230
    %v1263 = vunpack.c.l.b16 %v1231
    %v1264 = vunpack.c.l.b16 %v1232
    %v1265 = vunpack.c.l.b16 %v1233
    %v1266 = vunpack.c.l.b16 %v1234
    %v1267 = vpack.c.b16 %v1252, %v1251
    %v1268 = vpack.c.b16 %v1254, %v1253
    %v1269 = vpack.c.b16 %v1256, %v1255
    %v1270 = vpack.c.b16 %v1258, %v1257
    %v1271 = vpack.c.b16 %v1260, %v1259
    %v1272 = vpack.c.b16 %v1262, %v1261
    %v1273 = vpack.c.b16 %v1264, %v1263
    %v1274 = vpack.c.b16 %v1266, %v1265
    %1283 = vmatpush.bf16.msra.mxu0 %v1274
    %1284 = vmatpush.bf16.msra.mxu0 %v1273
    %1285 = vmatpush.bf16.msra.mxu0 %v1272
    %1286 = vmatpush.bf16.msra.mxu0 %v1271
    %1287 = vmatpush.bf16.msra.mxu0 %v1270
    %1288 = vmatpush.bf16.msra.mxu0 %v1269
    %1289 = vmatpush.bf16.msra.mxu0 %v1268
    %1290 = vmatpush.bf16.msra.mxu0 %v1267
    %1291 = vmatmul.bf16.gmra.mxu0 %v1217
    %v1292 = vpop.f32.mrf.mxu0
    %v1293 = vadd.f32 0.0, %v1292
    %v1294 = vpop.f32.mrf.mxu0
    %1295 = vdwg.mxu0
    %v1296 = vadd.f32 %v1216, %v1293
    %s1297 = scalar_lea.vmem %s3, 576
    %v1298 = vld [vmem:[%s1297] sm:$0xf]
    %v1299 = vld [vmem:[%s1297 + $0x4] sm:$0xf]
    %v1300 = vld [vmem:[%s1297 + $0x8] sm:$0xf]
    %v1301 = vld [vmem:[%s1297 + $0xc] sm:$0xf]
    %v1302 = vld [vmem:[%s1297 + $0x10] sm:$0xf]
    %v1303 = vld [vmem:[%s1297 + $0x14] sm:$0xf]
    %v1304 = vld [vmem:[%s1297 + $0x18] sm:$0xf]
    %v1305 = vld [vmem:[%s1297 + $0x1c] sm:$0xf]
    %v1306 = vld [vmem:[%s1297 + $0x20] sm:$0xf]
    %v1307 = vld [vmem:[%s1297 + $0x24] sm:$0xf]
    %v1308 = vld [vmem:[%s1297 + $0x28] sm:$0xf]
    %v1309 = vld [vmem:[%s1297 + $0x2c] sm:$0xf]
    %v1310 = vld [vmem:[%s1297 + $0x30] sm:$0xf]
    %v1311 = vld [vmem:[%s1297 + $0x34] sm:$0xf]
    %v1312 = vld [vmem:[%s1297 + $0x38] sm:$0xf]
    %v1313 = vld [vmem:[%s1297 + $0x3c] sm:$0xf]
    %v1315 = vrot.slane %v1217, 1
    %v1333 = vunpack.c.l.b16 %v1298
    %v1334 = vunpack.c.l.b16 %v1299
    %v1335 = vunpack.c.l.b16 %v1300
    %v1336 = vunpack.c.l.b16 %v1301
    %v1337 = vunpack.c.l.b16 %v1302
    %v1338 = vunpack.c.l.b16 %v1303
    %v1339 = vunpack.c.l.b16 %v1304
    %v1340 = vunpack.c.l.b16 %v1305
    %v1341 = vunpack.c.l.b16 %v1306
    %v1342 = vunpack.c.l.b16 %v1307
    %v1343 = vunpack.c.l.b16 %v1308
    %v1344 = vunpack.c.l.b16 %v1309
    %v1345 = vunpack.c.l.b16 %v1310
    %v1346 = vunpack.c.l.b16 %v1311
    %v1347 = vunpack.c.l.b16 %v1312
    %v1348 = vunpack.c.l.b16 %v1313
    %v1349 = vpack.c.b16 %v1334, %v1333
    %v1350 = vpack.c.b16 %v1336, %v1335
    %v1351 = vpack.c.b16 %v1338, %v1337
    %v1352 = vpack.c.b16 %v1340, %v1339
    %v1353 = vpack.c.b16 %v1342, %v1341
    %v1354 = vpack.c.b16 %v1344, %v1343
    %v1355 = vpack.c.b16 %v1346, %v1345
    %v1356 = vpack.c.b16 %v1348, %v1347
    %1365 = vmatpush.bf16.msra.mxu0 %v1356
    %1366 = vmatpush.bf16.msra.mxu0 %v1355
    %1367 = vmatpush.bf16.msra.mxu0 %v1354
    %1368 = vmatpush.bf16.msra.mxu0 %v1353
    %1369 = vmatpush.bf16.msra.mxu0 %v1352
    %1370 = vmatpush.bf16.msra.mxu0 %v1351
    %1371 = vmatpush.bf16.msra.mxu0 %v1350
    %1372 = vmatpush.bf16.msra.mxu0 %v1349
    %1373 = vmatmul.bf16.gmra.mxu0 %v1315
    %v1374 = vpop.f32.mrf.mxu0
    %v1375 = vadd.f32 0.0, %v1374
    %v1376 = vpop.f32.mrf.mxu0
    %1377 = vdwg.mxu0
    %v1378 = vadd.f32 %v1296, %v1375
    %s1379 = scalar_lea.vmem %s3, 640
    %v1380 = vld [vmem:[%s1379] sm:$0xf]
    %v1381 = vld [vmem:[%s1379 + $0x4] sm:$0xf]
    %v1382 = vld [vmem:[%s1379 + $0x8] sm:$0xf]
    %v1383 = vld [vmem:[%s1379 + $0xc] sm:$0xf]
    %v1384 = vld [vmem:[%s1379 + $0x10] sm:$0xf]
    %v1385 = vld [vmem:[%s1379 + $0x14] sm:$0xf]
    %v1386 = vld [vmem:[%s1379 + $0x18] sm:$0xf]
    %v1387 = vld [vmem:[%s1379 + $0x1c] sm:$0xf]
    %v1388 = vld [vmem:[%s1379 + $0x20] sm:$0xf]
    %v1389 = vld [vmem:[%s1379 + $0x24] sm:$0xf]
    %v1390 = vld [vmem:[%s1379 + $0x28] sm:$0xf]
    %v1391 = vld [vmem:[%s1379 + $0x2c] sm:$0xf]
    %v1392 = vld [vmem:[%s1379 + $0x30] sm:$0xf]
    %v1393 = vld [vmem:[%s1379 + $0x34] sm:$0xf]
    %v1394 = vld [vmem:[%s1379 + $0x38] sm:$0xf]
    %v1395 = vld [vmem:[%s1379 + $0x3c] sm:$0xf]
    %v1396 = vrot.slane %v1217, 2
    %v1414 = vunpack.c.l.b16 %v1380
    %v1415 = vunpack.c.l.b16 %v1381
    %v1416 = vunpack.c.l.b16 %v1382
    %v1417 = vunpack.c.l.b16 %v1383
    %v1418 = vunpack.c.l.b16 %v1384
    %v1419 = vunpack.c.l.b16 %v1385
    %v1420 = vunpack.c.l.b16 %v1386
    %v1421 = vunpack.c.l.b16 %v1387
    %v1422 = vunpack.c.l.b16 %v1388
    %v1423 = vunpack.c.l.b16 %v1389
    %v1424 = vunpack.c.l.b16 %v1390
    %v1425 = vunpack.c.l.b16 %v1391
    %v1426 = vunpack.c.l.b16 %v1392
    %v1427 = vunpack.c.l.b16 %v1393
    %v1428 = vunpack.c.l.b16 %v1394
    %v1429 = vunpack.c.l.b16 %v1395
    %v1430 = vpack.c.b16 %v1415, %v1414
    %v1431 = vpack.c.b16 %v1417, %v1416
    %v1432 = vpack.c.b16 %v1419, %v1418
    %v1433 = vpack.c.b16 %v1421, %v1420
    %v1434 = vpack.c.b16 %v1423, %v1422
    %v1435 = vpack.c.b16 %v1425, %v1424
    %v1436 = vpack.c.b16 %v1427, %v1426
    %v1437 = vpack.c.b16 %v1429, %v1428
    %1446 = vmatpush.bf16.msra.mxu0 %v1437
    %1447 = vmatpush.bf16.msra.mxu0 %v1436
    %1448 = vmatpush.bf16.msra.mxu0 %v1435
    %1449 = vmatpush.bf16.msra.mxu0 %v1434
    %1450 = vmatpush.bf16.msra.mxu0 %v1433
    %1451 = vmatpush.bf16.msra.mxu0 %v1432
    %1452 = vmatpush.bf16.msra.mxu0 %v1431
    %1453 = vmatpush.bf16.msra.mxu0 %v1430
    %1454 = vmatmul.bf16.gmra.mxu0 %v1396
    %v1455 = vpop.f32.mrf.mxu0
    %v1456 = vadd.f32 0.0, %v1455
    %v1457 = vpop.f32.mrf.mxu0
    %1458 = vdwg.mxu0
    %v1459 = vadd.f32 %v1378, %v1456
    %s1460 = scalar_lea.vmem %s3, 704
    %v1461 = vld [vmem:[%s1460] sm:$0xf]
    %v1462 = vld [vmem:[%s1460 + $0x4] sm:$0xf]
    %v1463 = vld [vmem:[%s1460 + $0x8] sm:$0xf]
    %v1464 = vld [vmem:[%s1460 + $0xc] sm:$0xf]
    %v1465 = vld [vmem:[%s1460 + $0x10] sm:$0xf]
    %v1466 = vld [vmem:[%s1460 + $0x14] sm:$0xf]
    %v1467 = vld [vmem:[%s1460 + $0x18] sm:$0xf]
    %v1468 = vld [vmem:[%s1460 + $0x1c] sm:$0xf]
    %v1469 = vld [vmem:[%s1460 + $0x20] sm:$0xf]
    %v1470 = vld [vmem:[%s1460 + $0x24] sm:$0xf]
    %v1471 = vld [vmem:[%s1460 + $0x28] sm:$0xf]
    %v1472 = vld [vmem:[%s1460 + $0x2c] sm:$0xf]
    %v1473 = vld [vmem:[%s1460 + $0x30] sm:$0xf]
    %v1474 = vld [vmem:[%s1460 + $0x34] sm:$0xf]
    %v1475 = vld [vmem:[%s1460 + $0x38] sm:$0xf]
    %v1476 = vld [vmem:[%s1460 + $0x3c] sm:$0xf]
    %v1477 = vrot.slane %v1217, 3
    %v1495 = vunpack.c.l.b16 %v1461
    %v1496 = vunpack.c.l.b16 %v1462
    %v1497 = vunpack.c.l.b16 %v1463
    %v1498 = vunpack.c.l.b16 %v1464
    %v1499 = vunpack.c.l.b16 %v1465
    %v1500 = vunpack.c.l.b16 %v1466
    %v1501 = vunpack.c.l.b16 %v1467
    %v1502 = vunpack.c.l.b16 %v1468
    %v1503 = vunpack.c.l.b16 %v1469
    %v1504 = vunpack.c.l.b16 %v1470
    %v1505 = vunpack.c.l.b16 %v1471
    %v1506 = vunpack.c.l.b16 %v1472
    %v1507 = vunpack.c.l.b16 %v1473
    %v1508 = vunpack.c.l.b16 %v1474
    %v1509 = vunpack.c.l.b16 %v1475
    %v1510 = vunpack.c.l.b16 %v1476
    %v1511 = vpack.c.b16 %v1496, %v1495
    %v1512 = vpack.c.b16 %v1498, %v1497
    %v1513 = vpack.c.b16 %v1500, %v1499
    %v1514 = vpack.c.b16 %v1502, %v1501
    %v1515 = vpack.c.b16 %v1504, %v1503
    %v1516 = vpack.c.b16 %v1506, %v1505
    %v1517 = vpack.c.b16 %v1508, %v1507
    %v1518 = vpack.c.b16 %v1510, %v1509
    %1527 = vmatpush.bf16.msra.mxu0 %v1518
    %1528 = vmatpush.bf16.msra.mxu0 %v1517
    %1529 = vmatpush.bf16.msra.mxu0 %v1516
    %1530 = vmatpush.bf16.msra.mxu0 %v1515
    %1531 = vmatpush.bf16.msra.mxu0 %v1514
    %1532 = vmatpush.bf16.msra.mxu0 %v1513
    %1533 = vmatpush.bf16.msra.mxu0 %v1512
    %1534 = vmatpush.bf16.msra.mxu0 %v1511
    %1535 = vmatmul.bf16.gmra.mxu0 %v1477
    %v1536 = vpop.f32.mrf.mxu0
    %v1537 = vadd.f32 0.0, %v1536
    %v1538 = vpop.f32.mrf.mxu0
    %1539 = vdwg.mxu0
    %v1540 = vadd.f32 %v1459, %v1537
    %v1541 = vpack.c.bf16 %v568, %v568
    %s1542 = scalar_lea.vmem %s3, 768
    %v1543 = vld [vmem:[%s1542] sm:$0xf]
    %v1544 = vld [vmem:[%s1542 + $0x4] sm:$0xf]
    %v1545 = vld [vmem:[%s1542 + $0x8] sm:$0xf]
    %v1546 = vld [vmem:[%s1542 + $0xc] sm:$0xf]
    %v1547 = vld [vmem:[%s1542 + $0x10] sm:$0xf]
    %v1548 = vld [vmem:[%s1542 + $0x14] sm:$0xf]
    %v1549 = vld [vmem:[%s1542 + $0x18] sm:$0xf]
    %v1550 = vld [vmem:[%s1542 + $0x1c] sm:$0xf]
    %v1551 = vld [vmem:[%s1542 + $0x20] sm:$0xf]
    %v1552 = vld [vmem:[%s1542 + $0x24] sm:$0xf]
    %v1553 = vld [vmem:[%s1542 + $0x28] sm:$0xf]
    %v1554 = vld [vmem:[%s1542 + $0x2c] sm:$0xf]
    %v1555 = vld [vmem:[%s1542 + $0x30] sm:$0xf]
    %v1556 = vld [vmem:[%s1542 + $0x34] sm:$0xf]
    %v1557 = vld [vmem:[%s1542 + $0x38] sm:$0xf]
    %v1558 = vld [vmem:[%s1542 + $0x3c] sm:$0xf]
    %v1575 = vunpack.c.l.b16 %v1543
    %v1576 = vunpack.c.l.b16 %v1544
    %v1577 = vunpack.c.l.b16 %v1545
    %v1578 = vunpack.c.l.b16 %v1546
    %v1579 = vunpack.c.l.b16 %v1547
    %v1580 = vunpack.c.l.b16 %v1548
    %v1581 = vunpack.c.l.b16 %v1549
    %v1582 = vunpack.c.l.b16 %v1550
    %v1583 = vunpack.c.l.b16 %v1551
    %v1584 = vunpack.c.l.b16 %v1552
    %v1585 = vunpack.c.l.b16 %v1553
    %v1586 = vunpack.c.l.b16 %v1554
    %v1587 = vunpack.c.l.b16 %v1555
    %v1588 = vunpack.c.l.b16 %v1556
    %v1589 = vunpack.c.l.b16 %v1557
    %v1590 = vunpack.c.l.b16 %v1558
    %v1591 = vpack.c.b16 %v1576, %v1575
    %v1592 = vpack.c.b16 %v1578, %v1577
    %v1593 = vpack.c.b16 %v1580, %v1579
    %v1594 = vpack.c.b16 %v1582, %v1581
    %v1595 = vpack.c.b16 %v1584, %v1583
    %v1596 = vpack.c.b16 %v1586, %v1585
    %v1597 = vpack.c.b16 %v1588, %v1587
    %v1598 = vpack.c.b16 %v1590, %v1589
    %1607 = vmatpush.bf16.msra.mxu0 %v1598
    %1608 = vmatpush.bf16.msra.mxu0 %v1597
    %1609 = vmatpush.bf16.msra.mxu0 %v1596
    %1610 = vmatpush.bf16.msra.mxu0 %v1595
    %1611 = vmatpush.bf16.msra.mxu0 %v1594
    %1612 = vmatpush.bf16.msra.mxu0 %v1593
    %1613 = vmatpush.bf16.msra.mxu0 %v1592
    %1614 = vmatpush.bf16.msra.mxu0 %v1591
    %1615 = vmatmul.bf16.gmra.mxu0 %v1541
    %v1616 = vpop.f32.mrf.mxu0
    %v1617 = vadd.f32 0.0, %v1616
    %v1618 = vpop.f32.mrf.mxu0
    %1619 = vdwg.mxu0
    %v1620 = vadd.f32 %v1540, %v1617
    %s1621 = scalar_lea.vmem %s3, 832
    %v1622 = vld [vmem:[%s1621] sm:$0xf]
    %v1623 = vld [vmem:[%s1621 + $0x4] sm:$0xf]
    %v1624 = vld [vmem:[%s1621 + $0x8] sm:$0xf]
    %v1625 = vld [vmem:[%s1621 + $0xc] sm:$0xf]
    %v1626 = vld [vmem:[%s1621 + $0x10] sm:$0xf]
    %v1627 = vld [vmem:[%s1621 + $0x14] sm:$0xf]
    %v1628 = vld [vmem:[%s1621 + $0x18] sm:$0xf]
    %v1629 = vld [vmem:[%s1621 + $0x1c] sm:$0xf]
    %v1630 = vld [vmem:[%s1621 + $0x20] sm:$0xf]
    %v1631 = vld [vmem:[%s1621 + $0x24] sm:$0xf]
    %v1632 = vld [vmem:[%s1621 + $0x28] sm:$0xf]
    %v1633 = vld [vmem:[%s1621 + $0x2c] sm:$0xf]
    %v1634 = vld [vmem:[%s1621 + $0x30] sm:$0xf]
    %v1635 = vld [vmem:[%s1621 + $0x34] sm:$0xf]
    %v1636 = vld [vmem:[%s1621 + $0x38] sm:$0xf]
    %v1637 = vld [vmem:[%s1621 + $0x3c] sm:$0xf]
    %v1639 = vrot.slane %v1541, 1
    %v1657 = vunpack.c.l.b16 %v1622
    %v1658 = vunpack.c.l.b16 %v1623
    %v1659 = vunpack.c.l.b16 %v1624
    %v1660 = vunpack.c.l.b16 %v1625
    %v1661 = vunpack.c.l.b16 %v1626
    %v1662 = vunpack.c.l.b16 %v1627
    %v1663 = vunpack.c.l.b16 %v1628
    %v1664 = vunpack.c.l.b16 %v1629
    %v1665 = vunpack.c.l.b16 %v1630
    %v1666 = vunpack.c.l.b16 %v1631
    %v1667 = vunpack.c.l.b16 %v1632
    %v1668 = vunpack.c.l.b16 %v1633
    %v1669 = vunpack.c.l.b16 %v1634
    %v1670 = vunpack.c.l.b16 %v1635
    %v1671 = vunpack.c.l.b16 %v1636
    %v1672 = vunpack.c.l.b16 %v1637
    %v1673 = vpack.c.b16 %v1658, %v1657
    %v1674 = vpack.c.b16 %v1660, %v1659
    %v1675 = vpack.c.b16 %v1662, %v1661
    %v1676 = vpack.c.b16 %v1664, %v1663
    %v1677 = vpack.c.b16 %v1666, %v1665
    %v1678 = vpack.c.b16 %v1668, %v1667
    %v1679 = vpack.c.b16 %v1670, %v1669
    %v1680 = vpack.c.b16 %v1672, %v1671
    %1689 = vmatpush.bf16.msra.mxu0 %v1680
    %1690 = vmatpush.bf16.msra.mxu0 %v1679
    %1691 = vmatpush.bf16.msra.mxu0 %v1678
    %1692 = vmatpush.bf16.msra.mxu0 %v1677
    %1693 = vmatpush.bf16.msra.mxu0 %v1676
    %1694 = vmatpush.bf16.msra.mxu0 %v1675
    %1695 = vmatpush.bf16.msra.mxu0 %v1674
    %1696 = vmatpush.bf16.msra.mxu0 %v1673
    %1697 = vmatmul.bf16.gmra.mxu0 %v1639
    %v1698 = vpop.f32.mrf.mxu0
    %v1699 = vadd.f32 0.0, %v1698
    %v1700 = vpop.f32.mrf.mxu0
    %1701 = vdwg.mxu0
    %v1702 = vadd.f32 %v1620, %v1699
    %s1703 = scalar_lea.vmem %s3, 896
    %v1704 = vld [vmem:[%s1703] sm:$0xf]
    %v1705 = vld [vmem:[%s1703 + $0x4] sm:$0xf]
    %v1706 = vld [vmem:[%s1703 + $0x8] sm:$0xf]
    %v1707 = vld [vmem:[%s1703 + $0xc] sm:$0xf]
    %v1708 = vld [vmem:[%s1703 + $0x10] sm:$0xf]
    %v1709 = vld [vmem:[%s1703 + $0x14] sm:$0xf]
    %v1710 = vld [vmem:[%s1703 + $0x18] sm:$0xf]
    %v1711 = vld [vmem:[%s1703 + $0x1c] sm:$0xf]
    %v1712 = vld [vmem:[%s1703 + $0x20] sm:$0xf]
    %v1713 = vld [vmem:[%s1703 + $0x24] sm:$0xf]
    %v1714 = vld [vmem:[%s1703 + $0x28] sm:$0xf]
    %v1715 = vld [vmem:[%s1703 + $0x2c] sm:$0xf]
    %v1716 = vld [vmem:[%s1703 + $0x30] sm:$0xf]
    %v1717 = vld [vmem:[%s1703 + $0x34] sm:$0xf]
    %v1718 = vld [vmem:[%s1703 + $0x38] sm:$0xf]
    %v1719 = vld [vmem:[%s1703 + $0x3c] sm:$0xf]
    %v1720 = vrot.slane %v1541, 2
    %v1738 = vunpack.c.l.b16 %v1704
    %v1739 = vunpack.c.l.b16 %v1705
    %v1740 = vunpack.c.l.b16 %v1706
    %v1741 = vunpack.c.l.b16 %v1707
    %v1742 = vunpack.c.l.b16 %v1708
    %v1743 = vunpack.c.l.b16 %v1709
    %v1744 = vunpack.c.l.b16 %v1710
    %v1745 = vunpack.c.l.b16 %v1711
    %v1746 = vunpack.c.l.b16 %v1712
    %v1747 = vunpack.c.l.b16 %v1713
    %v1748 = vunpack.c.l.b16 %v1714
    %v1749 = vunpack.c.l.b16 %v1715
    %v1750 = vunpack.c.l.b16 %v1716
    %v1751 = vunpack.c.l.b16 %v1717
    %v1752 = vunpack.c.l.b16 %v1718
    %v1753 = vunpack.c.l.b16 %v1719
    %v1754 = vpack.c.b16 %v1739, %v1738
    %v1755 = vpack.c.b16 %v1741, %v1740
    %v1756 = vpack.c.b16 %v1743, %v1742
    %v1757 = vpack.c.b16 %v1745, %v1744
    %v1758 = vpack.c.b16 %v1747, %v1746
    %v1759 = vpack.c.b16 %v1749, %v1748
    %v1760 = vpack.c.b16 %v1751, %v1750
    %v1761 = vpack.c.b16 %v1753, %v1752
    %1770 = vmatpush.bf16.msra.mxu0 %v1761
    %1771 = vmatpush.bf16.msra.mxu0 %v1760
    %1772 = vmatpush.bf16.msra.mxu0 %v1759
    %1773 = vmatpush.bf16.msra.mxu0 %v1758
    %1774 = vmatpush.bf16.msra.mxu0 %v1757
    %1775 = vmatpush.bf16.msra.mxu0 %v1756
    %1776 = vmatpush.bf16.msra.mxu0 %v1755
    %1777 = vmatpush.bf16.msra.mxu0 %v1754
    %1778 = vmatmul.bf16.gmra.mxu0 %v1720
    %v1779 = vpop.f32.mrf.mxu0
    %v1780 = vadd.f32 0.0, %v1779
    %v1781 = vpop.f32.mrf.mxu0
    %1782 = vdwg.mxu0
    %v1783 = vadd.f32 %v1702, %v1780
    %s1784 = scalar_lea.vmem %s3, 960
    %v1785 = vld [vmem:[%s1784] sm:$0xf]
    %v1786 = vld [vmem:[%s1784 + $0x4] sm:$0xf]
    %v1787 = vld [vmem:[%s1784 + $0x8] sm:$0xf]
    %v1788 = vld [vmem:[%s1784 + $0xc] sm:$0xf]
    %v1789 = vld [vmem:[%s1784 + $0x10] sm:$0xf]
    %v1790 = vld [vmem:[%s1784 + $0x14] sm:$0xf]
    %v1791 = vld [vmem:[%s1784 + $0x18] sm:$0xf]
    %v1792 = vld [vmem:[%s1784 + $0x1c] sm:$0xf]
    %v1793 = vld [vmem:[%s1784 + $0x20] sm:$0xf]
    %v1794 = vld [vmem:[%s1784 + $0x24] sm:$0xf]
    %v1795 = vld [vmem:[%s1784 + $0x28] sm:$0xf]
    %v1796 = vld [vmem:[%s1784 + $0x2c] sm:$0xf]
    %v1797 = vld [vmem:[%s1784 + $0x30] sm:$0xf]
    %v1798 = vld [vmem:[%s1784 + $0x34] sm:$0xf]
    %v1799 = vld [vmem:[%s1784 + $0x38] sm:$0xf]
    %v1800 = vld [vmem:[%s1784 + $0x3c] sm:$0xf]
    %v1801 = vrot.slane %v1541, 3
    %v1819 = vunpack.c.l.b16 %v1785
    %v1820 = vunpack.c.l.b16 %v1786
    %v1821 = vunpack.c.l.b16 %v1787
    %v1822 = vunpack.c.l.b16 %v1788
    %v1823 = vunpack.c.l.b16 %v1789
    %v1824 = vunpack.c.l.b16 %v1790
    %v1825 = vunpack.c.l.b16 %v1791
    %v1826 = vunpack.c.l.b16 %v1792
    %v1827 = vunpack.c.l.b16 %v1793
    %v1828 = vunpack.c.l.b16 %v1794
    %v1829 = vunpack.c.l.b16 %v1795
    %v1830 = vunpack.c.l.b16 %v1796
    %v1831 = vunpack.c.l.b16 %v1797
    %v1832 = vunpack.c.l.b16 %v1798
    %v1833 = vunpack.c.l.b16 %v1799
    %v1834 = vunpack.c.l.b16 %v1800
    %v1835 = vpack.c.b16 %v1820, %v1819
    %v1836 = vpack.c.b16 %v1822, %v1821
    %v1837 = vpack.c.b16 %v1824, %v1823
    %v1838 = vpack.c.b16 %v1826, %v1825
    %v1839 = vpack.c.b16 %v1828, %v1827
    %v1840 = vpack.c.b16 %v1830, %v1829
    %v1841 = vpack.c.b16 %v1832, %v1831
    %v1842 = vpack.c.b16 %v1834, %v1833
    %1851 = vmatpush.bf16.msra.mxu0 %v1842
    %1852 = vmatpush.bf16.msra.mxu0 %v1841
    %1853 = vmatpush.bf16.msra.mxu0 %v1840
    %1854 = vmatpush.bf16.msra.mxu0 %v1839
    %1855 = vmatpush.bf16.msra.mxu0 %v1838
    %1856 = vmatpush.bf16.msra.mxu0 %v1837
    %1857 = vmatpush.bf16.msra.mxu0 %v1836
    %1858 = vmatpush.bf16.msra.mxu0 %v1835
    %1859 = vmatmul.bf16.gmra.mxu0 %v1801
    %v1860 = vpop.f32.mrf.mxu0
    %v1861 = vadd.f32 0.0, %v1860
    %v1862 = vpop.f32.mrf.mxu0
    %1863 = vdwg.mxu0
    %v1864 = vadd.f32 %v1783, %v1861
    %v1865 = vpack.c.bf16 %v569, %v569
    %s1866 = scalar_lea.vmem %s3, 1024
    %v1867 = vld [vmem:[%s1866] sm:$0xf]
    %v1868 = vld [vmem:[%s1866 + $0x4] sm:$0xf]
    %v1869 = vld [vmem:[%s1866 + $0x8] sm:$0xf]
    %v1870 = vld [vmem:[%s1866 + $0xc] sm:$0xf]
    %v1871 = vld [vmem:[%s1866 + $0x10] sm:$0xf]
    %v1872 = vld [vmem:[%s1866 + $0x14] sm:$0xf]
    %v1873 = vld [vmem:[%s1866 + $0x18] sm:$0xf]
    %v1874 = vld [vmem:[%s1866 + $0x1c] sm:$0xf]
    %v1875 = vld [vmem:[%s1866 + $0x20] sm:$0xf]
    %v1876 = vld [vmem:[%s1866 + $0x24] sm:$0xf]
    %v1877 = vld [vmem:[%s1866 + $0x28] sm:$0xf]
    %v1878 = vld [vmem:[%s1866 + $0x2c] sm:$0xf]
    %v1879 = vld [vmem:[%s1866 + $0x30] sm:$0xf]
    %v1880 = vld [vmem:[%s1866 + $0x34] sm:$0xf]
    %v1881 = vld [vmem:[%s1866 + $0x38] sm:$0xf]
    %v1882 = vld [vmem:[%s1866 + $0x3c] sm:$0xf]
    %v1899 = vunpack.c.l.b16 %v1867
    %v1900 = vunpack.c.l.b16 %v1868
    %v1901 = vunpack.c.l.b16 %v1869
    %v1902 = vunpack.c.l.b16 %v1870
    %v1903 = vunpack.c.l.b16 %v1871
    %v1904 = vunpack.c.l.b16 %v1872
    %v1905 = vunpack.c.l.b16 %v1873
    %v1906 = vunpack.c.l.b16 %v1874
    %v1907 = vunpack.c.l.b16 %v1875
    %v1908 = vunpack.c.l.b16 %v1876
    %v1909 = vunpack.c.l.b16 %v1877
    %v1910 = vunpack.c.l.b16 %v1878
    %v1911 = vunpack.c.l.b16 %v1879
    %v1912 = vunpack.c.l.b16 %v1880
    %v1913 = vunpack.c.l.b16 %v1881
    %v1914 = vunpack.c.l.b16 %v1882
    %v1915 = vpack.c.b16 %v1900, %v1899
    %v1916 = vpack.c.b16 %v1902, %v1901
    %v1917 = vpack.c.b16 %v1904, %v1903
    %v1918 = vpack.c.b16 %v1906, %v1905
    %v1919 = vpack.c.b16 %v1908, %v1907
    %v1920 = vpack.c.b16 %v1910, %v1909
    %v1921 = vpack.c.b16 %v1912, %v1911
    %v1922 = vpack.c.b16 %v1914, %v1913
    %1931 = vmatpush.bf16.msra.mxu0 %v1922
    %1932 = vmatpush.bf16.msra.mxu0 %v1921
    %1933 = vmatpush.bf16.msra.mxu0 %v1920
    %1934 = vmatpush.bf16.msra.mxu0 %v1919
    %1935 = vmatpush.bf16.msra.mxu0 %v1918
    %1936 = vmatpush.bf16.msra.mxu0 %v1917
    %1937 = vmatpush.bf16.msra.mxu0 %v1916
    %1938 = vmatpush.bf16.msra.mxu0 %v1915
    %1939 = vmatmul.bf16.gmra.mxu0 %v1865
    %v1940 = vpop.f32.mrf.mxu0
    %v1941 = vadd.f32 0.0, %v1940
    %v1942 = vpop.f32.mrf.mxu0
    %1943 = vdwg.mxu0
    %v1944 = vadd.f32 %v1864, %v1941
    %s1945 = scalar_lea.vmem %s3, 1088
    %v1946 = vld [vmem:[%s1945] sm:$0xf]
    %v1947 = vld [vmem:[%s1945 + $0x4] sm:$0xf]
    %v1948 = vld [vmem:[%s1945 + $0x8] sm:$0xf]
    %v1949 = vld [vmem:[%s1945 + $0xc] sm:$0xf]
    %v1950 = vld [vmem:[%s1945 + $0x10] sm:$0xf]
    %v1951 = vld [vmem:[%s1945 + $0x14] sm:$0xf]
    %v1952 = vld [vmem:[%s1945 + $0x18] sm:$0xf]
    %v1953 = vld [vmem:[%s1945 + $0x1c] sm:$0xf]
    %v1954 = vld [vmem:[%s1945 + $0x20] sm:$0xf]
    %v1955 = vld [vmem:[%s1945 + $0x24] sm:$0xf]
    %v1956 = vld [vmem:[%s1945 + $0x28] sm:$0xf]
    %v1957 = vld [vmem:[%s1945 + $0x2c] sm:$0xf]
    %v1958 = vld [vmem:[%s1945 + $0x30] sm:$0xf]
    %v1959 = vld [vmem:[%s1945 + $0x34] sm:$0xf]
    %v1960 = vld [vmem:[%s1945 + $0x38] sm:$0xf]
    %v1961 = vld [vmem:[%s1945 + $0x3c] sm:$0xf]
    %v1963 = vrot.slane %v1865, 1
    %v1981 = vunpack.c.l.b16 %v1946
    %v1982 = vunpack.c.l.b16 %v1947
    %v1983 = vunpack.c.l.b16 %v1948
    %v1984 = vunpack.c.l.b16 %v1949
    %v1985 = vunpack.c.l.b16 %v1950
    %v1986 = vunpack.c.l.b16 %v1951
    %v1987 = vunpack.c.l.b16 %v1952
    %v1988 = vunpack.c.l.b16 %v1953
    %v1989 = vunpack.c.l.b16 %v1954
    %v1990 = vunpack.c.l.b16 %v1955
    %v1991 = vunpack.c.l.b16 %v1956
    %v1992 = vunpack.c.l.b16 %v1957
    %v1993 = vunpack.c.l.b16 %v1958
    %v1994 = vunpack.c.l.b16 %v1959
    %v1995 = vunpack.c.l.b16 %v1960
    %v1996 = vunpack.c.l.b16 %v1961
    %v1997 = vpack.c.b16 %v1982, %v1981
    %v1998 = vpack.c.b16 %v1984, %v1983
    %v1999 = vpack.c.b16 %v1986, %v1985
    %v2000 = vpack.c.b16 %v1988, %v1987
    %v2001 = vpack.c.b16 %v1990, %v1989
    %v2002 = vpack.c.b16 %v1992, %v1991
    %v2003 = vpack.c.b16 %v1994, %v1993
    %v2004 = vpack.c.b16 %v1996, %v1995
    %2013 = vmatpush.bf16.msra.mxu0 %v2004
    %2014 = vmatpush.bf16.msra.mxu0 %v2003
    %2015 = vmatpush.bf16.msra.mxu0 %v2002
    %2016 = vmatpush.bf16.msra.mxu0 %v2001
    %2017 = vmatpush.bf16.msra.mxu0 %v2000
    %2018 = vmatpush.bf16.msra.mxu0 %v1999
    %2019 = vmatpush.bf16.msra.mxu0 %v1998
    %2020 = vmatpush.bf16.msra.mxu0 %v1997
    %2021 = vmatmul.bf16.gmra.mxu0 %v1963
    %v2022 = vpop.f32.mrf.mxu0
    %v2023 = vadd.f32 0.0, %v2022
    %v2024 = vpop.f32.mrf.mxu0
    %2025 = vdwg.mxu0
    %v2026 = vadd.f32 %v1944, %v2023
    %s2027 = scalar_lea.vmem %s3, 1152
    %v2028 = vld [vmem:[%s2027] sm:$0xf]
    %v2029 = vld [vmem:[%s2027 + $0x4] sm:$0xf]
    %v2030 = vld [vmem:[%s2027 + $0x8] sm:$0xf]
    %v2031 = vld [vmem:[%s2027 + $0xc] sm:$0xf]
    %v2032 = vld [vmem:[%s2027 + $0x10] sm:$0xf]
    %v2033 = vld [vmem:[%s2027 + $0x14] sm:$0xf]
    %v2034 = vld [vmem:[%s2027 + $0x18] sm:$0xf]
    %v2035 = vld [vmem:[%s2027 + $0x1c] sm:$0xf]
    %v2036 = vld [vmem:[%s2027 + $0x20] sm:$0xf]
    %v2037 = vld [vmem:[%s2027 + $0x24] sm:$0xf]
    %v2038 = vld [vmem:[%s2027 + $0x28] sm:$0xf]
    %v2039 = vld [vmem:[%s2027 + $0x2c] sm:$0xf]
    %v2040 = vld [vmem:[%s2027 + $0x30] sm:$0xf]
    %v2041 = vld [vmem:[%s2027 + $0x34] sm:$0xf]
    %v2042 = vld [vmem:[%s2027 + $0x38] sm:$0xf]
    %v2043 = vld [vmem:[%s2027 + $0x3c] sm:$0xf]
    %v2044 = vrot.slane %v1865, 2
    %v2062 = vunpack.c.l.b16 %v2028
    %v2063 = vunpack.c.l.b16 %v2029
    %v2064 = vunpack.c.l.b16 %v2030
    %v2065 = vunpack.c.l.b16 %v2031
    %v2066 = vunpack.c.l.b16 %v2032
    %v2067 = vunpack.c.l.b16 %v2033
    %v2068 = vunpack.c.l.b16 %v2034
    %v2069 = vunpack.c.l.b16 %v2035
    %v2070 = vunpack.c.l.b16 %v2036
    %v2071 = vunpack.c.l.b16 %v2037
    %v2072 = vunpack.c.l.b16 %v2038
    %v2073 = vunpack.c.l.b16 %v2039
    %v2074 = vunpack.c.l.b16 %v2040
    %v2075 = vunpack.c.l.b16 %v2041
    %v2076 = vunpack.c.l.b16 %v2042
    %v2077 = vunpack.c.l.b16 %v2043
    %v2078 = vpack.c.b16 %v2063, %v2062
    %v2079 = vpack.c.b16 %v2065, %v2064
    %v2080 = vpack.c.b16 %v2067, %v2066
    %v2081 = vpack.c.b16 %v2069, %v2068
    %v2082 = vpack.c.b16 %v2071, %v2070
    %v2083 = vpack.c.b16 %v2073, %v2072
    %v2084 = vpack.c.b16 %v2075, %v2074
    %v2085 = vpack.c.b16 %v2077, %v2076
    %2094 = vmatpush.bf16.msra.mxu0 %v2085
    %2095 = vmatpush.bf16.msra.mxu0 %v2084
    %2096 = vmatpush.bf16.msra.mxu0 %v2083
    %2097 = vmatpush.bf16.msra.mxu0 %v2082
    %2098 = vmatpush.bf16.msra.mxu0 %v2081
    %2099 = vmatpush.bf16.msra.mxu0 %v2080
    %2100 = vmatpush.bf16.msra.mxu0 %v2079
    %2101 = vmatpush.bf16.msra.mxu0 %v2078
    %2102 = vmatmul.bf16.gmra.mxu0 %v2044
    %v2103 = vpop.f32.mrf.mxu0
    %v2104 = vadd.f32 0.0, %v2103
    %v2105 = vpop.f32.mrf.mxu0
    %2106 = vdwg.mxu0
    %v2107 = vadd.f32 %v2026, %v2104
    %s2108 = scalar_lea.vmem %s3, 1216
    %v2109 = vld [vmem:[%s2108] sm:$0xf]
    %v2110 = vld [vmem:[%s2108 + $0x4] sm:$0xf]
    %v2111 = vld [vmem:[%s2108 + $0x8] sm:$0xf]
    %v2112 = vld [vmem:[%s2108 + $0xc] sm:$0xf]
    %v2113 = vld [vmem:[%s2108 + $0x10] sm:$0xf]
    %v2114 = vld [vmem:[%s2108 + $0x14] sm:$0xf]
    %v2115 = vld [vmem:[%s2108 + $0x18] sm:$0xf]
    %v2116 = vld [vmem:[%s2108 + $0x1c] sm:$0xf]
    %v2117 = vld [vmem:[%s2108 + $0x20] sm:$0xf]
    %v2118 = vld [vmem:[%s2108 + $0x24] sm:$0xf]
    %v2119 = vld [vmem:[%s2108 + $0x28] sm:$0xf]
    %v2120 = vld [vmem:[%s2108 + $0x2c] sm:$0xf]
    %v2121 = vld [vmem:[%s2108 + $0x30] sm:$0xf]
    %v2122 = vld [vmem:[%s2108 + $0x34] sm:$0xf]
    %v2123 = vld [vmem:[%s2108 + $0x38] sm:$0xf]
    %v2124 = vld [vmem:[%s2108 + $0x3c] sm:$0xf]
    %v2125 = vrot.slane %v1865, 3
    %v2143 = vunpack.c.l.b16 %v2109
    %v2144 = vunpack.c.l.b16 %v2110
    %v2145 = vunpack.c.l.b16 %v2111
    %v2146 = vunpack.c.l.b16 %v2112
    %v2147 = vunpack.c.l.b16 %v2113
    %v2148 = vunpack.c.l.b16 %v2114
    %v2149 = vunpack.c.l.b16 %v2115
    %v2150 = vunpack.c.l.b16 %v2116
    %v2151 = vunpack.c.l.b16 %v2117
    %v2152 = vunpack.c.l.b16 %v2118
    %v2153 = vunpack.c.l.b16 %v2119
    %v2154 = vunpack.c.l.b16 %v2120
    %v2155 = vunpack.c.l.b16 %v2121
    %v2156 = vunpack.c.l.b16 %v2122
    %v2157 = vunpack.c.l.b16 %v2123
    %v2158 = vunpack.c.l.b16 %v2124
    %v2159 = vpack.c.b16 %v2144, %v2143
    %v2160 = vpack.c.b16 %v2146, %v2145
    %v2161 = vpack.c.b16 %v2148, %v2147
    %v2162 = vpack.c.b16 %v2150, %v2149
    %v2163 = vpack.c.b16 %v2152, %v2151
    %v2164 = vpack.c.b16 %v2154, %v2153
    %v2165 = vpack.c.b16 %v2156, %v2155
    %v2166 = vpack.c.b16 %v2158, %v2157
    %2175 = vmatpush.bf16.msra.mxu0 %v2166
    %2176 = vmatpush.bf16.msra.mxu0 %v2165
    %2177 = vmatpush.bf16.msra.mxu0 %v2164
    %2178 = vmatpush.bf16.msra.mxu0 %v2163
    %2179 = vmatpush.bf16.msra.mxu0 %v2162
    %2180 = vmatpush.bf16.msra.mxu0 %v2161
    %2181 = vmatpush.bf16.msra.mxu0 %v2160
    %2182 = vmatpush.bf16.msra.mxu0 %v2159
    %2183 = vmatmul.bf16.gmra.mxu0 %v2125
    %v2184 = vpop.f32.mrf.mxu0
    %v2185 = vadd.f32 0.0, %v2184
    %v2186 = vpop.f32.mrf.mxu0
    %2187 = vdwg.mxu0
    %v2188 = vadd.f32 %v2107, %v2185
    %v2189 = vpack.c.bf16 %v570, %v570
    %s2190 = scalar_lea.vmem %s3, 1280
    %v2191 = vld [vmem:[%s2190] sm:$0xf]
    %v2192 = vld [vmem:[%s2190 + $0x4] sm:$0xf]
    %v2193 = vld [vmem:[%s2190 + $0x8] sm:$0xf]
    %v2194 = vld [vmem:[%s2190 + $0xc] sm:$0xf]
    %v2195 = vld [vmem:[%s2190 + $0x10] sm:$0xf]
    %v2196 = vld [vmem:[%s2190 + $0x14] sm:$0xf]
    %v2197 = vld [vmem:[%s2190 + $0x18] sm:$0xf]
    %v2198 = vld [vmem:[%s2190 + $0x1c] sm:$0xf]
    %v2199 = vld [vmem:[%s2190 + $0x20] sm:$0xf]
    %v2200 = vld [vmem:[%s2190 + $0x24] sm:$0xf]
    %v2201 = vld [vmem:[%s2190 + $0x28] sm:$0xf]
    %v2202 = vld [vmem:[%s2190 + $0x2c] sm:$0xf]
    %v2203 = vld [vmem:[%s2190 + $0x30] sm:$0xf]
    %v2204 = vld [vmem:[%s2190 + $0x34] sm:$0xf]
    %v2205 = vld [vmem:[%s2190 + $0x38] sm:$0xf]
    %v2206 = vld [vmem:[%s2190 + $0x3c] sm:$0xf]
    %v2223 = vunpack.c.l.b16 %v2191
    %v2224 = vunpack.c.l.b16 %v2192
    %v2225 = vunpack.c.l.b16 %v2193
    %v2226 = vunpack.c.l.b16 %v2194
    %v2227 = vunpack.c.l.b16 %v2195
    %v2228 = vunpack.c.l.b16 %v2196
    %v2229 = vunpack.c.l.b16 %v2197
    %v2230 = vunpack.c.l.b16 %v2198
    %v2231 = vunpack.c.l.b16 %v2199
    %v2232 = vunpack.c.l.b16 %v2200
    %v2233 = vunpack.c.l.b16 %v2201
    %v2234 = vunpack.c.l.b16 %v2202
    %v2235 = vunpack.c.l.b16 %v2203
    %v2236 = vunpack.c.l.b16 %v2204
    %v2237 = vunpack.c.l.b16 %v2205
    %v2238 = vunpack.c.l.b16 %v2206
    %v2239 = vpack.c.b16 %v2224, %v2223
    %v2240 = vpack.c.b16 %v2226, %v2225
    %v2241 = vpack.c.b16 %v2228, %v2227
    %v2242 = vpack.c.b16 %v2230, %v2229
    %v2243 = vpack.c.b16 %v2232, %v2231
    %v2244 = vpack.c.b16 %v2234, %v2233
    %v2245 = vpack.c.b16 %v2236, %v2235
    %v2246 = vpack.c.b16 %v2238, %v2237
    %2255 = vmatpush.bf16.msra.mxu0 %v2246
    %2256 = vmatpush.bf16.msra.mxu0 %v2245
    %2257 = vmatpush.bf16.msra.mxu0 %v2244
    %2258 = vmatpush.bf16.msra.mxu0 %v2243
    %2259 = vmatpush.bf16.msra.mxu0 %v2242
    %2260 = vmatpush.bf16.msra.mxu0 %v2241
    %2261 = vmatpush.bf16.msra.mxu0 %v2240
    %2262 = vmatpush.bf16.msra.mxu0 %v2239
    %2263 = vmatmul.bf16.gmra.mxu0 %v2189
    %v2264 = vpop.f32.mrf.mxu0
    %v2265 = vadd.f32 0.0, %v2264
    %v2266 = vpop.f32.mrf.mxu0
    %2267 = vdwg.mxu0
    %v2268 = vadd.f32 %v2188, %v2265
    %s2269 = scalar_lea.vmem %s3, 1344
    %v2270 = vld [vmem:[%s2269] sm:$0xf]
    %v2271 = vld [vmem:[%s2269 + $0x4] sm:$0xf]
    %v2272 = vld [vmem:[%s2269 + $0x8] sm:$0xf]
    %v2273 = vld [vmem:[%s2269 + $0xc] sm:$0xf]
    %v2274 = vld [vmem:[%s2269 + $0x10] sm:$0xf]
    %v2275 = vld [vmem:[%s2269 + $0x14] sm:$0xf]
    %v2276 = vld [vmem:[%s2269 + $0x18] sm:$0xf]
    %v2277 = vld [vmem:[%s2269 + $0x1c] sm:$0xf]
    %v2278 = vld [vmem:[%s2269 + $0x20] sm:$0xf]
    %v2279 = vld [vmem:[%s2269 + $0x24] sm:$0xf]
    %v2280 = vld [vmem:[%s2269 + $0x28] sm:$0xf]
    %v2281 = vld [vmem:[%s2269 + $0x2c] sm:$0xf]
    %v2282 = vld [vmem:[%s2269 + $0x30] sm:$0xf]
    %v2283 = vld [vmem:[%s2269 + $0x34] sm:$0xf]
    %v2284 = vld [vmem:[%s2269 + $0x38] sm:$0xf]
    %v2285 = vld [vmem:[%s2269 + $0x3c] sm:$0xf]
    %v2287 = vrot.slane %v2189, 1
    %v2305 = vunpack.c.l.b16 %v2270
    %v2306 = vunpack.c.l.b16 %v2271
    %v2307 = vunpack.c.l.b16 %v2272
    %v2308 = vunpack.c.l.b16 %v2273
    %v2309 = vunpack.c.l.b16 %v2274
    %v2310 = vunpack.c.l.b16 %v2275
    %v2311 = vunpack.c.l.b16 %v2276
    %v2312 = vunpack.c.l.b16 %v2277
    %v2313 = vunpack.c.l.b16 %v2278
    %v2314 = vunpack.c.l.b16 %v2279
    %v2315 = vunpack.c.l.b16 %v2280
    %v2316 = vunpack.c.l.b16 %v2281
    %v2317 = vunpack.c.l.b16 %v2282
    %v2318 = vunpack.c.l.b16 %v2283
    %v2319 = vunpack.c.l.b16 %v2284
    %v2320 = vunpack.c.l.b16 %v2285
    %v2321 = vpack.c.b16 %v2306, %v2305
    %v2322 = vpack.c.b16 %v2308, %v2307
    %v2323 = vpack.c.b16 %v2310, %v2309
    %v2324 = vpack.c.b16 %v2312, %v2311
    %v2325 = vpack.c.b16 %v2314, %v2313
    %v2326 = vpack.c.b16 %v2316, %v2315
    %v2327 = vpack.c.b16 %v2318, %v2317
    %v2328 = vpack.c.b16 %v2320, %v2319
    %2337 = vmatpush.bf16.msra.mxu0 %v2328
    %2338 = vmatpush.bf16.msra.mxu0 %v2327
    %2339 = vmatpush.bf16.msra.mxu0 %v2326
    %2340 = vmatpush.bf16.msra.mxu0 %v2325
    %2341 = vmatpush.bf16.msra.mxu0 %v2324
    %2342 = vmatpush.bf16.msra.mxu0 %v2323
    %2343 = vmatpush.bf16.msra.mxu0 %v2322
    %2344 = vmatpush.bf16.msra.mxu0 %v2321
    %2345 = vmatmul.bf16.gmra.mxu0 %v2287
    %v2346 = vpop.f32.mrf.mxu0
    %v2347 = vadd.f32 0.0, %v2346
    %v2348 = vpop.f32.mrf.mxu0
    %2349 = vdwg.mxu0
    %v2350 = vadd.f32 %v2268, %v2347
    %s2351 = scalar_lea.vmem %s3, 1408
    %v2352 = vld [vmem:[%s2351] sm:$0xf]
    %v2353 = vld [vmem:[%s2351 + $0x4] sm:$0xf]
    %v2354 = vld [vmem:[%s2351 + $0x8] sm:$0xf]
    %v2355 = vld [vmem:[%s2351 + $0xc] sm:$0xf]
    %v2356 = vld [vmem:[%s2351 + $0x10] sm:$0xf]
    %v2357 = vld [vmem:[%s2351 + $0x14] sm:$0xf]
    %v2358 = vld [vmem:[%s2351 + $0x18] sm:$0xf]
    %v2359 = vld [vmem:[%s2351 + $0x1c] sm:$0xf]
    %v2360 = vld [vmem:[%s2351 + $0x20] sm:$0xf]
    %v2361 = vld [vmem:[%s2351 + $0x24] sm:$0xf]
    %v2362 = vld [vmem:[%s2351 + $0x28] sm:$0xf]
    %v2363 = vld [vmem:[%s2351 + $0x2c] sm:$0xf]
    %v2364 = vld [vmem:[%s2351 + $0x30] sm:$0xf]
    %v2365 = vld [vmem:[%s2351 + $0x34] sm:$0xf]
    %v2366 = vld [vmem:[%s2351 + $0x38] sm:$0xf]
    %v2367 = vld [vmem:[%s2351 + $0x3c] sm:$0xf]
    %v2368 = vrot.slane %v2189, 2
    %v2386 = vunpack.c.l.b16 %v2352
    %v2387 = vunpack.c.l.b16 %v2353
    %v2388 = vunpack.c.l.b16 %v2354
    %v2389 = vunpack.c.l.b16 %v2355
    %v2390 = vunpack.c.l.b16 %v2356
    %v2391 = vunpack.c.l.b16 %v2357
    %v2392 = vunpack.c.l.b16 %v2358
    %v2393 = vunpack.c.l.b16 %v2359
    %v2394 = vunpack.c.l.b16 %v2360
    %v2395 = vunpack.c.l.b16 %v2361
    %v2396 = vunpack.c.l.b16 %v2362
    %v2397 = vunpack.c.l.b16 %v2363
    %v2398 = vunpack.c.l.b16 %v2364
    %v2399 = vunpack.c.l.b16 %v2365
    %v2400 = vunpack.c.l.b16 %v2366
    %v2401 = vunpack.c.l.b16 %v2367
    %v2402 = vpack.c.b16 %v2387, %v2386
    %v2403 = vpack.c.b16 %v2389, %v2388
    %v2404 = vpack.c.b16 %v2391, %v2390
    %v2405 = vpack.c.b16 %v2393, %v2392
    %v2406 = vpack.c.b16 %v2395, %v2394
    %v2407 = vpack.c.b16 %v2397, %v2396
    %v2408 = vpack.c.b16 %v2399, %v2398
    %v2409 = vpack.c.b16 %v2401, %v2400
    %2418 = vmatpush.bf16.msra.mxu0 %v2409
    %2419 = vmatpush.bf16.msra.mxu0 %v2408
    %2420 = vmatpush.bf16.msra.mxu0 %v2407
    %2421 = vmatpush.bf16.msra.mxu0 %v2406
    %2422 = vmatpush.bf16.msra.mxu0 %v2405
    %2423 = vmatpush.bf16.msra.mxu0 %v2404
    %2424 = vmatpush.bf16.msra.mxu0 %v2403
    %2425 = vmatpush.bf16.msra.mxu0 %v2402
    %2426 = vmatmul.bf16.gmra.mxu0 %v2368
    %v2427 = vpop.f32.mrf.mxu0
    %v2428 = vadd.f32 0.0, %v2427
    %v2429 = vpop.f32.mrf.mxu0
    %2430 = vdwg.mxu0
    %v2431 = vadd.f32 %v2350, %v2428
    %s2432 = scalar_lea.vmem %s3, 1472
    %v2433 = vld [vmem:[%s2432] sm:$0xf]
    %v2434 = vld [vmem:[%s2432 + $0x4] sm:$0xf]
    %v2435 = vld [vmem:[%s2432 + $0x8] sm:$0xf]
    %v2436 = vld [vmem:[%s2432 + $0xc] sm:$0xf]
    %v2437 = vld [vmem:[%s2432 + $0x10] sm:$0xf]
    %v2438 = vld [vmem:[%s2432 + $0x14] sm:$0xf]
    %v2439 = vld [vmem:[%s2432 + $0x18] sm:$0xf]
    %v2440 = vld [vmem:[%s2432 + $0x1c] sm:$0xf]
    %v2441 = vld [vmem:[%s2432 + $0x20] sm:$0xf]
    %v2442 = vld [vmem:[%s2432 + $0x24] sm:$0xf]
    %v2443 = vld [vmem:[%s2432 + $0x28] sm:$0xf]
    %v2444 = vld [vmem:[%s2432 + $0x2c] sm:$0xf]
    %v2445 = vld [vmem:[%s2432 + $0x30] sm:$0xf]
    %v2446 = vld [vmem:[%s2432 + $0x34] sm:$0xf]
    %v2447 = vld [vmem:[%s2432 + $0x38] sm:$0xf]
    %v2448 = vld [vmem:[%s2432 + $0x3c] sm:$0xf]
    %v2449 = vrot.slane %v2189, 3
    %v2467 = vunpack.c.l.b16 %v2433
    %v2468 = vunpack.c.l.b16 %v2434
    %v2469 = vunpack.c.l.b16 %v2435
    %v2470 = vunpack.c.l.b16 %v2436
    %v2471 = vunpack.c.l.b16 %v2437
    %v2472 = vunpack.c.l.b16 %v2438
    %v2473 = vunpack.c.l.b16 %v2439
    %v2474 = vunpack.c.l.b16 %v2440
    %v2475 = vunpack.c.l.b16 %v2441
    %v2476 = vunpack.c.l.b16 %v2442
    %v2477 = vunpack.c.l.b16 %v2443
    %v2478 = vunpack.c.l.b16 %v2444
    %v2479 = vunpack.c.l.b16 %v2445
    %v2480 = vunpack.c.l.b16 %v2446
    %v2481 = vunpack.c.l.b16 %v2447
    %v2482 = vunpack.c.l.b16 %v2448
    %v2483 = vpack.c.b16 %v2468, %v2467
    %v2484 = vpack.c.b16 %v2470, %v2469
    %v2485 = vpack.c.b16 %v2472, %v2471
    %v2486 = vpack.c.b16 %v2474, %v2473
    %v2487 = vpack.c.b16 %v2476, %v2475
    %v2488 = vpack.c.b16 %v2478, %v2477
    %v2489 = vpack.c.b16 %v2480, %v2479
    %v2490 = vpack.c.b16 %v2482, %v2481
    %2499 = vmatpush.bf16.msra.mxu0 %v2490
    %2500 = vmatpush.bf16.msra.mxu0 %v2489
    %2501 = vmatpush.bf16.msra.mxu0 %v2488
    %2502 = vmatpush.bf16.msra.mxu0 %v2487
    %2503 = vmatpush.bf16.msra.mxu0 %v2486
    %2504 = vmatpush.bf16.msra.mxu0 %v2485
    %2505 = vmatpush.bf16.msra.mxu0 %v2484
    %2506 = vmatpush.bf16.msra.mxu0 %v2483
    %2507 = vmatmul.bf16.gmra.mxu0 %v2449
    %v2508 = vpop.f32.mrf.mxu0
    %v2509 = vadd.f32 0.0, %v2508
    %v2510 = vpop.f32.mrf.mxu0
    %2511 = vdwg.mxu0
    %v2512 = vadd.f32 %v2431, %v2509
    %v2513 = vpack.c.bf16 %v571, %v571
    %s2514 = scalar_lea.vmem %s3, 1536
    %v2515 = vld [vmem:[%s2514] sm:$0xf]
    %v2516 = vld [vmem:[%s2514 + $0x4] sm:$0xf]
    %v2517 = vld [vmem:[%s2514 + $0x8] sm:$0xf]
    %v2518 = vld [vmem:[%s2514 + $0xc] sm:$0xf]
    %v2519 = vld [vmem:[%s2514 + $0x10] sm:$0xf]
    %v2520 = vld [vmem:[%s2514 + $0x14] sm:$0xf]
    %v2521 = vld [vmem:[%s2514 + $0x18] sm:$0xf]
    %v2522 = vld [vmem:[%s2514 + $0x1c] sm:$0xf]
    %v2523 = vld [vmem:[%s2514 + $0x20] sm:$0xf]
    %v2524 = vld [vmem:[%s2514 + $0x24] sm:$0xf]
    %v2525 = vld [vmem:[%s2514 + $0x28] sm:$0xf]
    %v2526 = vld [vmem:[%s2514 + $0x2c] sm:$0xf]
    %v2527 = vld [vmem:[%s2514 + $0x30] sm:$0xf]
    %v2528 = vld [vmem:[%s2514 + $0x34] sm:$0xf]
    %v2529 = vld [vmem:[%s2514 + $0x38] sm:$0xf]
    %v2530 = vld [vmem:[%s2514 + $0x3c] sm:$0xf]
    %v2547 = vunpack.c.l.b16 %v2515
    %v2548 = vunpack.c.l.b16 %v2516
    %v2549 = vunpack.c.l.b16 %v2517
    %v2550 = vunpack.c.l.b16 %v2518
    %v2551 = vunpack.c.l.b16 %v2519
    %v2552 = vunpack.c.l.b16 %v2520
    %v2553 = vunpack.c.l.b16 %v2521
    %v2554 = vunpack.c.l.b16 %v2522
    %v2555 = vunpack.c.l.b16 %v2523
    %v2556 = vunpack.c.l.b16 %v2524
    %v2557 = vunpack.c.l.b16 %v2525
    %v2558 = vunpack.c.l.b16 %v2526
    %v2559 = vunpack.c.l.b16 %v2527
    %v2560 = vunpack.c.l.b16 %v2528
    %v2561 = vunpack.c.l.b16 %v2529
    %v2562 = vunpack.c.l.b16 %v2530
    %v2563 = vpack.c.b16 %v2548, %v2547
    %v2564 = vpack.c.b16 %v2550, %v2549
    %v2565 = vpack.c.b16 %v2552, %v2551
    %v2566 = vpack.c.b16 %v2554, %v2553
    %v2567 = vpack.c.b16 %v2556, %v2555
    %v2568 = vpack.c.b16 %v2558, %v2557
    %v2569 = vpack.c.b16 %v2560, %v2559
    %v2570 = vpack.c.b16 %v2562, %v2561
    %2579 = vmatpush.bf16.msra.mxu0 %v2570
    %2580 = vmatpush.bf16.msra.mxu0 %v2569
    %2581 = vmatpush.bf16.msra.mxu0 %v2568
    %2582 = vmatpush.bf16.msra.mxu0 %v2567
    %2583 = vmatpush.bf16.msra.mxu0 %v2566
    %2584 = vmatpush.bf16.msra.mxu0 %v2565
    %2585 = vmatpush.bf16.msra.mxu0 %v2564
    %2586 = vmatpush.bf16.msra.mxu0 %v2563
    %2587 = vmatmul.bf16.gmra.mxu0 %v2513
    %v2588 = vpop.f32.mrf.mxu0
    %v2589 = vadd.f32 0.0, %v2588
    %v2590 = vpop.f32.mrf.mxu0
    %2591 = vdwg.mxu0
    %v2592 = vadd.f32 %v2512, %v2589
    %v2593 = vld [vmem:[%s4] sm:$0x1]
    %v2595 = vperm.slane %v2593, 0
    %v2597 = vadd.f32 %v2592, %v2595
    %v2598 = vmax.f32 %v2597, 0.0
    %v2599 = vpack.c.bf16 %v2598, %v2598
    %v2600 = vld [vmem:[%s5] sm:$0xf]
    %v2601 = vld [vmem:[%s5 + $0x4] sm:$0xf]
    %v2602 = vld [vmem:[%s5 + $0x8] sm:$0xf]
    %v2603 = vld [vmem:[%s5 + $0xc] sm:$0xf]
    %v2604 = vld [vmem:[%s5 + $0x10] sm:$0xf]
    %v2605 = vld [vmem:[%s5 + $0x14] sm:$0xf]
    %v2606 = vld [vmem:[%s5 + $0x18] sm:$0xf]
    %v2607 = vld [vmem:[%s5 + $0x1c] sm:$0xf]
    %v2608 = vld [vmem:[%s5 + $0x20] sm:$0xf]
    %v2609 = vld [vmem:[%s5 + $0x24] sm:$0xf]
    %v2610 = vld [vmem:[%s5 + $0x28] sm:$0xf]
    %v2611 = vld [vmem:[%s5 + $0x2c] sm:$0xf]
    %v2612 = vld [vmem:[%s5 + $0x30] sm:$0xf]
    %v2613 = vld [vmem:[%s5 + $0x34] sm:$0xf]
    %v2614 = vld [vmem:[%s5 + $0x38] sm:$0xf]
    %v2615 = vld [vmem:[%s5 + $0x3c] sm:$0xf]
    %v2616 = vld [vmem:[%s6] sm:$0x1]
    %v2618 = vperm.slane %v2616, 0
    %v2636 = vunpack.c.l.b16 %v2600
    %v2637 = vunpack.c.l.b16 %v2601
    %v2638 = vunpack.c.l.b16 %v2602
    %v2639 = vunpack.c.l.b16 %v2603
    %v2640 = vunpack.c.l.b16 %v2604
    %v2641 = vunpack.c.l.b16 %v2605
    %v2642 = vunpack.c.l.b16 %v2606
    %v2643 = vunpack.c.l.b16 %v2607
    %v2644 = vunpack.c.l.b16 %v2608
    %v2645 = vunpack.c.l.b16 %v2609
    %v2646 = vunpack.c.l.b16 %v2610
    %v2647 = vunpack.c.l.b16 %v2611
    %v2648 = vunpack.c.l.b16 %v2612
    %v2649 = vunpack.c.l.b16 %v2613
    %v2650 = vunpack.c.l.b16 %v2614
    %v2651 = vunpack.c.l.b16 %v2615
    %v2652 = vpack.c.b16 %v2637, %v2636
    %v2653 = vpack.c.b16 %v2639, %v2638
    %v2654 = vpack.c.b16 %v2641, %v2640
    %v2655 = vpack.c.b16 %v2643, %v2642
    %v2656 = vpack.c.b16 %v2645, %v2644
    %v2657 = vpack.c.b16 %v2647, %v2646
    %v2658 = vpack.c.b16 %v2649, %v2648
    %v2659 = vpack.c.b16 %v2651, %v2650
    %2668 = vmatpush.bf16.msra.mxu0 %v2659
    %2669 = vmatpush.bf16.msra.mxu0 %v2658
    %2670 = vmatpush.bf16.msra.mxu0 %v2657
    %2671 = vmatpush.bf16.msra.mxu0 %v2656
    %2672 = vmatpush.bf16.msra.mxu0 %v2655
    %2673 = vmatpush.bf16.msra.mxu0 %v2654
    %2674 = vmatpush.bf16.msra.mxu0 %v2653
    %2675 = vmatpush.bf16.msra.mxu0 %v2652
    %2676 = vmatmul.bf16.gmra.mxu0 %v2599
    %v2677 = vpop.f32.mrf.mxu0
    %v2678 = vadd.f32 %v2618, %v2677
    %v2679 = vpop.f32.mrf.mxu0
    %2680 = vdwg.mxu0
    %v2681 = vmax.f32 %v2678, 0.0
    %v2682 = vpack.c.bf16 %v2681, %v2681
    %v2683 = vld [vmem:[%s7] sm:$0xf]
    %v2684 = vld [vmem:[%s7 + $0x4] sm:$0xf]
    %v2685 = vld [vmem:[%s7 + $0x8] sm:$0xf]
    %v2686 = vld [vmem:[%s7 + $0xc] sm:$0xf]
    %v2687 = vld [vmem:[%s7 + $0x10] sm:$0xf]
    %v2688 = vld [vmem:[%s7 + $0x14] sm:$0xf]
    %v2689 = vld [vmem:[%s7 + $0x18] sm:$0xf]
    %v2690 = vld [vmem:[%s7 + $0x1c] sm:$0xf]
    %v2691 = vld [vmem:[%s7 + $0x20] sm:$0xf]
    %v2692 = vld [vmem:[%s7 + $0x24] sm:$0xf]
    %v2693 = vld [vmem:[%s7 + $0x28] sm:$0xf]
    %v2694 = vld [vmem:[%s7 + $0x2c] sm:$0xf]
    %v2695 = vld [vmem:[%s7 + $0x30] sm:$0xf]
    %v2696 = vld [vmem:[%s7 + $0x34] sm:$0xf]
    %v2697 = vld [vmem:[%s7 + $0x38] sm:$0xf]
    %v2698 = vld [vmem:[%s7 + $0x3c] sm:$0xf]
    %v2699 = vld [vmem:[%s8] sm:$0x1]
    %v2701 = vperm.slane %v2699, 0
    %v2719 = vunpack.c.l.b16 %v2683
    %v2720 = vunpack.c.l.b16 %v2684
    %v2721 = vunpack.c.l.b16 %v2685
    %v2722 = vunpack.c.l.b16 %v2686
    %v2723 = vunpack.c.l.b16 %v2687
    %v2724 = vunpack.c.l.b16 %v2688
    %v2725 = vunpack.c.l.b16 %v2689
    %v2726 = vunpack.c.l.b16 %v2690
    %v2727 = vunpack.c.l.b16 %v2691
    %v2728 = vunpack.c.l.b16 %v2692
    %v2729 = vunpack.c.l.b16 %v2693
    %v2730 = vunpack.c.l.b16 %v2694
    %v2731 = vunpack.c.l.b16 %v2695
    %v2732 = vunpack.c.l.b16 %v2696
    %v2733 = vunpack.c.l.b16 %v2697
    %v2734 = vunpack.c.l.b16 %v2698
    %v2735 = vpack.c.b16 %v2720, %v2719
    %v2736 = vpack.c.b16 %v2722, %v2721
    %v2737 = vpack.c.b16 %v2724, %v2723
    %v2738 = vpack.c.b16 %v2726, %v2725
    %v2739 = vpack.c.b16 %v2728, %v2727
    %v2740 = vpack.c.b16 %v2730, %v2729
    %v2741 = vpack.c.b16 %v2732, %v2731
    %v2742 = vpack.c.b16 %v2734, %v2733
    %2751 = vmatpush.bf16.msra.mxu0 %v2742
    %2752 = vmatpush.bf16.msra.mxu0 %v2741
    %2753 = vmatpush.bf16.msra.mxu0 %v2740
    %2754 = vmatpush.bf16.msra.mxu0 %v2739
    %2755 = vmatpush.bf16.msra.mxu0 %v2738
    %2756 = vmatpush.bf16.msra.mxu0 %v2737
    %2757 = vmatpush.bf16.msra.mxu0 %v2736
    %2758 = vmatpush.bf16.msra.mxu0 %v2735
    %2759 = vmatmul.bf16.gmra.mxu0 %v2682
    %v2760 = vpop.f32.mrf.mxu0
    %v2761 = vadd.f32 %v2701, %v2760
    %v2762 = vpop.f32.mrf.mxu0
    %2763 = vdwg.mxu0
    %2764 = vst [vmem:[#allocation2] sm:$0x3] %v2761
    // Predicated region
    $region38: #{simplenet_forward.3} parent=1 // pred_check
      _
    $region39: #{simplenet_forward.3} parent=1 // pred_check_branch
      %2766 = sbr.rel (0) target = $region41
    $region40: #{simplenet_forward.3} parent=1 // pred_region
      %2768 = vsyncadd [#allocation3], 0
      %s2770 = sshll.u32 [#allocation2], 4
      %s2771 = int_to_ptr.vmem [resolvable:$true] %s2770
      %s2772 = sshll.u32 %s9, 4
      %s2773 = int_to_ptr.hbm [resolvable:$true] %s2772
      %2775 = dma.vmem_to_hbm [thread:$0]  %s2771, 32, %s2773, [#allocation3]
    $region41: #{simplenet_forward.3} parent=1 // pred_fallthru
      _
    // Predicated region
    $region42: #{simplenet_forward.3} parent=1 // pred_check
      _
    $region43: #{simplenet_forward.3} parent=1 // pred_check_branch
      %2777 = sbr.rel (0) target = $region45
    $region44: #{simplenet_forward.3} parent=1 // pred_region
      %2779 = dma.done [#allocation3], 32
    $region45: #{simplenet_forward.3} parent=1 // pred_fallthru
      _
    %2780 = vsyncpa [#allocation3], 1

</llo_original>
